<compile_context>
chip_gen: v7x
topology: tpu7x:2x2x1
jax: 0.10.0
libtpu: 0.0.40
codegen_flags: <defaults>
</compile_context>

<pallas_src>
import jax
import jax.numpy as jnp
from jax.experimental import pallas as pl
from jax.experimental.pallas import tpu as pltpu

BN_EPS = 1e-5

# TODO(synk): BatchNorm is applied with eval-mode running statistics folded
# into the weights at init time (mean=0, var=1, beta=0 for the synthetic
# init); training-mode batch statistics are not computed.


# ----------------------------- Pallas kernels -----------------------------

def _pick_tile(dim, max_tile, align=128):
    """Largest divisor of `dim` that is a multiple of `align` and <= max_tile.

    Falls back to the full dim (single block) if no aligned divisor exists.
    """
    if dim <= max_tile:
        return dim
    for t in range(max_tile - (max_tile % align), 0, -align):
        if dim % t == 0:
            return t
    return dim  # un-tileable K: single (possibly large) block


def _make_linear_kernel(apply_relu):
    def kernel(x_ref, w_ref, b_ref, o_ref):
        kt = pl.program_id(1)

        @pl.when(kt == 0)
        def _():
            o_ref[...] = jnp.zeros_like(o_ref)

        o_ref[...] += jnp.dot(x_ref[...], w_ref[...],
                              preferred_element_type=jnp.float32)

        @pl.when(kt == pl.num_programs(1) - 1)
        def _():
            out = o_ref[...] + b_ref[...]
            if apply_relu:
                out = jnp.maximum(out, 0.0)
            o_ref[...] = out

    return kernel


def _linear(x, w, bias, *, relu, max_tk=2048, max_tn=512):
    """(x @ w + bias) [+ ReLU].  N-tiled ("parallel") x K-tiled ("arbitrary").

    Weights are expected in bf16 (BN already folded); x is cast to the weight
    dtype; accumulation and output are f32 (accumulated in the K-resident
    output block).
    """
    M, K = x.shape
    K2, N = w.shape
    assert K == K2, (K, K2)
    x = x.astype(w.dtype)

    tk = _pick_tile(K, max_tk)
    tn = _pick_tile(N, max_tn)
    nk, nn = K // tk, N // tn

    return pl.pallas_call(
        _make_linear_kernel(relu),
        out_shape=jax.ShapeDtypeStruct((M, N), jnp.float32),
        grid=(nn, nk),
        in_specs=[
            pl.BlockSpec((M, tk), lambda nt, kt: (0, kt)),
            pl.BlockSpec((tk, tn), lambda nt, kt: (kt, nt)),
            pl.BlockSpec((1, tn), lambda nt, kt: (0, nt)),
        ],
        out_specs=pl.BlockSpec((M, tn), lambda nt, kt: (0, nt)),
        compiler_params=pltpu.CompilerParams(
            dimension_semantics=("parallel", "arbitrary")),
    )(x, w, bias.reshape(1, -1))


def _conv3x3_bn_relu(x_nhwc, w_flat, bias):
    """3x3 conv (stride 1, pad 1) + folded BN(eval) + ReLU via im2col + matmul.

    x_nhwc: (N, H, W, Cin) f32;  w_flat: (9*Cin, Cout) bf16 (kh,kw,cin order);
    bias: (Cout,) f32.
    """
    N, H, W, Cin = x_nhwc.shape
    Cout = w_flat.shape[1]
    xpad = jnp.pad(x_nhwc.astype(jnp.bfloat16), ((0, 0), (1, 1), (1, 1), (0, 0)))
    # (N, H, W, 9*Cin) im2col slab built by XLA; raises MXU K-depth 9x and
    # avoids per-tap strided-slice relayouts inside the kernel.
    cols = jnp.concatenate(
        [xpad[:, kh:kh + H, kw:kw + W, :] for kh in range(3) for kw in range(3)],
        axis=-1)
    y = _linear(cols.reshape(N * H * W, 9 * Cin), w_flat, bias, relu=True)
    return y.reshape(N, H, W, Cout)


def _prroi_pool(feat_nhwc, w_full, mod=None):
    """Precise RoI Pooling as an exact weighted reduction, batched over RoIs.

    feat_nhwc: (B, H, W, C) features.
    w_full   : (B, R, H*W) per-image stacked bin weights (R = num_rois * ph*pw,
               already divided by bin area).
    mod      : optional (B, C) channel modulation (folded into the kernel).
    returns  : (B, R, C) pooled features.
    """
    B, H, W, C = feat_nhwc.shape
    _, R, HW = w_full.shape
    assert HW == H * W
    if mod is None:
        mod = jnp.ones((B, C), jnp.float32)

    def kernel(f_ref, w_ref, m_ref, o_ref):
        f = f_ref[0].reshape(H * W, C) * m_ref[...]
        o_ref[0] = jnp.dot(w_ref[0], f, preferred_element_type=jnp.float32)

    return pl.pallas_call(
        kernel,
        out_shape=jax.ShapeDtypeStruct((B, R, C), jnp.float32),
        grid=(B,),
        in_specs=[
            pl.BlockSpec((1, H, W, C), lambda b: (b, 0, 0, 0)),
            pl.BlockSpec((1, R, HW), lambda b: (b, 0, 0)),
            pl.BlockSpec((1, C), lambda b: (b, 0)),
        ],
        out_specs=pl.BlockSpec((1, R, C), lambda b: (b, 0, 0)),
        compiler_params=pltpu.CompilerParams(dimension_semantics=("parallel",)),
    )(feat_nhwc, w_full, mod)


# ----------------------- PrRoIPool analytic weights -----------------------

def _tri_integral(t):
    """Antiderivative of max(0, 1-|u|) evaluated at t."""
    return jnp.where(
        t <= -1.0, 0.0,
        jnp.where(t <= 0.0, 0.5 * (t + 1.0) ** 2,
                  jnp.where(t <= 1.0, 1.0 - 0.5 * (1.0 - t) ** 2, 1.0)))


def _axis_weights(start, length, pooled, size):
    """Per-bin integration weights along one axis.  Returns (..., pooled, size)."""
    length = jnp.maximum(length, 0.0)            # PrRoI clamps RoI extent to >= 0
    bin_sz = length / pooled
    p = jnp.arange(pooled, dtype=jnp.float32)
    b0 = start[..., None] + bin_sz[..., None] * p
    b1 = b0 + bin_sz[..., None]
    idx = jnp.arange(size, dtype=jnp.float32)
    g = _tri_integral(b1[..., None] - idx) - _tri_integral(b0[..., None] - idx)
    inv = jnp.where(bin_sz > 0, 1.0 / jnp.where(bin_sz > 0, bin_sz, 1.0), 0.0)
    return g * inv[..., None, None]


def _prroi_weight_matrix(rois_xyxy, H, W, ph, pw, spatial_scale):
    """(..., 4) xyxy RoIs (image coords) -> (..., ph*pw, H*W) pooling weights."""
    x1 = rois_xyxy[..., 0] * spatial_scale
    y1 = rois_xyxy[..., 1] * spatial_scale
    x2 = rois_xyxy[..., 2] * spatial_scale
    y2 = rois_xyxy[..., 3] * spatial_scale
    gy = _axis_weights(y1, y2 - y1, ph, H)                       # (..., ph, H)
    gx = _axis_weights(x1, x2 - x1, pw, W)                       # (..., pw, W)
    w = gy[..., :, None, :, None] * gx[..., None, :, None, :]    # (..., ph, pw, H, W)
    return w.reshape(rois_xyxy.shape[:-1] + (ph * pw, H * W))


# ----------------------------- Parameters ---------------------------------

def init_params(key, input_dim, pred_input_dim, num_stages):
    keys = iter(jax.random.split(key, 64))

    def kaiming(shape, fan_in):
        return jax.random.normal(next(keys), shape, jnp.float32) * jnp.sqrt(2.0 / fan_in)

    def bn_fold(w, b, cout):
        # eval-mode BN: gamma ~ U(0,1), beta = 0, running mean 0 / var 1,
        # folded into the preceding conv/linear at init.  Weights stored bf16.
        gamma = jax.random.uniform(next(keys), (cout,), jnp.float32)
        beta = jnp.zeros((cout,), jnp.float32)
        mean = jnp.zeros((cout,), jnp.float32)
        var = jnp.ones((cout,), jnp.float32)
        s = gamma / jnp.sqrt(var + BN_EPS)
        return (w * s).astype(jnp.bfloat16), (b - mean) * s + beta

    def conv_p(cin, cout):
        # (3,3,cin,cout) kaiming, flattened to (9*cin, cout) in (kh,kw,cin) order
        w = kaiming((3, 3, cin, cout), cin * 9).reshape(9 * cin, cout)
        w, b = bn_fold(w, jnp.zeros((cout,), jnp.float32), cout)
        return dict(w=w, b=b)

    def lin_p(cin, cout, bn=True):
        w = kaiming((cin, cout), cin)
        b = jnp.zeros((cout,), jnp.float32)
        if bn:
            w, b = bn_fold(w, b, cout)
        return dict(w=w, b=b)

    # TODO(synk): pooled-feature flatten order is (ph, pw, C) instead of
    # PyTorch's (C, ph, pw); permute fc1_r / fc1_rt weights if loading a real
    # checkpoint.
    return dict(
        conv1_r=conv_p(input_dim, 256),
        conv1_t=conv_p(input_dim, 256),
        conv2_t=conv_p(256, pred_input_dim),
        stages=[dict(
            fc1_r=lin_p(pred_input_dim * 25, 1024),     # conv 5x5 p0 == linear
            fc2_r=lin_p(1024, pred_input_dim),          # conv 1x1 == linear
            fc1_rt=lin_p(pred_input_dim * 49, 1024),
            fc2_rt=lin_p(1024, 1024),
            bb_pred=lin_p(1024, 4, bn=False),           # tiny head: plain XLA
        ) for _ in range(num_stages)],
    )


# ------------------------------- Forward ----------------------------------

def convert_bb_delta_to_abs_coord(init_box, bb_delta):
    init_center = init_box[..., :2] + 0.5 * init_box[..., 2:]
    new_center = init_center + bb_delta[..., :2] * init_box[..., 2:]
    new_sz = jnp.exp(bb_delta[..., 2:]) * init_box[..., 2:]
    return jnp.concatenate([new_center - 0.5 * new_sz, new_sz], axis=-1)


def forward(params, feat1, feat2, bb1, proposals2):
    num_images, num_sequences = proposals2.shape[0], proposals2.shape[1]

    f1 = feat1[0]
    f1 = f1[0] if f1.ndim == 5 else f1.reshape(-1, num_sequences, *f1.shape[-3:])[0]
    bb = bb1[0]                                            # (num_seq, 4) xywh

    # ---- reference branch: conv1_r + PrRoIPool(5x5) + fc1_r/fc2_r per stage
    f1 = jnp.transpose(f1, (0, 2, 3, 1))                   # NCHW -> NHWC
    c = params['conv1_r']
    c3_r = _conv3x3_bn_relu(f1, c['w'], c['b'])            # (num_seq, H, W, 256)
    Hf, Wf = c3_r.shape[1], c3_r.shape[2]

    bb_xyxy = jnp.concatenate([bb[:, :2], bb[:, :2] + bb[:, 2:]], axis=1)
    w_r = _prroi_weight_matrix(bb_xyxy[:, None, :], Hf, Wf, 5, 5, 1.0 / 8)
    w_r = w_r.reshape(num_sequences, 25, Hf * Wf)
    pooled_r = _prroi_pool(c3_r, w_r).reshape(num_sequences, -1)  # (num_seq, 25*256)

    modulations = []
    for st in params['stages']:
        h = _linear(pooled_r, st['fc1_r']['w'], st['fc1_r']['b'], relu=True)
        m = _linear(h, st['fc2_r']['w'], st['fc2_r']['b'], relu=True)
        modulations.append(m)                              # (num_seq, 256)

    # ---- test branch: conv1_t + conv2_t
    f2 = feat2[0]
    if f2.ndim == 5:
        f2 = f2.reshape(-1, *f2.shape[-3:])
    f2 = jnp.transpose(f2, (0, 2, 3, 1))
    p1, p2 = params['conv1_t'], params['conv2_t']
    c_t = _conv3x3_bn_relu(f2, p1['w'], p1['b'])
    c3_t = _conv3x3_bn_relu(c_t, p2['w'], p2['b'])         # (B, H, W, 256)
    B = c3_t.shape[0]                                      # images*sequences

    mods = [jnp.tile(m.reshape(1, num_sequences, -1), (num_images, 1, 1)).reshape(B, -1)
            for m in modulations]

    proposals = proposals2.reshape(B, -1, 4)
    P = proposals.shape[1]

    bb_delta_all, prop_all = [], []
    for i, st in enumerate(params['stages']):
        prop_xyxy = jnp.concatenate(
            [proposals[..., :2], proposals[..., :2] + proposals[..., 2:]], axis=-1)
        w_t = _prroi_weight_matrix(prop_xyxy, Hf, Wf, 7, 7, 1.0 / 8)   # (B,P,49,HW)
        w_t = w_t.reshape(B, P * 49, Hf * Wf)
        pooled = _prroi_pool(c3_t, w_t, mods[i])                       # (B, P*49, 256)
        x = pooled.reshape(B * P, -1)                                  # (B*P, 49*256)
        h1 = _linear(x, st['fc1_rt']['w'], st['fc1_rt']['b'], relu=True)
        h2 = _linear(h1, st['fc2_rt']['w'], st['fc2_rt']['b'], relu=True)
        # 16x1024 @ 1024x4 head: kept in plain XLA (Pallas dispatch + masked
        # lane-4 stores would cost more than the work itself).
        delta = h2 @ st['bb_pred']['w'] + st['bb_pred']['b']
        bb_delta = delta.reshape(B, P, 4)
        bb_delta_all.append(bb_delta)
        prop_all.append(proposals)

        new_prop = convert_bb_delta_to_abs_coord(proposals, bb_delta)
        sz = jnp.sqrt(jnp.prod(new_prop[..., 2:], axis=-1))
        min_xy = jnp.min(new_prop[..., :2], axis=-1)
        max_xy = jnp.max(new_prop[..., :2], axis=-1)
        bad = (sz > 300.0) | (min_xy < -1000.0) | (max_xy > 1000.0)
        proposals = jnp.where(bad[..., None], 0.0, new_prop)

    bb_delta_out = [b.reshape(num_images, num_sequences, P, 4) for b in bb_delta_all]
    prop_out = [b.reshape(num_images, num_sequences, P, 4) for b in prop_all]
    return bb_delta_out, prop_out


# --------------------------------- Main ------------------------------------

if __name__ == "__main__":
    num_images, num_sequences, num_proposals = 1, 2, 8
    input_dim, pred_input_dim, num_stages = 64, 256, 3
    Hf = Wf = 16                                     # feature map (image ~ 128px)

    key = jax.random.PRNGKey(0)
    k_par, k_f1, k_f2, k_box = jax.random.split(key, 4)
    params = init_params(k_par, input_dim, pred_input_dim, num_stages)

    feat1 = (jax.random.normal(
        k_f1, (num_images * num_sequences, input_dim, Hf, Wf), jnp.float32),)
    feat2 = (jax.random.normal(
        k_f2, (num_images * num_sequences, input_dim, Hf, Wf), jnp.float32),)

    kxy, kwh, kpxy, kpwh = jax.random.split(k_box, 4)
    bb1 = jnp.concatenate([
        jax.random.uniform(kxy, (num_images, num_sequences, 2), minval=10., maxval=60.),
        jax.random.uniform(kwh, (num_images, num_sequences, 2), minval=20., maxval=60.),
    ], axis=-1)
    proposals2 = jnp.concatenate([
        jax.random.uniform(kpxy, (num_images, num_sequences, num_proposals, 2),
                           minval=5., maxval=70.),
        jax.random.uniform(kpwh, (num_images, num_sequences, num_proposals, 2),
                           minval=15., maxval=60.),
    ], axis=-1)

    bb_delta, bb_proposals = forward(params, feat1, feat2, bb1, proposals2)
    jax.block_until_ready((bb_delta, bb_proposals))

    assert len(bb_delta) == num_stages and len(bb_proposals) == num_stages
    assert bb_delta[0].shape == (num_images, num_sequences, num_proposals, 4)
    assert bb_proposals[0].shape == (num_images, num_sequences, num_proposals, 4)
    assert all(bool(jnp.all(jnp.isfinite(b))) for b in bb_delta)
    assert all(bool(jnp.all(jnp.isfinite(b))) for b in bb_proposals)
    print("KERNEL_OK")
</pallas_src>

<mosaic_0001>
module attributes {stable_mosaic.version = 11 : i64} {
  func.func @kernel(%arg0: i32, %arg1: i32, %arg2: memref<512x576xbf16, #tpu.memory_space<vmem>>, %arg3: memref<576x256xbf16, #tpu.memory_space<vmem>>, %arg4: memref<1x256xf32, #tpu.memory_space<vmem>>, %arg5: memref<512x256xf32, #tpu.memory_space<vmem>>) attributes {dimension_semantics = [#tpu.dimension_semantics<parallel>, #tpu.dimension_semantics<arbitrary>], iteration_bounds = array<i64: 1, 1>, scalar_prefetch = 0 : i64, scratch_operands = 0 : i64, tpu.core_type = #tpu.core_type<tc>, window_params = [{transform_indices = @transform_0, window_bounds = array<i64: 512, 576>}, {transform_indices = @transform_1, window_bounds = array<i64: 576, 256>}, {transform_indices = @transform_2, window_bounds = array<i64: 1, 256>}, {transform_indices = @transform_3, window_bounds = array<i64: 512, 256>}]} {
    %c0_i32 = arith.constant 0 : i32
    %0 = arith.cmpi eq, %arg1, %c0_i32 : i32
    %1 = arith.extui %0 : i1 to i32
    %c0_i32_0 = arith.constant 0 : i32
    %2 = arith.cmpi ne, %1, %c0_i32_0 : i32
    scf.if %2 {
      %cst_10 = arith.constant 0.000000e+00 : f32
      %12 = vector.broadcast %cst_10 : f32 to vector<512x256xf32>
      %c0_11 = arith.constant 0 : index
      %c0_12 = arith.constant 0 : index
      %13 = vector.load %arg5[%c0_11, %c0_12] : memref<512x256xf32, #tpu.memory_space<vmem>>, vector<512x256xf32>
      tpu.vector_store %arg5[%c0_11, %c0_12], %12 {strides = array<i32>} : memref<512x256xf32, #tpu.memory_space<vmem>>, vector<512x256xf32>,
    } else {
    }
    %c0 = arith.constant 0 : index
    %c0_1 = arith.constant 0 : index
    %3 = vector.load %arg5[%c0, %c0_1] : memref<512x256xf32, #tpu.memory_space<vmem>>, vector<512x256xf32>
    %c0_2 = arith.constant 0 : index
    %c0_3 = arith.constant 0 : index
    %4 = vector.load %arg2[%c0_2, %c0_3] : memref<512x576xbf16, #tpu.memory_space<vmem>>, vector<512x576xbf16>
    %c0_4 = arith.constant 0 : index
    %c0_5 = arith.constant 0 : index
    %5 = vector.load %arg3[%c0_4, %c0_5] : memref<576x256xbf16, #tpu.memory_space<vmem>>, vector<576x256xbf16>
    %cst = arith.constant dense<0.000000e+00> : vector<512x256xf32>
    %6 = tpu.matmul %4, %5, %cst {dimension_numbers = #tpu.dot_dimension_numbers<[1], [0], [0], [1], [0, 0, 1, 1], [], []>} : vector<512x576xbf16>, vector<576x256xbf16>, vector<512x256xf32> -> vector<512x256xf32>
    %7 = arith.addf %3, %6 : vector<512x256xf32>
    %c0_6 = arith.constant 0 : index
    %c0_7 = arith.constant 0 : index
    %8 = vector.load %arg5[%c0_6, %c0_7] : memref<512x256xf32, #tpu.memory_space<vmem>>, vector<512x256xf32>
    tpu.vector_store %arg5[%c0_6, %c0_7], %7 {strides = array<i32>} : memref<512x256xf32, #tpu.memory_space<vmem>>, vector<512x256xf32>,
    %c0_i32_8 = arith.constant 0 : i32
    %9 = arith.cmpi eq, %arg1, %c0_i32_8 : i32
    %10 = arith.extui %9 : i1 to i32
    %c0_i32_9 = arith.constant 0 : i32
    %11 = arith.cmpi ne, %10, %c0_i32_9 : i32
    scf.if %11 {
      %c0_10 = arith.constant 0 : index
      %c0_11 = arith.constant 0 : index
      %12 = vector.load %arg5[%c0_10, %c0_11] : memref<512x256xf32, #tpu.memory_space<vmem>>, vector<512x256xf32>
      %c0_12 = arith.constant 0 : index
      %c0_13 = arith.constant 0 : index
      %13 = vector.load %arg4[%c0_12, %c0_13] : memref<1x256xf32, #tpu.memory_space<vmem>>, vector<1x256xf32>
      %14 = vector.broadcast %13 : vector<1x256xf32> to vector<512x256xf32>
      %15 = arith.addf %12, %14 : vector<512x256xf32>
      %cst_14 = arith.constant 0.000000e+00 : f32
      %16 = vector.broadcast %cst_14 : f32 to vector<512x256xf32>
      %17 = arith.maximumf %15, %16 : vector<512x256xf32>
      %c0_15 = arith.constant 0 : index
      %c0_16 = arith.constant 0 : index
      %18 = vector.load %arg5[%c0_15, %c0_16] : memref<512x256xf32, #tpu.memory_space<vmem>>, vector<512x256xf32>
      tpu.vector_store %arg5[%c0_15, %c0_16], %17 {strides = array<i32>} : memref<512x256xf32, #tpu.memory_space<vmem>>, vector<512x256xf32>,
    } else {
    }
    return
  }
  func.func @transform_0(%arg0: i32, %arg1: i32) -> (i32, i32) {
    %c0_i32 = arith.constant 0 : i32
    %c0_i32_0 = arith.constant 0 : i32
    return %c0_i32, %arg1 : i32, i32
  }
  func.func @transform_1(%arg0: i32, %arg1: i32) -> (i32, i32) {
    %c0_i32 = arith.constant 0 : i32
    return %arg1, %arg0 : i32, i32
  }
  func.func @transform_2(%arg0: i32, %arg1: i32) -> (i32, i32) {
    %c0_i32 = arith.constant 0 : i32
    %c0_i32_0 = arith.constant 0 : i32
    return %c0_i32, %arg0 : i32, i32
  }
  func.func @transform_3(%arg0: i32, %arg1: i32) -> (i32, i32) {
    %c0_i32 = arith.constant 0 : i32
    %c0_i32_0 = arith.constant 0 : i32
    return %c0_i32, %arg0 : i32, i32
  }
}

</mosaic_0001>

<llo_original>
// kernel: tpu_custom_call.1
$region0: #{tpu_custom_call.1}
  #allocation0 [shape = 'u32[]', space=smem, size = 0x4, offset = 0x4, fixed_abs, tag = 'smem constant byte address 0x4 - core index']
  #allocation1 [shape = 'u32[144,128]{1,0:T(1,128)}', space=vmem, size = 0x12000, scoped, tag = 'internal scratch']
  %s0 = inlined_call_operand.vmem [shape: bf16[512,576], index: 0, kind: input, shape index: {}]
  %s1 = inlined_call_operand.vmem [shape: bf16[576,256], index: 1, kind: input, shape index: {}]
  %s2 = inlined_call_operand.vmem [shape: f32[1,256], index: 2, kind: input, shape index: {}]
  %s3 = inlined_call_operand.hbm [shape: f32[512,256], index: 3, kind: output, shape index: {}]
  %s4 = sld [smem:[#allocation0]]
  $region30: #{tpu_custom_call.1} parent=0
    _
  %s6 = ssub.s32 1, %s4
  %s7 = scalar_select 0, %s6, %s4
  $region1: #{tpu_custom_call.1} parent=0
    #allocation2 [shape = 'u8[524288]{0}', space=vmem, size = 0x80000, scoped, tag = 'output window, operand 0, single buffered']
    #allocation3 [shape = 's32[1]{0}', space=sflag, size = 0x4, scoped, tag = 'scoped memory for tpu_custom_call.1']
    %8 = vsyncpa [#allocation3], 0
    // Predicated region
    $region2: #{tpu_custom_call.1} parent=1 // pred_check
      _
    $region3: #{tpu_custom_call.1} parent=1 // pred_check_branch
      %10 = sbr.rel (0) target = $region5
    $region4: #{tpu_custom_call.1} parent=1 // pred_region
      _
    $region5: #{tpu_custom_call.1} parent=1 // pred_fallthru
      _
    // Predicated region
    $region6: #{tpu_custom_call.1} parent=1 // pred_check
      _
    $region7: #{tpu_custom_call.1} parent=1 // pred_check_branch
      %12 = sbr.rel (0) target = $region9
    $region8: #{tpu_custom_call.1} parent=1 // pred_region
      _
    $region9: #{tpu_custom_call.1} parent=1 // pred_fallthru
      _
    // Predicated region
    $region10: #{tpu_custom_call.1} parent=1 // pred_check
      _
    $region11: #{tpu_custom_call.1} parent=1 // pred_check_branch
      %14 = sbr.rel (0) target = $region13
    $region12: #{tpu_custom_call.1} parent=1 // pred_region
      _
    $region13: #{tpu_custom_call.1} parent=1 // pred_fallthru
      _
    %p16 = scmp.eq.s32.totalorder 0, 0
    // Predicated region
    $region14: #{tpu_custom_call.1} parent=1 // pred_check
      %p17 = pneg %p16
    $region15: #{tpu_custom_call.1} parent=1 // pred_check_branch
      %19 = sbr.rel (%p17) target = $region17
    $region16: #{tpu_custom_call.1} parent=1 // pred_region
      %20 = vst [vmem:[#allocation2] sm:$0xff] 0.0
      %21 = vst [vmem:[#allocation2 + $0x8] sm:$0xff] 0.0
      %22 = vst [vmem:[#allocation2 + $0x10] sm:$0xff] 0.0
      %23 = vst [vmem:[#allocation2 + $0x18] sm:$0xff] 0.0
      %24 = vst [vmem:[#allocation2 + $0x20] sm:$0xff] 0.0
      %25 = vst [vmem:[#allocation2 + $0x28] sm:$0xff] 0.0
      %26 = vst [vmem:[#allocation2 + $0x30] sm:$0xff] 0.0
      %27 = vst [vmem:[#allocation2 + $0x38] sm:$0xff] 0.0
      %28 = vst [vmem:[#allocation2 + $0x40] sm:$0xff] 0.0
      %29 = vst [vmem:[#allocation2 + $0x48] sm:$0xff] 0.0
      %30 = vst [vmem:[#allocation2 + $0x50] sm:$0xff] 0.0
      %31 = vst [vmem:[#allocation2 + $0x58] sm:$0xff] 0.0
      %32 = vst [vmem:[#allocation2 + $0x60] sm:$0xff] 0.0
      %33 = vst [vmem:[#allocation2 + $0x68] sm:$0xff] 0.0
      %34 = vst [vmem:[#allocation2 + $0x70] sm:$0xff] 0.0
      %35 = vst [vmem:[#allocation2 + $0x78] sm:$0xff] 0.0
      %36 = vst [vmem:[#allocation2 + $0x80] sm:$0xff] 0.0
      %37 = vst [vmem:[#allocation2 + $0x88] sm:$0xff] 0.0
      %38 = vst [vmem:[#allocation2 + $0x90] sm:$0xff] 0.0
      %39 = vst [vmem:[#allocation2 + $0x98] sm:$0xff] 0.0
      %40 = vst [vmem:[#allocation2 + $0xa0] sm:$0xff] 0.0
      %41 = vst [vmem:[#allocation2 + $0xa8] sm:$0xff] 0.0
      %42 = vst [vmem:[#allocation2 + $0xb0] sm:$0xff] 0.0
      %43 = vst [vmem:[#allocation2 + $0xb8] sm:$0xff] 0.0
      %44 = vst [vmem:[#allocation2 + $0xc0] sm:$0xff] 0.0
      %45 = vst [vmem:[#allocation2 + $0xc8] sm:$0xff] 0.0
      %46 = vst [vmem:[#allocation2 + $0xd0] sm:$0xff] 0.0
      %47 = vst [vmem:[#allocation2 + $0xd8] sm:$0xff] 0.0
      %48 = vst [vmem:[#allocation2 + $0xe0] sm:$0xff] 0.0
      %49 = vst [vmem:[#allocation2 + $0xe8] sm:$0xff] 0.0
      %50 = vst [vmem:[#allocation2 + $0xf0] sm:$0xff] 0.0
      %51 = vst [vmem:[#allocation2 + $0xf8] sm:$0xff] 0.0
      %52 = vst [vmem:[#allocation2 + $0x100] sm:$0xff] 0.0
      %53 = vst [vmem:[#allocation2 + $0x108] sm:$0xff] 0.0
      %54 = vst [vmem:[#allocation2 + $0x110] sm:$0xff] 0.0
      %55 = vst [vmem:[#allocation2 + $0x118] sm:$0xff] 0.0
      %56 = vst [vmem:[#allocation2 + $0x120] sm:$0xff] 0.0
      %57 = vst [vmem:[#allocation2 + $0x128] sm:$0xff] 0.0
      %58 = vst [vmem:[#allocation2 + $0x130] sm:$0xff] 0.0
      %59 = vst [vmem:[#allocation2 + $0x138] sm:$0xff] 0.0
      %60 = vst [vmem:[#allocation2 + $0x140] sm:$0xff] 0.0
      %61 = vst [vmem:[#allocation2 + $0x148] sm:$0xff] 0.0
      %62 = vst [vmem:[#allocation2 + $0x150] sm:$0xff] 0.0
      %63 = vst [vmem:[#allocation2 + $0x158] sm:$0xff] 0.0
      %64 = vst [vmem:[#allocation2 + $0x160] sm:$0xff] 0.0
      %65 = vst [vmem:[#allocation2 + $0x168] sm:$0xff] 0.0
      %66 = vst [vmem:[#allocation2 + $0x170] sm:$0xff] 0.0
      %67 = vst [vmem:[#allocation2 + $0x178] sm:$0xff] 0.0
      %68 = vst [vmem:[#allocation2 + $0x180] sm:$0xff] 0.0
      %69 = vst [vmem:[#allocation2 + $0x188] sm:$0xff] 0.0
      %70 = vst [vmem:[#allocation2 + $0x190] sm:$0xff] 0.0
      %71 = vst [vmem:[#allocation2 + $0x198] sm:$0xff] 0.0
      %72 = vst [vmem:[#allocation2 + $0x1a0] sm:$0xff] 0.0
      %73 = vst [vmem:[#allocation2 + $0x1a8] sm:$0xff] 0.0
      %74 = vst [vmem:[#allocation2 + $0x1b0] sm:$0xff] 0.0
      %75 = vst [vmem:[#allocation2 + $0x1b8] sm:$0xff] 0.0
      %76 = vst [vmem:[#allocation2 + $0x1c0] sm:$0xff] 0.0
      %77 = vst [vmem:[#allocation2 + $0x1c8] sm:$0xff] 0.0
      %78 = vst [vmem:[#allocation2 + $0x1d0] sm:$0xff] 0.0
      %79 = vst [vmem:[#allocation2 + $0x1d8] sm:$0xff] 0.0
      %80 = vst [vmem:[#allocation2 + $0x1e0] sm:$0xff] 0.0
      %81 = vst [vmem:[#allocation2 + $0x1e8] sm:$0xff] 0.0
      %82 = vst [vmem:[#allocation2 + $0x1f0] sm:$0xff] 0.0
      %83 = vst [vmem:[#allocation2 + $0x1f8] sm:$0xff] 0.0
      %84 = vst [vmem:[#allocation2 + $0x200] sm:$0xff] 0.0
      %85 = vst [vmem:[#allocation2 + $0x208] sm:$0xff] 0.0
      %86 = vst [vmem:[#allocation2 + $0x210] sm:$0xff] 0.0
      %87 = vst [vmem:[#allocation2 + $0x218] sm:$0xff] 0.0
      %88 = vst [vmem:[#allocation2 + $0x220] sm:$0xff] 0.0
      %89 = vst [vmem:[#allocation2 + $0x228] sm:$0xff] 0.0
      %90 = vst [vmem:[#allocation2 + $0x230] sm:$0xff] 0.0
      %91 = vst [vmem:[#allocation2 + $0x238] sm:$0xff] 0.0
      %92 = vst [vmem:[#allocation2 + $0x240] sm:$0xff] 0.0
      %93 = vst [vmem:[#allocation2 + $0x248] sm:$0xff] 0.0
      %94 = vst [vmem:[#allocation2 + $0x250] sm:$0xff] 0.0
      %95 = vst [vmem:[#allocation2 + $0x258] sm:$0xff] 0.0
      %96 = vst [vmem:[#allocation2 + $0x260] sm:$0xff] 0.0
      %97 = vst [vmem:[#allocation2 + $0x268] sm:$0xff] 0.0
      %98 = vst [vmem:[#allocation2 + $0x270] sm:$0xff] 0.0
      %99 = vst [vmem:[#allocation2 + $0x278] sm:$0xff] 0.0
      %100 = vst [vmem:[#allocation2 + $0x280] sm:$0xff] 0.0
      %101 = vst [vmem:[#allocation2 + $0x288] sm:$0xff] 0.0
      %102 = vst [vmem:[#allocation2 + $0x290] sm:$0xff] 0.0
      %103 = vst [vmem:[#allocation2 + $0x298] sm:$0xff] 0.0
      %104 = vst [vmem:[#allocation2 + $0x2a0] sm:$0xff] 0.0
      %105 = vst [vmem:[#allocation2 + $0x2a8] sm:$0xff] 0.0
      %106 = vst [vmem:[#allocation2 + $0x2b0] sm:$0xff] 0.0
      %107 = vst [vmem:[#allocation2 + $0x2b8] sm:$0xff] 0.0
      %108 = vst [vmem:[#allocation2 + $0x2c0] sm:$0xff] 0.0
      %109 = vst [vmem:[#allocation2 + $0x2c8] sm:$0xff] 0.0
      %110 = vst [vmem:[#allocation2 + $0x2d0] sm:$0xff] 0.0
      %111 = vst [vmem:[#allocation2 + $0x2d8] sm:$0xff] 0.0
      %112 = vst [vmem:[#allocation2 + $0x2e0] sm:$0xff] 0.0
      %113 = vst [vmem:[#allocation2 + $0x2e8] sm:$0xff] 0.0
      %114 = vst [vmem:[#allocation2 + $0x2f0] sm:$0xff] 0.0
      %115 = vst [vmem:[#allocation2 + $0x2f8] sm:$0xff] 0.0
      %116 = vst [vmem:[#allocation2 + $0x300] sm:$0xff] 0.0
      %117 = vst [vmem:[#allocation2 + $0x308] sm:$0xff] 0.0
      %118 = vst [vmem:[#allocation2 + $0x310] sm:$0xff] 0.0
      %119 = vst [vmem:[#allocation2 + $0x318] sm:$0xff] 0.0
      %120 = vst [vmem:[#allocation2 + $0x320] sm:$0xff] 0.0
      %121 = vst [vmem:[#allocation2 + $0x328] sm:$0xff] 0.0
      %122 = vst [vmem:[#allocation2 + $0x330] sm:$0xff] 0.0
      %123 = vst [vmem:[#allocation2 + $0x338] sm:$0xff] 0.0
      %124 = vst [vmem:[#allocation2 + $0x340] sm:$0xff] 0.0
      %125 = vst [vmem:[#allocation2 + $0x348] sm:$0xff] 0.0
      %126 = vst [vmem:[#allocation2 + $0x350] sm:$0xff] 0.0
      %127 = vst [vmem:[#allocation2 + $0x358] sm:$0xff] 0.0
      %128 = vst [vmem:[#allocation2 + $0x360] sm:$0xff] 0.0
      %129 = vst [vmem:[#allocation2 + $0x368] sm:$0xff] 0.0
      %130 = vst [vmem:[#allocation2 + $0x370] sm:$0xff] 0.0
      %131 = vst [vmem:[#allocation2 + $0x378] sm:$0xff] 0.0
      %132 = vst [vmem:[#allocation2 + $0x380] sm:$0xff] 0.0
      %133 = vst [vmem:[#allocation2 + $0x388] sm:$0xff] 0.0
      %134 = vst [vmem:[#allocation2 + $0x390] sm:$0xff] 0.0
      %135 = vst [vmem:[#allocation2 + $0x398] sm:$0xff] 0.0
      %136 = vst [vmem:[#allocation2 + $0x3a0] sm:$0xff] 0.0
      %137 = vst [vmem:[#allocation2 + $0x3a8] sm:$0xff] 0.0
      %138 = vst [vmem:[#allocation2 + $0x3b0] sm:$0xff] 0.0
      %139 = vst [vmem:[#allocation2 + $0x3b8] sm:$0xff] 0.0
      %140 = vst [vmem:[#allocation2 + $0x3c0] sm:$0xff] 0.0
      %141 = vst [vmem:[#allocation2 + $0x3c8] sm:$0xff] 0.0
      %142 = vst [vmem:[#allocation2 + $0x3d0] sm:$0xff] 0.0
      %143 = vst [vmem:[#allocation2 + $0x3d8] sm:$0xff] 0.0
      %144 = vst [vmem:[#allocation2 + $0x3e0] sm:$0xff] 0.0
      %145 = vst [vmem:[#allocation2 + $0x3e8] sm:$0xff] 0.0
      %146 = vst [vmem:[#allocation2 + $0x3f0] sm:$0xff] 0.0
      %147 = vst [vmem:[#allocation2 + $0x3f8] sm:$0xff] 0.0
    $region17: #{tpu_custom_call.1} parent=1 // pred_fallthru
      _
    %v148 = vld [vmem:[#allocation2] sm:$0xff]
    %v149 = vld [vmem:[#allocation2 + $0x8] sm:$0xff]
    %v150 = vld [vmem:[#allocation2 + $0x10] sm:$0xff]
    %v151 = vld [vmem:[#allocation2 + $0x18] sm:$0xff]
    %v152 = vld [vmem:[#allocation2 + $0x20] sm:$0xff]
    %v153 = vld [vmem:[#allocation2 + $0x28] sm:$0xff]
    %v154 = vld [vmem:[#allocation2 + $0x30] sm:$0xff]
    %v155 = vld [vmem:[#allocation2 + $0x38] sm:$0xff]
    %v156 = vld [vmem:[#allocation2 + $0x40] sm:$0xff]
    %v157 = vld [vmem:[#allocation2 + $0x48] sm:$0xff]
    %v158 = vld [vmem:[#allocation2 + $0x50] sm:$0xff]
    %v159 = vld [vmem:[#allocation2 + $0x58] sm:$0xff]
    %v160 = vld [vmem:[#allocation2 + $0x60] sm:$0xff]
    %v161 = vld [vmem:[#allocation2 + $0x68] sm:$0xff]
    %v162 = vld [vmem:[#allocation2 + $0x70] sm:$0xff]
    %v163 = vld [vmem:[#allocation2 + $0x78] sm:$0xff]
    %v164 = vld [vmem:[#allocation2 + $0x80] sm:$0xff]
    %v165 = vld [vmem:[#allocation2 + $0x88] sm:$0xff]
    %v166 = vld [vmem:[#allocation2 + $0x90] sm:$0xff]
    %v167 = vld [vmem:[#allocation2 + $0x98] sm:$0xff]
    %v168 = vld [vmem:[#allocation2 + $0xa0] sm:$0xff]
    %v169 = vld [vmem:[#allocation2 + $0xa8] sm:$0xff]
    %v170 = vld [vmem:[#allocation2 + $0xb0] sm:$0xff]
    %v171 = vld [vmem:[#allocation2 + $0xb8] sm:$0xff]
    %v172 = vld [vmem:[#allocation2 + $0xc0] sm:$0xff]
    %v173 = vld [vmem:[#allocation2 + $0xc8] sm:$0xff]
    %v174 = vld [vmem:[#allocation2 + $0xd0] sm:$0xff]
    %v175 = vld [vmem:[#allocation2 + $0xd8] sm:$0xff]
    %v176 = vld [vmem:[#allocation2 + $0xe0] sm:$0xff]
    %v177 = vld [vmem:[#allocation2 + $0xe8] sm:$0xff]
    %v178 = vld [vmem:[#allocation2 + $0xf0] sm:$0xff]
    %v179 = vld [vmem:[#allocation2 + $0xf8] sm:$0xff]
    %v180 = vld [vmem:[#allocation2 + $0x100] sm:$0xff]
    %v181 = vld [vmem:[#allocation2 + $0x108] sm:$0xff]
    %v182 = vld [vmem:[#allocation2 + $0x110] sm:$0xff]
    %v183 = vld [vmem:[#allocation2 + $0x118] sm:$0xff]
    %v184 = vld [vmem:[#allocation2 + $0x120] sm:$0xff]
    %v185 = vld [vmem:[#allocation2 + $0x128] sm:$0xff]
    %v186 = vld [vmem:[#allocation2 + $0x130] sm:$0xff]
    %v187 = vld [vmem:[#allocation2 + $0x138] sm:$0xff]
    %v188 = vld [vmem:[#allocation2 + $0x140] sm:$0xff]
    %v189 = vld [vmem:[#allocation2 + $0x148] sm:$0xff]
    %v190 = vld [vmem:[#allocation2 + $0x150] sm:$0xff]
    %v191 = vld [vmem:[#allocation2 + $0x158] sm:$0xff]
    %v192 = vld [vmem:[#allocation2 + $0x160] sm:$0xff]
    %v193 = vld [vmem:[#allocation2 + $0x168] sm:$0xff]
    %v194 = vld [vmem:[#allocation2 + $0x170] sm:$0xff]
    %v195 = vld [vmem:[#allocation2 + $0x178] sm:$0xff]
    %v196 = vld [vmem:[#allocation2 + $0x180] sm:$0xff]
    %v197 = vld [vmem:[#allocation2 + $0x188] sm:$0xff]
    %v198 = vld [vmem:[#allocation2 + $0x190] sm:$0xff]
    %v199 = vld [vmem:[#allocation2 + $0x198] sm:$0xff]
    %v200 = vld [vmem:[#allocation2 + $0x1a0] sm:$0xff]
    %v201 = vld [vmem:[#allocation2 + $0x1a8] sm:$0xff]
    %v202 = vld [vmem:[#allocation2 + $0x1b0] sm:$0xff]
    %v203 = vld [vmem:[#allocation2 + $0x1b8] sm:$0xff]
    %v204 = vld [vmem:[#allocation2 + $0x1c0] sm:$0xff]
    %v205 = vld [vmem:[#allocation2 + $0x1c8] sm:$0xff]
    %v206 = vld [vmem:[#allocation2 + $0x1d0] sm:$0xff]
    %v207 = vld [vmem:[#allocation2 + $0x1d8] sm:$0xff]
    %v208 = vld [vmem:[#allocation2 + $0x1e0] sm:$0xff]
    %v209 = vld [vmem:[#allocation2 + $0x1e8] sm:$0xff]
    %v210 = vld [vmem:[#allocation2 + $0x1f0] sm:$0xff]
    %v211 = vld [vmem:[#allocation2 + $0x1f8] sm:$0xff]
    %v212 = vld [vmem:[#allocation2 + $0x200] sm:$0xff]
    %v213 = vld [vmem:[#allocation2 + $0x208] sm:$0xff]
    %v214 = vld [vmem:[#allocation2 + $0x210] sm:$0xff]
    %v215 = vld [vmem:[#allocation2 + $0x218] sm:$0xff]
    %v216 = vld [vmem:[#allocation2 + $0x220] sm:$0xff]
    %v217 = vld [vmem:[#allocation2 + $0x228] sm:$0xff]
    %v218 = vld [vmem:[#allocation2 + $0x230] sm:$0xff]
    %v219 = vld [vmem:[#allocation2 + $0x238] sm:$0xff]
    %v220 = vld [vmem:[#allocation2 + $0x240] sm:$0xff]
    %v221 = vld [vmem:[#allocation2 + $0x248] sm:$0xff]
    %v222 = vld [vmem:[#allocation2 + $0x250] sm:$0xff]
    %v223 = vld [vmem:[#allocation2 + $0x258] sm:$0xff]
    %v224 = vld [vmem:[#allocation2 + $0x260] sm:$0xff]
    %v225 = vld [vmem:[#allocation2 + $0x268] sm:$0xff]
    %v226 = vld [vmem:[#allocation2 + $0x270] sm:$0xff]
    %v227 = vld [vmem:[#allocation2 + $0x278] sm:$0xff]
    %v228 = vld [vmem:[#allocation2 + $0x280] sm:$0xff]
    %v229 = vld [vmem:[#allocation2 + $0x288] sm:$0xff]
    %v230 = vld [vmem:[#allocation2 + $0x290] sm:$0xff]
    %v231 = vld [vmem:[#allocation2 + $0x298] sm:$0xff]
    %v232 = vld [vmem:[#allocation2 + $0x2a0] sm:$0xff]
    %v233 = vld [vmem:[#allocation2 + $0x2a8] sm:$0xff]
    %v234 = vld [vmem:[#allocation2 + $0x2b0] sm:$0xff]
    %v235 = vld [vmem:[#allocation2 + $0x2b8] sm:$0xff]
    %v236 = vld [vmem:[#allocation2 + $0x2c0] sm:$0xff]
    %v237 = vld [vmem:[#allocation2 + $0x2c8] sm:$0xff]
    %v238 = vld [vmem:[#allocation2 + $0x2d0] sm:$0xff]
    %v239 = vld [vmem:[#allocation2 + $0x2d8] sm:$0xff]
    %v240 = vld [vmem:[#allocation2 + $0x2e0] sm:$0xff]
    %v241 = vld [vmem:[#allocation2 + $0x2e8] sm:$0xff]
    %v242 = vld [vmem:[#allocation2 + $0x2f0] sm:$0xff]
    %v243 = vld [vmem:[#allocation2 + $0x2f8] sm:$0xff]
    %v244 = vld [vmem:[#allocation2 + $0x300] sm:$0xff]
    %v245 = vld [vmem:[#allocation2 + $0x308] sm:$0xff]
    %v246 = vld [vmem:[#allocation2 + $0x310] sm:$0xff]
    %v247 = vld [vmem:[#allocation2 + $0x318] sm:$0xff]
    %v248 = vld [vmem:[#allocation2 + $0x320] sm:$0xff]
    %v249 = vld [vmem:[#allocation2 + $0x328] sm:$0xff]
    %v250 = vld [vmem:[#allocation2 + $0x330] sm:$0xff]
    %v251 = vld [vmem:[#allocation2 + $0x338] sm:$0xff]
    %v252 = vld [vmem:[#allocation2 + $0x340] sm:$0xff]
    %v253 = vld [vmem:[#allocation2 + $0x348] sm:$0xff]
    %v254 = vld [vmem:[#allocation2 + $0x350] sm:$0xff]
    %v255 = vld [vmem:[#allocation2 + $0x358] sm:$0xff]
    %v256 = vld [vmem:[#allocation2 + $0x360] sm:$0xff]
    %v257 = vld [vmem:[#allocation2 + $0x368] sm:$0xff]
    %v258 = vld [vmem:[#allocation2 + $0x370] sm:$0xff]
    %v259 = vld [vmem:[#allocation2 + $0x378] sm:$0xff]
    %v260 = vld [vmem:[#allocation2 + $0x380] sm:$0xff]
    %v261 = vld [vmem:[#allocation2 + $0x388] sm:$0xff]
    %v262 = vld [vmem:[#allocation2 + $0x390] sm:$0xff]
    %v263 = vld [vmem:[#allocation2 + $0x398] sm:$0xff]
    %v264 = vld [vmem:[#allocation2 + $0x3a0] sm:$0xff]
    %v265 = vld [vmem:[#allocation2 + $0x3a8] sm:$0xff]
    %v266 = vld [vmem:[#allocation2 + $0x3b0] sm:$0xff]
    %v267 = vld [vmem:[#allocation2 + $0x3b8] sm:$0xff]
    %v268 = vld [vmem:[#allocation2 + $0x3c0] sm:$0xff]
    %v269 = vld [vmem:[#allocation2 + $0x3c8] sm:$0xff]
    %v270 = vld [vmem:[#allocation2 + $0x3d0] sm:$0xff]
    %v271 = vld [vmem:[#allocation2 + $0x3d8] sm:$0xff]
    %v272 = vld [vmem:[#allocation2 + $0x3e0] sm:$0xff]
    %v273 = vld [vmem:[#allocation2 + $0x3e8] sm:$0xff]
    %v274 = vld [vmem:[#allocation2 + $0x3f0] sm:$0xff]
    %v275 = vld [vmem:[#allocation2 + $0x3f8] sm:$0xff]
    %v276 = vld [vmem:[%s0] sm:$0xff]
    %v277 = vld [vmem:[%s0 + $0x8] sm:$0xff]
    %v278 = vld [vmem:[%s0 + $0x10] sm:$0xf]
    %v279 = vld [vmem:[%s0 + $0x14] sm:$0xff]
    %v280 = vld [vmem:[%s0 + $0x1c] sm:$0xff]
    %v281 = vld [vmem:[%s0 + $0x24] sm:$0xf]
    %v282 = vld [vmem:[%s0 + $0x28] sm:$0xff]
    %v283 = vld [vmem:[%s0 + $0x30] sm:$0xff]
    %v284 = vld [vmem:[%s0 + $0x38] sm:$0xf]
    %v285 = vld [vmem:[%s0 + $0x3c] sm:$0xff]
    %v286 = vld [vmem:[%s0 + $0x44] sm:$0xff]
    %v287 = vld [vmem:[%s0 + $0x4c] sm:$0xf]
    %v288 = vld [vmem:[%s0 + $0x50] sm:$0xff]
    %v289 = vld [vmem:[%s0 + $0x58] sm:$0xff]
    %v290 = vld [vmem:[%s0 + $0x60] sm:$0xf]
    %v291 = vld [vmem:[%s0 + $0x64] sm:$0xff]
    %v292 = vld [vmem:[%s0 + $0x6c] sm:$0xff]
    %v293 = vld [vmem:[%s0 + $0x74] sm:$0xf]
    %v294 = vld [vmem:[%s0 + $0x78] sm:$0xff]
    %v295 = vld [vmem:[%s0 + $0x80] sm:$0xff]
    %v296 = vld [vmem:[%s0 + $0x88] sm:$0xf]
    %v297 = vld [vmem:[%s0 + $0x8c] sm:$0xff]
    %v298 = vld [vmem:[%s0 + $0x94] sm:$0xff]
    %v299 = vld [vmem:[%s0 + $0x9c] sm:$0xf]
    %v300 = vld [vmem:[%s0 + $0xa0] sm:$0xff]
    %v301 = vld [vmem:[%s0 + $0xa8] sm:$0xff]
    %v302 = vld [vmem:[%s0 + $0xb0] sm:$0xf]
    %v303 = vld [vmem:[%s0 + $0xb4] sm:$0xff]
    %v304 = vld [vmem:[%s0 + $0xbc] sm:$0xff]
    %v305 = vld [vmem:[%s0 + $0xc4] sm:$0xf]
    %v306 = vld [vmem:[%s0 + $0xc8] sm:$0xff]
    %v307 = vld [vmem:[%s0 + $0xd0] sm:$0xff]
    %v308 = vld [vmem:[%s0 + $0xd8] sm:$0xf]
    %v309 = vld [vmem:[%s0 + $0xdc] sm:$0xff]
    %v310 = vld [vmem:[%s0 + $0xe4] sm:$0xff]
    %v311 = vld [vmem:[%s0 + $0xec] sm:$0xf]
    %v312 = vld [vmem:[%s0 + $0xf0] sm:$0xff]
    %v313 = vld [vmem:[%s0 + $0xf8] sm:$0xff]
    %v314 = vld [vmem:[%s0 + $0x100] sm:$0xf]
    %v315 = vld [vmem:[%s0 + $0x104] sm:$0xff]
    %v316 = vld [vmem:[%s0 + $0x10c] sm:$0xff]
    %v317 = vld [vmem:[%s0 + $0x114] sm:$0xf]
    %v318 = vld [vmem:[%s0 + $0x118] sm:$0xff]
    %v319 = vld [vmem:[%s0 + $0x120] sm:$0xff]
    %v320 = vld [vmem:[%s0 + $0x128] sm:$0xf]
    %v321 = vld [vmem:[%s0 + $0x12c] sm:$0xff]
    %v322 = vld [vmem:[%s0 + $0x134] sm:$0xff]
    %v323 = vld [vmem:[%s0 + $0x13c] sm:$0xf]
    %v324 = vld [vmem:[%s0 + $0x140] sm:$0xff]
    %v325 = vld [vmem:[%s0 + $0x148] sm:$0xff]
    %v326 = vld [vmem:[%s0 + $0x150] sm:$0xf]
    %v327 = vld [vmem:[%s0 + $0x154] sm:$0xff]
    %v328 = vld [vmem:[%s0 + $0x15c] sm:$0xff]
    %v329 = vld [vmem:[%s0 + $0x164] sm:$0xf]
    %v330 = vld [vmem:[%s0 + $0x168] sm:$0xff]
    %v331 = vld [vmem:[%s0 + $0x170] sm:$0xff]
    %v332 = vld [vmem:[%s0 + $0x178] sm:$0xf]
    %v333 = vld [vmem:[%s0 + $0x17c] sm:$0xff]
    %v334 = vld [vmem:[%s0 + $0x184] sm:$0xff]
    %v335 = vld [vmem:[%s0 + $0x18c] sm:$0xf]
    %v336 = vld [vmem:[%s0 + $0x190] sm:$0xff]
    %v337 = vld [vmem:[%s0 + $0x198] sm:$0xff]
    %v338 = vld [vmem:[%s0 + $0x1a0] sm:$0xf]
    %v339 = vld [vmem:[%s0 + $0x1a4] sm:$0xff]
    %v340 = vld [vmem:[%s0 + $0x1ac] sm:$0xff]
    %v341 = vld [vmem:[%s0 + $0x1b4] sm:$0xf]
    %v342 = vld [vmem:[%s0 + $0x1b8] sm:$0xff]
    %v343 = vld [vmem:[%s0 + $0x1c0] sm:$0xff]
    %v344 = vld [vmem:[%s0 + $0x1c8] sm:$0xf]
    %v345 = vld [vmem:[%s0 + $0x1cc] sm:$0xff]
    %v346 = vld [vmem:[%s0 + $0x1d4] sm:$0xff]
    %v347 = vld [vmem:[%s0 + $0x1dc] sm:$0xf]
    %v348 = vld [vmem:[%s0 + $0x1e0] sm:$0xff]
    %v349 = vld [vmem:[%s0 + $0x1e8] sm:$0xff]
    %v350 = vld [vmem:[%s0 + $0x1f0] sm:$0xf]
    %v351 = vld [vmem:[%s0 + $0x1f4] sm:$0xff]
    %v352 = vld [vmem:[%s0 + $0x1fc] sm:$0xff]
    %v353 = vld [vmem:[%s0 + $0x204] sm:$0xf]
    %v354 = vld [vmem:[%s0 + $0x208] sm:$0xff]
    %v355 = vld [vmem:[%s0 + $0x210] sm:$0xff]
    %v356 = vld [vmem:[%s0 + $0x218] sm:$0xf]
    %v357 = vld [vmem:[%s0 + $0x21c] sm:$0xff]
    %v358 = vld [vmem:[%s0 + $0x224] sm:$0xff]
    %v359 = vld [vmem:[%s0 + $0x22c] sm:$0xf]
    %v360 = vld [vmem:[%s0 + $0x230] sm:$0xff]
    %v361 = vld [vmem:[%s0 + $0x238] sm:$0xff]
    %v362 = vld [vmem:[%s0 + $0x240] sm:$0xf]
    %v363 = vld [vmem:[%s0 + $0x244] sm:$0xff]
    %v364 = vld [vmem:[%s0 + $0x24c] sm:$0xff]
    %v365 = vld [vmem:[%s0 + $0x254] sm:$0xf]
    %v366 = vld [vmem:[%s0 + $0x258] sm:$0xff]
    %v367 = vld [vmem:[%s0 + $0x260] sm:$0xff]
    %v368 = vld [vmem:[%s0 + $0x268] sm:$0xf]
    %v369 = vld [vmem:[%s0 + $0x26c] sm:$0xff]
    %v370 = vld [vmem:[%s0 + $0x274] sm:$0xff]
    %v371 = vld [vmem:[%s0 + $0x27c] sm:$0xf]
    %v372 = vld [vmem:[%s0 + $0x280] sm:$0xff]
    %v373 = vld [vmem:[%s0 + $0x288] sm:$0xff]
    %v374 = vld [vmem:[%s0 + $0x290] sm:$0xf]
    %v375 = vld [vmem:[%s0 + $0x294] sm:$0xff]
    %v376 = vld [vmem:[%s0 + $0x29c] sm:$0xff]
    %v377 = vld [vmem:[%s0 + $0x2a4] sm:$0xf]
    %v378 = vld [vmem:[%s0 + $0x2a8] sm:$0xff]
    %v379 = vld [vmem:[%s0 + $0x2b0] sm:$0xff]
    %v380 = vld [vmem:[%s0 + $0x2b8] sm:$0xf]
    %v381 = vld [vmem:[%s0 + $0x2bc] sm:$0xff]
    %v382 = vld [vmem:[%s0 + $0x2c4] sm:$0xff]
    %v383 = vld [vmem:[%s0 + $0x2cc] sm:$0xf]
    %v384 = vld [vmem:[%s0 + $0x2d0] sm:$0xff]
    %v385 = vld [vmem:[%s0 + $0x2d8] sm:$0xff]
    %v386 = vld [vmem:[%s0 + $0x2e0] sm:$0xf]
    %v387 = vld [vmem:[%s0 + $0x2e4] sm:$0xff]
    %v388 = vld [vmem:[%s0 + $0x2ec] sm:$0xff]
    %v389 = vld [vmem:[%s0 + $0x2f4] sm:$0xf]
    %v390 = vld [vmem:[%s0 + $0x2f8] sm:$0xff]
    %v391 = vld [vmem:[%s0 + $0x300] sm:$0xff]
    %v392 = vld [vmem:[%s0 + $0x308] sm:$0xf]
    %v393 = vld [vmem:[%s0 + $0x30c] sm:$0xff]
    %v394 = vld [vmem:[%s0 + $0x314] sm:$0xff]
    %v395 = vld [vmem:[%s0 + $0x31c] sm:$0xf]
    %v396 = vld [vmem:[%s0 + $0x320] sm:$0xff]
    %v397 = vld [vmem:[%s0 + $0x328] sm:$0xff]
    %v398 = vld [vmem:[%s0 + $0x330] sm:$0xf]
    %v399 = vld [vmem:[%s0 + $0x334] sm:$0xff]
    %v400 = vld [vmem:[%s0 + $0x33c] sm:$0xff]
    %v401 = vld [vmem:[%s0 + $0x344] sm:$0xf]
    %v402 = vld [vmem:[%s0 + $0x348] sm:$0xff]
    %v403 = vld [vmem:[%s0 + $0x350] sm:$0xff]
    %v404 = vld [vmem:[%s0 + $0x358] sm:$0xf]
    %v405 = vld [vmem:[%s0 + $0x35c] sm:$0xff]
    %v406 = vld [vmem:[%s0 + $0x364] sm:$0xff]
    %v407 = vld [vmem:[%s0 + $0x36c] sm:$0xf]
    %v408 = vld [vmem:[%s0 + $0x370] sm:$0xff]
    %v409 = vld [vmem:[%s0 + $0x378] sm:$0xff]
    %v410 = vld [vmem:[%s0 + $0x380] sm:$0xf]
    %v411 = vld [vmem:[%s0 + $0x384] sm:$0xff]
    %v412 = vld [vmem:[%s0 + $0x38c] sm:$0xff]
    %v413 = vld [vmem:[%s0 + $0x394] sm:$0xf]
    %v414 = vld [vmem:[%s0 + $0x398] sm:$0xff]
    %v415 = vld [vmem:[%s0 + $0x3a0] sm:$0xff]
    %v416 = vld [vmem:[%s0 + $0x3a8] sm:$0xf]
    %v417 = vld [vmem:[%s0 + $0x3ac] sm:$0xff]
    %v418 = vld [vmem:[%s0 + $0x3b4] sm:$0xff]
    %v419 = vld [vmem:[%s0 + $0x3bc] sm:$0xf]
    %v420 = vld [vmem:[%s0 + $0x3c0] sm:$0xff]
    %v421 = vld [vmem:[%s0 + $0x3c8] sm:$0xff]
    %v422 = vld [vmem:[%s0 + $0x3d0] sm:$0xf]
    %v423 = vld [vmem:[%s0 + $0x3d4] sm:$0xff]
    %v424 = vld [vmem:[%s0 + $0x3dc] sm:$0xff]
    %v425 = vld [vmem:[%s0 + $0x3e4] sm:$0xf]
    %v426 = vld [vmem:[%s0 + $0x3e8] sm:$0xff]
    %v427 = vld [vmem:[%s0 + $0x3f0] sm:$0xff]
    %v428 = vld [vmem:[%s0 + $0x3f8] sm:$0xf]
    %v429 = vld [vmem:[%s0 + $0x3fc] sm:$0xff]
    %v430 = vld [vmem:[%s0 + $0x404] sm:$0xff]
    %v431 = vld [vmem:[%s0 + $0x40c] sm:$0xf]
    %v432 = vld [vmem:[%s0 + $0x410] sm:$0xff]
    %v433 = vld [vmem:[%s0 + $0x418] sm:$0xff]
    %v434 = vld [vmem:[%s0 + $0x420] sm:$0xf]
    %v435 = vld [vmem:[%s0 + $0x424] sm:$0xff]
    %v436 = vld [vmem:[%s0 + $0x42c] sm:$0xff]
    %v437 = vld [vmem:[%s0 + $0x434] sm:$0xf]
    %v438 = vld [vmem:[%s0 + $0x438] sm:$0xff]
    %v439 = vld [vmem:[%s0 + $0x440] sm:$0xff]
    %v440 = vld [vmem:[%s0 + $0x448] sm:$0xf]
    %v441 = vld [vmem:[%s0 + $0x44c] sm:$0xff]
    %v442 = vld [vmem:[%s0 + $0x454] sm:$0xff]
    %v443 = vld [vmem:[%s0 + $0x45c] sm:$0xf]
    %v444 = vld [vmem:[%s0 + $0x460] sm:$0xff]
    %v445 = vld [vmem:[%s0 + $0x468] sm:$0xff]
    %v446 = vld [vmem:[%s0 + $0x470] sm:$0xf]
    %v447 = vld [vmem:[%s0 + $0x474] sm:$0xff]
    %v448 = vld [vmem:[%s0 + $0x47c] sm:$0xff]
    %v449 = vld [vmem:[%s0 + $0x484] sm:$0xf]
    %v450 = vld [vmem:[%s0 + $0x488] sm:$0xff]
    %v451 = vld [vmem:[%s0 + $0x490] sm:$0xff]
    %v452 = vld [vmem:[%s0 + $0x498] sm:$0xf]
    %v453 = vld [vmem:[%s0 + $0x49c] sm:$0xff]
    %v454 = vld [vmem:[%s0 + $0x4a4] sm:$0xff]
    %v455 = vld [vmem:[%s0 + $0x4ac] sm:$0xf]
    %v456 = vld [vmem:[%s0 + $0x4b0] sm:$0xff]
    %v457 = vld [vmem:[%s0 + $0x4b8] sm:$0xff]
    %v458 = vld [vmem:[%s0 + $0x4c0] sm:$0xf]
    %v459 = vld [vmem:[%s0 + $0x4c4] sm:$0xff]
    %v460 = vld [vmem:[%s0 + $0x4cc] sm:$0xff]
    %v461 = vld [vmem:[%s0 + $0x4d4] sm:$0xf]
    %v462 = vld [vmem:[%s0 + $0x4d8] sm:$0xff]
    %v463 = vld [vmem:[%s0 + $0x4e0] sm:$0xff]
    %v464 = vld [vmem:[%s0 + $0x4e8] sm:$0xf]
    %v465 = vld [vmem:[%s0 + $0x4ec] sm:$0xff]
    %v466 = vld [vmem:[%s0 + $0x4f4] sm:$0xff]
    %v467 = vld [vmem:[%s0 + $0x4fc] sm:$0xf]
    %v468 = vld [vmem:[%s1] sm:$0xff]
    %v469 = vld [vmem:[%s1 + $0x8] sm:$0xff]
    %v470 = vld [vmem:[%s1 + $0x10] sm:$0xff]
    %v471 = vld [vmem:[%s1 + $0x18] sm:$0xff]
    %v472 = vld [vmem:[%s1 + $0x20] sm:$0xff]
    %v473 = vld [vmem:[%s1 + $0x28] sm:$0xff]
    %v474 = vld [vmem:[%s1 + $0x30] sm:$0xff]
    %v475 = vld [vmem:[%s1 + $0x38] sm:$0xff]
    %v476 = vld [vmem:[%s1 + $0x40] sm:$0xff]
    %v477 = vld [vmem:[%s1 + $0x48] sm:$0xff]
    %v478 = vld [vmem:[%s1 + $0x50] sm:$0xff]
    %v479 = vld [vmem:[%s1 + $0x58] sm:$0xff]
    %v480 = vld [vmem:[%s1 + $0x60] sm:$0xff]
    %v481 = vld [vmem:[%s1 + $0x68] sm:$0xff]
    %v482 = vld [vmem:[%s1 + $0x70] sm:$0xff]
    %v483 = vld [vmem:[%s1 + $0x78] sm:$0xff]
    %v484 = vld [vmem:[%s1 + $0x80] sm:$0xff]
    %v485 = vld [vmem:[%s1 + $0x88] sm:$0xff]
    %v486 = vld [vmem:[%s1 + $0x90] sm:$0xff]
    %v487 = vld [vmem:[%s1 + $0x98] sm:$0xff]
    %v488 = vld [vmem:[%s1 + $0xa0] sm:$0xff]
    %v489 = vld [vmem:[%s1 + $0xa8] sm:$0xff]
    %v490 = vld [vmem:[%s1 + $0xb0] sm:$0xff]
    %v491 = vld [vmem:[%s1 + $0xb8] sm:$0xff]
    %v492 = vld [vmem:[%s1 + $0xc0] sm:$0xff]
    %v493 = vld [vmem:[%s1 + $0xc8] sm:$0xff]
    %v494 = vld [vmem:[%s1 + $0xd0] sm:$0xff]
    %v495 = vld [vmem:[%s1 + $0xd8] sm:$0xff]
    %v496 = vld [vmem:[%s1 + $0xe0] sm:$0xff]
    %v497 = vld [vmem:[%s1 + $0xe8] sm:$0xff]
    %v498 = vld [vmem:[%s1 + $0xf0] sm:$0xff]
    %v499 = vld [vmem:[%s1 + $0xf8] sm:$0xff]
    %v500 = vld [vmem:[%s1 + $0x100] sm:$0xff]
    %v501 = vld [vmem:[%s1 + $0x108] sm:$0xff]
    %v502 = vld [vmem:[%s1 + $0x110] sm:$0xff]
    %v503 = vld [vmem:[%s1 + $0x118] sm:$0xff]
    %v504 = vld [vmem:[%s1 + $0x120] sm:$0xff]
    %v505 = vld [vmem:[%s1 + $0x128] sm:$0xff]
    %v506 = vld [vmem:[%s1 + $0x130] sm:$0xff]
    %v507 = vld [vmem:[%s1 + $0x138] sm:$0xff]
    %v508 = vld [vmem:[%s1 + $0x140] sm:$0xff]
    %v509 = vld [vmem:[%s1 + $0x148] sm:$0xff]
    %v510 = vld [vmem:[%s1 + $0x150] sm:$0xff]
    %v511 = vld [vmem:[%s1 + $0x158] sm:$0xff]
    %v512 = vld [vmem:[%s1 + $0x160] sm:$0xff]
    %v513 = vld [vmem:[%s1 + $0x168] sm:$0xff]
    %v514 = vld [vmem:[%s1 + $0x170] sm:$0xff]
    %v515 = vld [vmem:[%s1 + $0x178] sm:$0xff]
    %v516 = vld [vmem:[%s1 + $0x180] sm:$0xff]
    %v517 = vld [vmem:[%s1 + $0x188] sm:$0xff]
    %v518 = vld [vmem:[%s1 + $0x190] sm:$0xff]
    %v519 = vld [vmem:[%s1 + $0x198] sm:$0xff]
    %v520 = vld [vmem:[%s1 + $0x1a0] sm:$0xff]
    %v521 = vld [vmem:[%s1 + $0x1a8] sm:$0xff]
    %v522 = vld [vmem:[%s1 + $0x1b0] sm:$0xff]
    %v523 = vld [vmem:[%s1 + $0x1b8] sm:$0xff]
    %v524 = vld [vmem:[%s1 + $0x1c0] sm:$0xff]
    %v525 = vld [vmem:[%s1 + $0x1c8] sm:$0xff]
    %v526 = vld [vmem:[%s1 + $0x1d0] sm:$0xff]
    %v527 = vld [vmem:[%s1 + $0x1d8] sm:$0xff]
    %v528 = vld [vmem:[%s1 + $0x1e0] sm:$0xff]
    %v529 = vld [vmem:[%s1 + $0x1e8] sm:$0xff]
    %v530 = vld [vmem:[%s1 + $0x1f0] sm:$0xff]
    %v531 = vld [vmem:[%s1 + $0x1f8] sm:$0xff]
    %v532 = vld [vmem:[%s1 + $0x200] sm:$0xff]
    %v533 = vld [vmem:[%s1 + $0x208] sm:$0xff]
    %v534 = vld [vmem:[%s1 + $0x210] sm:$0xff]
    %v535 = vld [vmem:[%s1 + $0x218] sm:$0xff]
    %v536 = vld [vmem:[%s1 + $0x220] sm:$0xff]
    %v537 = vld [vmem:[%s1 + $0x228] sm:$0xff]
    %v538 = vld [vmem:[%s1 + $0x230] sm:$0xff]
    %v539 = vld [vmem:[%s1 + $0x238] sm:$0xff]
    %v732 = vunpack.c.l.b16 %v276
    %v733 = vunpack.c.h.b16 %v276
    %v734 = vunpack.c.l.b16 %v277
    %v735 = vunpack.c.h.b16 %v277
    %v736 = vunpack.c.l.b16 %v278
    %v737 = vunpack.c.l.b16 %v279
    %v738 = vunpack.c.h.b16 %v279
    %v739 = vunpack.c.l.b16 %v280
    %v740 = vunpack.c.h.b16 %v280
    %v741 = vunpack.c.l.b16 %v281
    %v742 = vunpack.c.l.b16 %v282
    %v743 = vunpack.c.h.b16 %v282
    %v744 = vunpack.c.l.b16 %v283
    %v745 = vunpack.c.h.b16 %v283
    %v746 = vunpack.c.l.b16 %v284
    %v747 = vunpack.c.l.b16 %v285
    %v748 = vunpack.c.h.b16 %v285
    %v749 = vunpack.c.l.b16 %v286
    %v750 = vunpack.c.h.b16 %v286
    %v751 = vunpack.c.l.b16 %v287
    %v752 = vunpack.c.l.b16 %v288
    %v753 = vunpack.c.h.b16 %v288
    %v754 = vunpack.c.l.b16 %v289
    %v755 = vunpack.c.h.b16 %v289
    %v756 = vunpack.c.l.b16 %v290
    %v757 = vunpack.c.l.b16 %v291
    %v758 = vunpack.c.h.b16 %v291
    %v759 = vunpack.c.l.b16 %v292
    %v760 = vunpack.c.h.b16 %v292
    %v761 = vunpack.c.l.b16 %v293
    %v762 = vunpack.c.l.b16 %v294
    %v763 = vunpack.c.h.b16 %v294
    %v764 = vunpack.c.l.b16 %v295
    %v765 = vunpack.c.h.b16 %v295
    %v766 = vunpack.c.l.b16 %v296
    %v767 = vunpack.c.l.b16 %v297
    %v768 = vunpack.c.h.b16 %v297
    %v769 = vunpack.c.l.b16 %v298
    %v770 = vunpack.c.h.b16 %v298
    %v771 = vunpack.c.l.b16 %v299
    %v772 = vunpack.c.l.b16 %v300
    %v773 = vunpack.c.h.b16 %v300
    %v774 = vunpack.c.l.b16 %v301
    %v775 = vunpack.c.h.b16 %v301
    %v776 = vunpack.c.l.b16 %v302
    %v777 = vunpack.c.l.b16 %v303
    %v778 = vunpack.c.h.b16 %v303
    %v779 = vunpack.c.l.b16 %v304
    %v780 = vunpack.c.h.b16 %v304
    %v781 = vunpack.c.l.b16 %v305
    %v782 = vunpack.c.l.b16 %v306
    %v783 = vunpack.c.h.b16 %v306
    %v784 = vunpack.c.l.b16 %v307
    %v785 = vunpack.c.h.b16 %v307
    %v786 = vunpack.c.l.b16 %v308
    %v787 = vunpack.c.l.b16 %v309
    %v788 = vunpack.c.h.b16 %v309
    %v789 = vunpack.c.l.b16 %v310
    %v790 = vunpack.c.h.b16 %v310
    %v791 = vunpack.c.l.b16 %v311
    %v792 = vunpack.c.l.b16 %v312
    %v793 = vunpack.c.h.b16 %v312
    %v794 = vunpack.c.l.b16 %v313
    %v795 = vunpack.c.h.b16 %v313
    %v796 = vunpack.c.l.b16 %v314
    %v797 = vunpack.c.l.b16 %v315
    %v798 = vunpack.c.h.b16 %v315
    %v799 = vunpack.c.l.b16 %v316
    %v800 = vunpack.c.h.b16 %v316
    %v801 = vunpack.c.l.b16 %v317
    %v802 = vunpack.c.l.b16 %v318
    %v803 = vunpack.c.h.b16 %v318
    %v804 = vunpack.c.l.b16 %v319
    %v805 = vunpack.c.h.b16 %v319
    %v806 = vunpack.c.l.b16 %v320
    %v807 = vunpack.c.l.b16 %v321
    %v808 = vunpack.c.h.b16 %v321
    %v809 = vunpack.c.l.b16 %v322
    %v810 = vunpack.c.h.b16 %v322
    %v811 = vunpack.c.l.b16 %v323
    %v812 = vunpack.c.l.b16 %v324
    %v813 = vunpack.c.h.b16 %v324
    %v814 = vunpack.c.l.b16 %v325
    %v815 = vunpack.c.h.b16 %v325
    %v816 = vunpack.c.l.b16 %v326
    %v817 = vunpack.c.l.b16 %v327
    %v818 = vunpack.c.h.b16 %v327
    %v819 = vunpack.c.l.b16 %v328
    %v820 = vunpack.c.h.b16 %v328
    %v821 = vunpack.c.l.b16 %v329
    %v822 = vunpack.c.l.b16 %v330
    %v823 = vunpack.c.h.b16 %v330
    %v824 = vunpack.c.l.b16 %v331
    %v825 = vunpack.c.h.b16 %v331
    %v826 = vunpack.c.l.b16 %v332
    %v827 = vunpack.c.l.b16 %v333
    %v828 = vunpack.c.h.b16 %v333
    %v829 = vunpack.c.l.b16 %v334
    %v830 = vunpack.c.h.b16 %v334
    %v831 = vunpack.c.l.b16 %v335
    %v832 = vunpack.c.l.b16 %v336
    %v833 = vunpack.c.h.b16 %v336
    %v834 = vunpack.c.l.b16 %v337
    %v835 = vunpack.c.h.b16 %v337
    %v836 = vunpack.c.l.b16 %v338
    %v837 = vunpack.c.l.b16 %v339
    %v838 = vunpack.c.h.b16 %v339
    %v839 = vunpack.c.l.b16 %v340
    %v840 = vunpack.c.h.b16 %v340
    %v841 = vunpack.c.l.b16 %v341
    %v842 = vunpack.c.l.b16 %v342
    %v843 = vunpack.c.h.b16 %v342
    %v844 = vunpack.c.l.b16 %v343
    %v845 = vunpack.c.h.b16 %v343
    %v846 = vunpack.c.l.b16 %v344
    %v847 = vunpack.c.l.b16 %v345
    %v848 = vunpack.c.h.b16 %v345
    %v849 = vunpack.c.l.b16 %v346
    %v850 = vunpack.c.h.b16 %v346
    %v851 = vunpack.c.l.b16 %v347
    %v852 = vunpack.c.l.b16 %v348
    %v853 = vunpack.c.h.b16 %v348
    %v854 = vunpack.c.l.b16 %v349
    %v855 = vunpack.c.h.b16 %v349
    %v856 = vunpack.c.l.b16 %v350
    %v857 = vunpack.c.l.b16 %v351
    %v858 = vunpack.c.h.b16 %v351
    %v859 = vunpack.c.l.b16 %v352
    %v860 = vunpack.c.h.b16 %v352
    %v861 = vunpack.c.l.b16 %v353
    %v862 = vunpack.c.l.b16 %v354
    %v863 = vunpack.c.h.b16 %v354
    %v864 = vunpack.c.l.b16 %v355
    %v865 = vunpack.c.h.b16 %v355
    %v866 = vunpack.c.l.b16 %v356
    %v867 = vunpack.c.l.b16 %v357
    %v868 = vunpack.c.h.b16 %v357
    %v869 = vunpack.c.l.b16 %v358
    %v870 = vunpack.c.h.b16 %v358
    %v871 = vunpack.c.l.b16 %v359
    %v872 = vunpack.c.l.b16 %v360
    %v873 = vunpack.c.h.b16 %v360
    %v874 = vunpack.c.l.b16 %v361
    %v875 = vunpack.c.h.b16 %v361
    %v876 = vunpack.c.l.b16 %v362
    %v877 = vunpack.c.l.b16 %v363
    %v878 = vunpack.c.h.b16 %v363
    %v879 = vunpack.c.l.b16 %v364
    %v880 = vunpack.c.h.b16 %v364
    %v881 = vunpack.c.l.b16 %v365
    %v882 = vunpack.c.l.b16 %v366
    %v883 = vunpack.c.h.b16 %v366
    %v884 = vunpack.c.l.b16 %v367
    %v885 = vunpack.c.h.b16 %v367
    %v886 = vunpack.c.l.b16 %v368
    %v887 = vunpack.c.l.b16 %v369
    %v888 = vunpack.c.h.b16 %v369
    %v889 = vunpack.c.l.b16 %v370
    %v890 = vunpack.c.h.b16 %v370
    %v891 = vunpack.c.l.b16 %v371
    %v892 = vunpack.c.l.b16 %v372
    %v893 = vunpack.c.h.b16 %v372
    %v894 = vunpack.c.l.b16 %v373
    %v895 = vunpack.c.h.b16 %v373
    %v896 = vunpack.c.l.b16 %v374
    %v897 = vunpack.c.l.b16 %v375
    %v898 = vunpack.c.h.b16 %v375
    %v899 = vunpack.c.l.b16 %v376
    %v900 = vunpack.c.h.b16 %v376
    %v901 = vunpack.c.l.b16 %v377
    %v902 = vunpack.c.l.b16 %v378
    %v903 = vunpack.c.h.b16 %v378
    %v904 = vunpack.c.l.b16 %v379
    %v905 = vunpack.c.h.b16 %v379
    %v906 = vunpack.c.l.b16 %v380
    %v907 = vunpack.c.l.b16 %v381
    %v908 = vunpack.c.h.b16 %v381
    %v909 = vunpack.c.l.b16 %v382
    %v910 = vunpack.c.h.b16 %v382
    %v911 = vunpack.c.l.b16 %v383
    %v912 = vunpack.c.l.b16 %v384
    %v913 = vunpack.c.h.b16 %v384
    %v914 = vunpack.c.l.b16 %v385
    %v915 = vunpack.c.h.b16 %v385
    %v916 = vunpack.c.l.b16 %v386
    %v917 = vunpack.c.l.b16 %v387
    %v918 = vunpack.c.h.b16 %v387
    %v919 = vunpack.c.l.b16 %v388
    %v920 = vunpack.c.h.b16 %v388
    %v921 = vunpack.c.l.b16 %v389
    %v922 = vunpack.c.l.b16 %v390
    %v923 = vunpack.c.h.b16 %v390
    %v924 = vunpack.c.l.b16 %v391
    %v925 = vunpack.c.h.b16 %v391
    %v926 = vunpack.c.l.b16 %v392
    %v927 = vunpack.c.l.b16 %v393
    %v928 = vunpack.c.h.b16 %v393
    %v929 = vunpack.c.l.b16 %v394
    %v930 = vunpack.c.h.b16 %v394
    %v931 = vunpack.c.l.b16 %v395
    %v932 = vunpack.c.l.b16 %v396
    %v933 = vunpack.c.h.b16 %v396
    %v934 = vunpack.c.l.b16 %v397
    %v935 = vunpack.c.h.b16 %v397
    %v936 = vunpack.c.l.b16 %v398
    %v937 = vunpack.c.l.b16 %v399
    %v938 = vunpack.c.h.b16 %v399
    %v939 = vunpack.c.l.b16 %v400
    %v940 = vunpack.c.h.b16 %v400
    %v941 = vunpack.c.l.b16 %v401
    %v942 = vunpack.c.l.b16 %v402
    %v943 = vunpack.c.h.b16 %v402
    %v944 = vunpack.c.l.b16 %v403
    %v945 = vunpack.c.h.b16 %v403
    %v946 = vunpack.c.l.b16 %v404
    %v947 = vunpack.c.l.b16 %v405
    %v948 = vunpack.c.h.b16 %v405
    %v949 = vunpack.c.l.b16 %v406
    %v950 = vunpack.c.h.b16 %v406
    %v951 = vunpack.c.l.b16 %v407
    %v952 = vunpack.c.l.b16 %v408
    %v953 = vunpack.c.h.b16 %v408
    %v954 = vunpack.c.l.b16 %v409
    %v955 = vunpack.c.h.b16 %v409
    %v956 = vunpack.c.l.b16 %v410
    %v957 = vunpack.c.l.b16 %v411
    %v958 = vunpack.c.h.b16 %v411
    %v959 = vunpack.c.l.b16 %v412
    %v960 = vunpack.c.h.b16 %v412
    %v961 = vunpack.c.l.b16 %v413
    %v962 = vunpack.c.l.b16 %v414
    %v963 = vunpack.c.h.b16 %v414
    %v964 = vunpack.c.l.b16 %v415
    %v965 = vunpack.c.h.b16 %v415
    %v966 = vunpack.c.l.b16 %v416
    %v967 = vunpack.c.l.b16 %v417
    %v968 = vunpack.c.h.b16 %v417
    %v969 = vunpack.c.l.b16 %v418
    %v970 = vunpack.c.h.b16 %v418
    %v971 = vunpack.c.l.b16 %v419
    %v972 = vunpack.c.l.b16 %v420
    %v973 = vunpack.c.h.b16 %v420
    %v974 = vunpack.c.l.b16 %v421
    %v975 = vunpack.c.h.b16 %v421
    %v976 = vunpack.c.l.b16 %v422
    %v977 = vunpack.c.l.b16 %v423
    %v978 = vunpack.c.h.b16 %v423
    %v979 = vunpack.c.l.b16 %v424
    %v980 = vunpack.c.h.b16 %v424
    %v981 = vunpack.c.l.b16 %v425
    %v982 = vunpack.c.l.b16 %v426
    %v983 = vunpack.c.h.b16 %v426
    %v984 = vunpack.c.l.b16 %v427
    %v985 = vunpack.c.h.b16 %v427
    %v986 = vunpack.c.l.b16 %v428
    %v987 = vunpack.c.l.b16 %v429
    %v988 = vunpack.c.h.b16 %v429
    %v989 = vunpack.c.l.b16 %v430
    %v990 = vunpack.c.h.b16 %v430
    %v991 = vunpack.c.l.b16 %v431
    %v992 = vunpack.c.l.b16 %v432
    %v993 = vunpack.c.h.b16 %v432
    %v994 = vunpack.c.l.b16 %v433
    %v995 = vunpack.c.h.b16 %v433
    %v996 = vunpack.c.l.b16 %v434
    %v997 = vunpack.c.l.b16 %v435
    %v998 = vunpack.c.h.b16 %v435
    %v999 = vunpack.c.l.b16 %v436
    %v1000 = vunpack.c.h.b16 %v436
    %v1001 = vunpack.c.l.b16 %v437
    %v1002 = vunpack.c.l.b16 %v438
    %v1003 = vunpack.c.h.b16 %v438
    %v1004 = vunpack.c.l.b16 %v439
    %v1005 = vunpack.c.h.b16 %v439
    %v1006 = vunpack.c.l.b16 %v440
    %v1007 = vunpack.c.l.b16 %v441
    %v1008 = vunpack.c.h.b16 %v441
    %v1009 = vunpack.c.l.b16 %v442
    %v1010 = vunpack.c.h.b16 %v442
    %v1011 = vunpack.c.l.b16 %v443
    %v1012 = vunpack.c.l.b16 %v444
    %v1013 = vunpack.c.h.b16 %v444
    %v1014 = vunpack.c.l.b16 %v445
    %v1015 = vunpack.c.h.b16 %v445
    %v1016 = vunpack.c.l.b16 %v446
    %v1017 = vunpack.c.l.b16 %v447
    %v1018 = vunpack.c.h.b16 %v447
    %v1019 = vunpack.c.l.b16 %v448
    %v1020 = vunpack.c.h.b16 %v448
    %v1021 = vunpack.c.l.b16 %v449
    %v1022 = vunpack.c.l.b16 %v450
    %v1023 = vunpack.c.h.b16 %v450
    %v1024 = vunpack.c.l.b16 %v451
    %v1025 = vunpack.c.h.b16 %v451
    %v1026 = vunpack.c.l.b16 %v452
    %v1027 = vunpack.c.l.b16 %v453
    %v1028 = vunpack.c.h.b16 %v453
    %v1029 = vunpack.c.l.b16 %v454
    %v1030 = vunpack.c.h.b16 %v454
    %v1031 = vunpack.c.l.b16 %v455
    %v1032 = vunpack.c.l.b16 %v456
    %v1033 = vunpack.c.h.b16 %v456
    %v1034 = vunpack.c.l.b16 %v457
    %v1035 = vunpack.c.h.b16 %v457
    %v1036 = vunpack.c.l.b16 %v458
    %v1037 = vunpack.c.l.b16 %v459
    %v1038 = vunpack.c.h.b16 %v459
    %v1039 = vunpack.c.l.b16 %v460
    %v1040 = vunpack.c.h.b16 %v460
    %v1041 = vunpack.c.l.b16 %v461
    %v1042 = vunpack.c.l.b16 %v462
    %v1043 = vunpack.c.h.b16 %v462
    %v1044 = vunpack.c.l.b16 %v463
    %v1045 = vunpack.c.h.b16 %v463
    %v1046 = vunpack.c.l.b16 %v464
    %v1047 = vunpack.c.l.b16 %v465
    %v1048 = vunpack.c.h.b16 %v465
    %v1049 = vunpack.c.l.b16 %v466
    %v1050 = vunpack.c.h.b16 %v466
    %v1051 = vunpack.c.l.b16 %v467
    %v1052 = vpack.c.b16 %v737, %v732
    %v1053 = vpack.c.b16 %v738, %v733
    %v1054 = vpack.c.b16 %v739, %v734
    %v1055 = vpack.c.b16 %v740, %v735
    %v1056 = vpack.c.b16 %v741, %v736
    %v1057 = vpack.c.b16 %v747, %v742
    %v1058 = vpack.c.b16 %v748, %v743
    %v1059 = vpack.c.b16 %v749, %v744
    %v1060 = vpack.c.b16 %v750, %v745
    %v1061 = vpack.c.b16 %v751, %v746
    %v1062 = vpack.c.b16 %v757, %v752
    %v1063 = vpack.c.b16 %v758, %v753
    %v1064 = vpack.c.b16 %v759, %v754
    %v1065 = vpack.c.b16 %v760, %v755
    %v1066 = vpack.c.b16 %v761, %v756
    %v1067 = vpack.c.b16 %v767, %v762
    %v1068 = vpack.c.b16 %v768, %v763
    %v1069 = vpack.c.b16 %v769, %v764
    %v1070 = vpack.c.b16 %v770, %v765
    %v1071 = vpack.c.b16 %v771, %v766
    %v1072 = vpack.c.b16 %v777, %v772
    %v1073 = vpack.c.b16 %v778, %v773
    %v1074 = vpack.c.b16 %v779, %v774
    %v1075 = vpack.c.b16 %v780, %v775
    %v1076 = vpack.c.b16 %v781, %v776
    %v1077 = vpack.c.b16 %v787, %v782
    %v1078 = vpack.c.b16 %v788, %v783
    %v1079 = vpack.c.b16 %v789, %v784
    %v1080 = vpack.c.b16 %v790, %v785
    %v1081 = vpack.c.b16 %v791, %v786
    %v1082 = vpack.c.b16 %v797, %v792
    %v1083 = vpack.c.b16 %v798, %v793
    %v1084 = vpack.c.b16 %v799, %v794
    %v1085 = vpack.c.b16 %v800, %v795
    %v1086 = vpack.c.b16 %v801, %v796
    %v1087 = vpack.c.b16 %v807, %v802
    %v1088 = vpack.c.b16 %v808, %v803
    %v1089 = vpack.c.b16 %v809, %v804
    %v1090 = vpack.c.b16 %v810, %v805
    %v1091 = vpack.c.b16 %v811, %v806
    %v1092 = vpack.c.b16 %v817, %v812
    %v1093 = vpack.c.b16 %v818, %v813
    %v1094 = vpack.c.b16 %v819, %v814
    %v1095 = vpack.c.b16 %v820, %v815
    %v1096 = vpack.c.b16 %v821, %v816
    %v1097 = vpack.c.b16 %v827, %v822
    %v1098 = vpack.c.b16 %v828, %v823
    %v1099 = vpack.c.b16 %v829, %v824
    %v1100 = vpack.c.b16 %v830, %v825
    %v1101 = vpack.c.b16 %v831, %v826
    %v1102 = vpack.c.b16 %v837, %v832
    %v1103 = vpack.c.b16 %v838, %v833
    %v1104 = vpack.c.b16 %v839, %v834
    %v1105 = vpack.c.b16 %v840, %v835
    %v1106 = vpack.c.b16 %v841, %v836
    %v1107 = vpack.c.b16 %v847, %v842
    %v1108 = vpack.c.b16 %v848, %v843
    %v1109 = vpack.c.b16 %v849, %v844
    %v1110 = vpack.c.b16 %v850, %v845
    %v1111 = vpack.c.b16 %v851, %v846
    %v1112 = vpack.c.b16 %v857, %v852
    %v1113 = vpack.c.b16 %v858, %v853
    %v1114 = vpack.c.b16 %v859, %v854
    %v1115 = vpack.c.b16 %v860, %v855
    %v1116 = vpack.c.b16 %v861, %v856
    %v1117 = vpack.c.b16 %v867, %v862
    %v1118 = vpack.c.b16 %v868, %v863
    %v1119 = vpack.c.b16 %v869, %v864
    %v1120 = vpack.c.b16 %v870, %v865
    %v1121 = vpack.c.b16 %v871, %v866
    %v1122 = vpack.c.b16 %v877, %v872
    %v1123 = vpack.c.b16 %v878, %v873
    %v1124 = vpack.c.b16 %v879, %v874
    %v1125 = vpack.c.b16 %v880, %v875
    %v1126 = vpack.c.b16 %v881, %v876
    %v1127 = vpack.c.b16 %v887, %v882
    %v1128 = vpack.c.b16 %v888, %v883
    %v1129 = vpack.c.b16 %v889, %v884
    %v1130 = vpack.c.b16 %v890, %v885
    %v1131 = vpack.c.b16 %v891, %v886
    %v1132 = vpack.c.b16 %v897, %v892
    %v1133 = vpack.c.b16 %v898, %v893
    %v1134 = vpack.c.b16 %v899, %v894
    %v1135 = vpack.c.b16 %v900, %v895
    %v1136 = vpack.c.b16 %v901, %v896
    %v1137 = vpack.c.b16 %v907, %v902
    %v1138 = vpack.c.b16 %v908, %v903
    %v1139 = vpack.c.b16 %v909, %v904
    %v1140 = vpack.c.b16 %v910, %v905
    %v1141 = vpack.c.b16 %v911, %v906
    %v1142 = vpack.c.b16 %v917, %v912
    %v1143 = vpack.c.b16 %v918, %v913
    %v1144 = vpack.c.b16 %v919, %v914
    %v1145 = vpack.c.b16 %v920, %v915
    %v1146 = vpack.c.b16 %v921, %v916
    %v1147 = vpack.c.b16 %v927, %v922
    %v1148 = vpack.c.b16 %v928, %v923
    %v1149 = vpack.c.b16 %v929, %v924
    %v1150 = vpack.c.b16 %v930, %v925
    %v1151 = vpack.c.b16 %v931, %v926
    %v1152 = vpack.c.b16 %v937, %v932
    %v1153 = vpack.c.b16 %v938, %v933
    %v1154 = vpack.c.b16 %v939, %v934
    %v1155 = vpack.c.b16 %v940, %v935
    %v1156 = vpack.c.b16 %v941, %v936
    %v1157 = vpack.c.b16 %v947, %v942
    %v1158 = vpack.c.b16 %v948, %v943
    %v1159 = vpack.c.b16 %v949, %v944
    %v1160 = vpack.c.b16 %v950, %v945
    %v1161 = vpack.c.b16 %v951, %v946
    %v1162 = vpack.c.b16 %v957, %v952
    %v1163 = vpack.c.b16 %v958, %v953
    %v1164 = vpack.c.b16 %v959, %v954
    %v1165 = vpack.c.b16 %v960, %v955
    %v1166 = vpack.c.b16 %v961, %v956
    %v1167 = vpack.c.b16 %v967, %v962
    %v1168 = vpack.c.b16 %v968, %v963
    %v1169 = vpack.c.b16 %v969, %v964
    %v1170 = vpack.c.b16 %v970, %v965
    %v1171 = vpack.c.b16 %v971, %v966
    %v1172 = vpack.c.b16 %v977, %v972
    %v1173 = vpack.c.b16 %v978, %v973
    %v1174 = vpack.c.b16 %v979, %v974
    %v1175 = vpack.c.b16 %v980, %v975
    %v1176 = vpack.c.b16 %v981, %v976
    %v1177 = vpack.c.b16 %v987, %v982
    %v1178 = vpack.c.b16 %v988, %v983
    %v1179 = vpack.c.b16 %v989, %v984
    %v1180 = vpack.c.b16 %v990, %v985
    %v1181 = vpack.c.b16 %v991, %v986
    %v1182 = vpack.c.b16 %v997, %v992
    %v1183 = vpack.c.b16 %v998, %v993
    %v1184 = vpack.c.b16 %v999, %v994
    %v1185 = vpack.c.b16 %v1000, %v995
    %v1186 = vpack.c.b16 %v1001, %v996
    %v1187 = vpack.c.b16 %v1007, %v1002
    %v1188 = vpack.c.b16 %v1008, %v1003
    %v1189 = vpack.c.b16 %v1009, %v1004
    %v1190 = vpack.c.b16 %v1010, %v1005
    %v1191 = vpack.c.b16 %v1011, %v1006
    %v1192 = vpack.c.b16 %v1017, %v1012
    %v1193 = vpack.c.b16 %v1018, %v1013
    %v1194 = vpack.c.b16 %v1019, %v1014
    %v1195 = vpack.c.b16 %v1020, %v1015
    %v1196 = vpack.c.b16 %v1021, %v1016
    %v1197 = vpack.c.b16 %v1027, %v1022
    %v1198 = vpack.c.b16 %v1028, %v1023
    %v1199 = vpack.c.b16 %v1029, %v1024
    %v1200 = vpack.c.b16 %v1030, %v1025
    %v1201 = vpack.c.b16 %v1031, %v1026
    %v1202 = vpack.c.b16 %v1037, %v1032
    %v1203 = vpack.c.b16 %v1038, %v1033
    %v1204 = vpack.c.b16 %v1039, %v1034
    %v1205 = vpack.c.b16 %v1040, %v1035
    %v1206 = vpack.c.b16 %v1041, %v1036
    %v1207 = vpack.c.b16 %v1047, %v1042
    %v1208 = vpack.c.b16 %v1048, %v1043
    %v1209 = vpack.c.b16 %v1049, %v1044
    %v1210 = vpack.c.b16 %v1050, %v1045
    %v1211 = vpack.c.b16 %v1051, %v1046
    %v1412 = vunpack.c.l.b16 %v468
    %v1413 = vunpack.c.h.b16 %v468
    %v1414 = vunpack.c.l.b16 %v469
    %v1415 = vunpack.c.h.b16 %v469
    %v1416 = vunpack.c.l.b16 %v470
    %v1417 = vunpack.c.h.b16 %v470
    %v1418 = vunpack.c.l.b16 %v471
    %v1419 = vunpack.c.h.b16 %v471
    %v1420 = vunpack.c.l.b16 %v472
    %v1421 = vunpack.c.h.b16 %v472
    %v1422 = vunpack.c.l.b16 %v473
    %v1423 = vunpack.c.h.b16 %v473
    %v1424 = vunpack.c.l.b16 %v474
    %v1425 = vunpack.c.h.b16 %v474
    %v1426 = vunpack.c.l.b16 %v475
    %v1427 = vunpack.c.h.b16 %v475
    %v1428 = vunpack.c.l.b16 %v476
    %v1429 = vunpack.c.h.b16 %v476
    %v1430 = vunpack.c.l.b16 %v477
    %v1431 = vunpack.c.h.b16 %v477
    %v1432 = vunpack.c.l.b16 %v478
    %v1433 = vunpack.c.h.b16 %v478
    %v1434 = vunpack.c.l.b16 %v479
    %v1435 = vunpack.c.h.b16 %v479
    %v1436 = vunpack.c.l.b16 %v480
    %v1437 = vunpack.c.h.b16 %v480
    %v1438 = vunpack.c.l.b16 %v481
    %v1439 = vunpack.c.h.b16 %v481
    %v1440 = vunpack.c.l.b16 %v482
    %v1441 = vunpack.c.h.b16 %v482
    %v1442 = vunpack.c.l.b16 %v483
    %v1443 = vunpack.c.h.b16 %v483
    %v1444 = vunpack.c.l.b16 %v484
    %v1445 = vunpack.c.h.b16 %v484
    %v1446 = vunpack.c.l.b16 %v485
    %v1447 = vunpack.c.h.b16 %v485
    %v1448 = vunpack.c.l.b16 %v486
    %v1449 = vunpack.c.h.b16 %v486
    %v1450 = vunpack.c.l.b16 %v487
    %v1451 = vunpack.c.h.b16 %v487
    %v1452 = vunpack.c.l.b16 %v488
    %v1453 = vunpack.c.h.b16 %v488
    %v1454 = vunpack.c.l.b16 %v489
    %v1455 = vunpack.c.h.b16 %v489
    %v1456 = vunpack.c.l.b16 %v490
    %v1457 = vunpack.c.h.b16 %v490
    %v1458 = vunpack.c.l.b16 %v491
    %v1459 = vunpack.c.h.b16 %v491
    %v1460 = vunpack.c.l.b16 %v492
    %v1461 = vunpack.c.h.b16 %v492
    %v1462 = vunpack.c.l.b16 %v493
    %v1463 = vunpack.c.h.b16 %v493
    %v1464 = vunpack.c.l.b16 %v494
    %v1465 = vunpack.c.h.b16 %v494
    %v1466 = vunpack.c.l.b16 %v495
    %v1467 = vunpack.c.h.b16 %v495
    %v1468 = vunpack.c.l.b16 %v496
    %v1469 = vunpack.c.h.b16 %v496
    %v1470 = vunpack.c.l.b16 %v497
    %v1471 = vunpack.c.h.b16 %v497
    %v1472 = vunpack.c.l.b16 %v498
    %v1473 = vunpack.c.h.b16 %v498
    %v1474 = vunpack.c.l.b16 %v499
    %v1475 = vunpack.c.h.b16 %v499
    %v1476 = vunpack.c.l.b16 %v500
    %v1477 = vunpack.c.h.b16 %v500
    %v1478 = vunpack.c.l.b16 %v501
    %v1479 = vunpack.c.h.b16 %v501
    %v1480 = vunpack.c.l.b16 %v502
    %v1481 = vunpack.c.h.b16 %v502
    %v1482 = vunpack.c.l.b16 %v503
    %v1483 = vunpack.c.h.b16 %v503
    %v1484 = vunpack.c.l.b16 %v504
    %v1485 = vunpack.c.h.b16 %v504
    %v1486 = vunpack.c.l.b16 %v505
    %v1487 = vunpack.c.h.b16 %v505
    %v1488 = vunpack.c.l.b16 %v506
    %v1489 = vunpack.c.h.b16 %v506
    %v1490 = vunpack.c.l.b16 %v507
    %v1491 = vunpack.c.h.b16 %v507
    %v1492 = vunpack.c.l.b16 %v508
    %v1493 = vunpack.c.h.b16 %v508
    %v1494 = vunpack.c.l.b16 %v509
    %v1495 = vunpack.c.h.b16 %v509
    %v1496 = vunpack.c.l.b16 %v510
    %v1497 = vunpack.c.h.b16 %v510
    %v1498 = vunpack.c.l.b16 %v511
    %v1499 = vunpack.c.h.b16 %v511
    %v1500 = vunpack.c.l.b16 %v512
    %v1501 = vunpack.c.h.b16 %v512
    %v1502 = vunpack.c.l.b16 %v513
    %v1503 = vunpack.c.h.b16 %v513
    %v1504 = vunpack.c.l.b16 %v514
    %v1505 = vunpack.c.h.b16 %v514
    %v1506 = vunpack.c.l.b16 %v515
    %v1507 = vunpack.c.h.b16 %v515
    %v1508 = vunpack.c.l.b16 %v516
    %v1509 = vunpack.c.h.b16 %v516
    %v1510 = vunpack.c.l.b16 %v517
    %v1511 = vunpack.c.h.b16 %v517
    %v1512 = vunpack.c.l.b16 %v518
    %v1513 = vunpack.c.h.b16 %v518
    %v1514 = vunpack.c.l.b16 %v519
    %v1515 = vunpack.c.h.b16 %v519
    %v1516 = vunpack.c.l.b16 %v520
    %v1517 = vunpack.c.h.b16 %v520
    %v1518 = vunpack.c.l.b16 %v521
    %v1519 = vunpack.c.h.b16 %v521
    %v1520 = vunpack.c.l.b16 %v522
    %v1521 = vunpack.c.h.b16 %v522
    %v1522 = vunpack.c.l.b16 %v523
    %v1523 = vunpack.c.h.b16 %v523
    %v1524 = vunpack.c.l.b16 %v524
    %v1525 = vunpack.c.h.b16 %v524
    %v1526 = vunpack.c.l.b16 %v525
    %v1527 = vunpack.c.h.b16 %v525
    %v1528 = vunpack.c.l.b16 %v526
    %v1529 = vunpack.c.h.b16 %v526
    %v1530 = vunpack.c.l.b16 %v527
    %v1531 = vunpack.c.h.b16 %v527
    %v1532 = vunpack.c.l.b16 %v528
    %v1533 = vunpack.c.h.b16 %v528
    %v1534 = vunpack.c.l.b16 %v529
    %v1535 = vunpack.c.h.b16 %v529
    %v1536 = vunpack.c.l.b16 %v530
    %v1537 = vunpack.c.h.b16 %v530
    %v1538 = vunpack.c.l.b16 %v531
    %v1539 = vunpack.c.h.b16 %v531
    %v1540 = vunpack.c.l.b16 %v532
    %v1541 = vunpack.c.h.b16 %v532
    %v1542 = vunpack.c.l.b16 %v533
    %v1543 = vunpack.c.h.b16 %v533
    %v1544 = vunpack.c.l.b16 %v534
    %v1545 = vunpack.c.h.b16 %v534
    %v1546 = vunpack.c.l.b16 %v535
    %v1547 = vunpack.c.h.b16 %v535
    %v1548 = vunpack.c.l.b16 %v536
    %v1549 = vunpack.c.h.b16 %v536
    %v1550 = vunpack.c.l.b16 %v537
    %v1551 = vunpack.c.h.b16 %v537
    %v1552 = vunpack.c.l.b16 %v538
    %v1553 = vunpack.c.h.b16 %v538
    %v1554 = vunpack.c.l.b16 %v539
    %v1555 = vunpack.c.h.b16 %v539
    %v1556 = vpack.c.b16 %v1414, %v1412
    %v1557 = vpack.c.b16 %v1415, %v1413
    %v1558 = vpack.c.b16 %v1418, %v1416
    %v1559 = vpack.c.b16 %v1419, %v1417
    %v1560 = vpack.c.b16 %v1422, %v1420
    %v1561 = vpack.c.b16 %v1423, %v1421
    %v1562 = vpack.c.b16 %v1426, %v1424
    %v1563 = vpack.c.b16 %v1427, %v1425
    %v1564 = vpack.c.b16 %v1430, %v1428
    %v1565 = vpack.c.b16 %v1431, %v1429
    %v1566 = vpack.c.b16 %v1434, %v1432
    %v1567 = vpack.c.b16 %v1435, %v1433
    %v1568 = vpack.c.b16 %v1438, %v1436
    %v1569 = vpack.c.b16 %v1439, %v1437
    %v1570 = vpack.c.b16 %v1442, %v1440
    %v1571 = vpack.c.b16 %v1443, %v1441
    %v1572 = vpack.c.b16 %v1446, %v1444
    %v1573 = vpack.c.b16 %v1447, %v1445
    %v1574 = vpack.c.b16 %v1450, %v1448
    %v1575 = vpack.c.b16 %v1451, %v1449
    %v1576 = vpack.c.b16 %v1454, %v1452
    %v1577 = vpack.c.b16 %v1455, %v1453
    %v1578 = vpack.c.b16 %v1458, %v1456
    %v1579 = vpack.c.b16 %v1459, %v1457
    %v1580 = vpack.c.b16 %v1462, %v1460
    %v1581 = vpack.c.b16 %v1463, %v1461
    %v1582 = vpack.c.b16 %v1466, %v1464
    %v1583 = vpack.c.b16 %v1467, %v1465
    %v1584 = vpack.c.b16 %v1470, %v1468
    %v1585 = vpack.c.b16 %v1471, %v1469
    %v1586 = vpack.c.b16 %v1474, %v1472
    %v1587 = vpack.c.b16 %v1475, %v1473
    %v1588 = vpack.c.b16 %v1478, %v1476
    %v1589 = vpack.c.b16 %v1479, %v1477
    %v1590 = vpack.c.b16 %v1482, %v1480
    %v1591 = vpack.c.b16 %v1483, %v1481
    %v1592 = vpack.c.b16 %v1486, %v1484
    %v1593 = vpack.c.b16 %v1487, %v1485
    %v1594 = vpack.c.b16 %v1490, %v1488
    %v1595 = vpack.c.b16 %v1491, %v1489
    %v1596 = vpack.c.b16 %v1494, %v1492
    %v1597 = vpack.c.b16 %v1495, %v1493
    %v1598 = vpack.c.b16 %v1498, %v1496
    %v1599 = vpack.c.b16 %v1499, %v1497
    %v1600 = vpack.c.b16 %v1502, %v1500
    %v1601 = vpack.c.b16 %v1503, %v1501
    %v1602 = vpack.c.b16 %v1506, %v1504
    %v1603 = vpack.c.b16 %v1507, %v1505
    %v1604 = vpack.c.b16 %v1510, %v1508
    %v1605 = vpack.c.b16 %v1511, %v1509
    %v1606 = vpack.c.b16 %v1514, %v1512
    %v1607 = vpack.c.b16 %v1515, %v1513
    %v1608 = vpack.c.b16 %v1518, %v1516
    %v1609 = vpack.c.b16 %v1519, %v1517
    %v1610 = vpack.c.b16 %v1522, %v1520
    %v1611 = vpack.c.b16 %v1523, %v1521
    %v1612 = vpack.c.b16 %v1526, %v1524
    %v1613 = vpack.c.b16 %v1527, %v1525
    %v1614 = vpack.c.b16 %v1530, %v1528
    %v1615 = vpack.c.b16 %v1531, %v1529
    %v1616 = vpack.c.b16 %v1534, %v1532
    %v1617 = vpack.c.b16 %v1535, %v1533
    %v1618 = vpack.c.b16 %v1538, %v1536
    %v1619 = vpack.c.b16 %v1539, %v1537
    %v1620 = vpack.c.b16 %v1542, %v1540
    %v1621 = vpack.c.b16 %v1543, %v1541
    %v1622 = vpack.c.b16 %v1546, %v1544
    %v1623 = vpack.c.b16 %v1547, %v1545
    %v1624 = vpack.c.b16 %v1550, %v1548
    %v1625 = vpack.c.b16 %v1551, %v1549
    %v1626 = vpack.c.b16 %v1554, %v1552
    %v1627 = vpack.c.b16 %v1555, %v1553
    %vm1700 = vcmask 523264
    %v1702 = vsel %vm1700, %v1056, 0
    %v1705 = vsel %vm1700, %v1061, 0
    %v1708 = vsel %vm1700, %v1066, 0
    %v1711 = vsel %vm1700, %v1071, 0
    %v1714 = vsel %vm1700, %v1076, 0
    %v1717 = vsel %vm1700, %v1081, 0
    %v1720 = vsel %vm1700, %v1086, 0
    %v1723 = vsel %vm1700, %v1091, 0
    %v1726 = vsel %vm1700, %v1096, 0
    %v1729 = vsel %vm1700, %v1101, 0
    %v1732 = vsel %vm1700, %v1106, 0
    %v1735 = vsel %vm1700, %v1111, 0
    %v1738 = vsel %vm1700, %v1116, 0
    %v1741 = vsel %vm1700, %v1121, 0
    %v1744 = vsel %vm1700, %v1126, 0
    %v1747 = vsel %vm1700, %v1131, 0
    %v1750 = vsel %vm1700, %v1136, 0
    %v1753 = vsel %vm1700, %v1141, 0
    %v1756 = vsel %vm1700, %v1146, 0
    %v1759 = vsel %vm1700, %v1151, 0
    %v1762 = vsel %vm1700, %v1156, 0
    %v1765 = vsel %vm1700, %v1161, 0
    %v1768 = vsel %vm1700, %v1166, 0
    %v1771 = vsel %vm1700, %v1171, 0
    %v1774 = vsel %vm1700, %v1176, 0
    %v1777 = vsel %vm1700, %v1181, 0
    %v1780 = vsel %vm1700, %v1186, 0
    %v1783 = vsel %vm1700, %v1191, 0
    %v1786 = vsel %vm1700, %v1196, 0
    %v1789 = vsel %vm1700, %v1201, 0
    %v1792 = vsel %vm1700, %v1206, 0
    %v1795 = vsel %vm1700, %v1211, 0
    %1797 = vmatprep.subr.bf16.mxu0 %v1557
    %1798 = vmatpush1.bf16.msra.mxu0 %v1556
    %1799 = vmatprep.subr.bf16.mxu0 %v1559
    %1800 = vmatpush1.bf16.msra.mxu0 %v1558
    %1801 = vmatprep.subr.bf16.mxu0 %v1561
    %1802 = vmatpush1.bf16.msra.mxu0 %v1560
    %1803 = vmatprep.subr.bf16.mxu0 %v1563
    %1804 = vmatpush1.bf16.msra.mxu0 %v1562
    %1805 = vmatprep.subr.bf16.mxu0 %v1565
    %1806 = vmatpush1.bf16.msra.mxu0 %v1564
    %1807 = vmatprep.subr.bf16.mxu0 %v1567
    %1808 = vmatpush1.bf16.msra.mxu0 %v1566
    %1809 = vmatprep.subr.bf16.mxu0 %v1569
    %1810 = vmatpush1.bf16.msra.mxu0 %v1568
    %1811 = vmatprep.subr.bf16.mxu0 %v1571
    %1812 = vmatpush1.bf16.msra.mxu0 %v1570
    %1813 = vmatprep.subr.bf16.mxu0 %v1573
    %1814 = vmatpush1.bf16.msra.mxu0 %v1572
    %1815 = vmatprep.subr.bf16.mxu0 %v1575
    %1816 = vmatpush1.bf16.msra.mxu0 %v1574
    %1817 = vmatprep.subr.bf16.mxu0 %v1577
    %1818 = vmatpush1.bf16.msra.mxu0 %v1576
    %1819 = vmatprep.subr.bf16.mxu0 %v1579
    %1820 = vmatpush1.bf16.msra.mxu0 %v1578
    %1821 = vmatprep.subr.bf16.mxu0 %v1581
    %1822 = vmatpush1.bf16.msra.mxu0 %v1580
    %1823 = vmatprep.subr.bf16.mxu0 %v1583
    %1824 = vmatpush1.bf16.msra.mxu0 %v1582
    %1825 = vmatprep.subr.bf16.mxu0 %v1585
    %1826 = vmatpush1.bf16.msra.mxu0 %v1584
    %1827 = vmatprep.subr.bf16.mxu0 %v1587
    %1828 = vmatpush1.bf16.msra.mxu0 %v1586
    %1829 = vmatprep.mubr.bf16.mxu0 %v1053
    %1830 = vmatmul.mubr.bf16.gmra.mrb[0].mxu0 %v1052
    %v1831 = vpop.f32.mrb[0].mxu0
    %v1832 = vadd.f32 0.0, %v1831
    %v1833 = vpop.f32.mrb[0].mxu0
    %v1834 = vadd.f32 0.0, %v1833
    %v1835 = vpop.f32.mrb[0].mxu0
    %v1836 = vadd.f32 0.0, %v1835
    %v1837 = vpop.f32.mrb[0].mxu0
    %v1838 = vadd.f32 0.0, %v1837
    %1839 = vmatprep.mubr.bf16.mxu0 %v1058
    %1840 = vmatmul.mubr.bf16.gmra.mrb[0].mxu0 %v1057
    %v1841 = vpop.f32.mrb[0].mxu0
    %v1842 = vadd.f32 0.0, %v1841
    %v1843 = vpop.f32.mrb[0].mxu0
    %v1844 = vadd.f32 0.0, %v1843
    %v1845 = vpop.f32.mrb[0].mxu0
    %v1846 = vadd.f32 0.0, %v1845
    %v1847 = vpop.f32.mrb[0].mxu0
    %v1848 = vadd.f32 0.0, %v1847
    %1849 = vmatprep.mubr.bf16.mxu0 %v1063
    %1850 = vmatmul.mubr.bf16.gmra.mrb[0].mxu0 %v1062
    %v1851 = vpop.f32.mrb[0].mxu0
    %v1852 = vadd.f32 0.0, %v1851
    %v1853 = vpop.f32.mrb[0].mxu0
    %v1854 = vadd.f32 0.0, %v1853
    %v1855 = vpop.f32.mrb[0].mxu0
    %v1856 = vadd.f32 0.0, %v1855
    %v1857 = vpop.f32.mrb[0].mxu0
    %v1858 = vadd.f32 0.0, %v1857
    %1859 = vmatprep.mubr.bf16.mxu0 %v1068
    %1860 = vmatmul.mubr.bf16.gmra.mrb[0].mxu0 %v1067
    %v1861 = vpop.f32.mrb[0].mxu0
    %v1862 = vadd.f32 0.0, %v1861
    %v1863 = vpop.f32.mrb[0].mxu0
    %v1864 = vadd.f32 0.0, %v1863
    %v1865 = vpop.f32.mrb[0].mxu0
    %v1866 = vadd.f32 0.0, %v1865
    %v1867 = vpop.f32.mrb[0].mxu0
    %v1868 = vadd.f32 0.0, %v1867
    %1869 = vmatprep.mubr.bf16.mxu0 %v1073
    %1870 = vmatmul.mubr.bf16.gmra.mrb[0].mxu0 %v1072
    %v1871 = vpop.f32.mrb[0].mxu0
    %v1872 = vadd.f32 0.0, %v1871
    %v1873 = vpop.f32.mrb[0].mxu0
    %v1874 = vadd.f32 0.0, %v1873
    %v1875 = vpop.f32.mrb[0].mxu0
    %v1876 = vadd.f32 0.0, %v1875
    %v1877 = vpop.f32.mrb[0].mxu0
    %v1878 = vadd.f32 0.0, %v1877
    %1879 = vmatprep.mubr.bf16.mxu0 %v1078
    %1880 = vmatmul.mubr.bf16.gmra.mrb[0].mxu0 %v1077
    %v1881 = vpop.f32.mrb[0].mxu0
    %v1882 = vadd.f32 0.0, %v1881
    %v1883 = vpop.f32.mrb[0].mxu0
    %v1884 = vadd.f32 0.0, %v1883
    %v1885 = vpop.f32.mrb[0].mxu0
    %v1886 = vadd.f32 0.0, %v1885
    %v1887 = vpop.f32.mrb[0].mxu0
    %v1888 = vadd.f32 0.0, %v1887
    %1889 = vmatprep.mubr.bf16.mxu0 %v1083
    %1890 = vmatmul.mubr.bf16.gmra.mrb[0].mxu0 %v1082
    %v1891 = vpop.f32.mrb[0].mxu0
    %v1892 = vadd.f32 0.0, %v1891
    %v1893 = vpop.f32.mrb[0].mxu0
    %v1894 = vadd.f32 0.0, %v1893
    %v1895 = vpop.f32.mrb[0].mxu0
    %v1896 = vadd.f32 0.0, %v1895
    %v1897 = vpop.f32.mrb[0].mxu0
    %v1898 = vadd.f32 0.0, %v1897
    %1899 = vmatprep.mubr.bf16.mxu0 %v1088
    %1900 = vmatmul.mubr.bf16.gmra.mrb[0].mxu0 %v1087
    %v1901 = vpop.f32.mrb[0].mxu0
    %v1902 = vadd.f32 0.0, %v1901
    %v1903 = vpop.f32.mrb[0].mxu0
    %v1904 = vadd.f32 0.0, %v1903
    %v1905 = vpop.f32.mrb[0].mxu0
    %v1906 = vadd.f32 0.0, %v1905
    %v1907 = vpop.f32.mrb[0].mxu0
    %v1908 = vadd.f32 0.0, %v1907
    %1909 = vmatprep.mubr.bf16.mxu0 %v1093
    %1910 = vmatmul.mubr.bf16.gmra.mrb[0].mxu0 %v1092
    %v1911 = vpop.f32.mrb[0].mxu0
    %v1912 = vadd.f32 0.0, %v1911
    %v1913 = vpop.f32.mrb[0].mxu0
    %v1914 = vadd.f32 0.0, %v1913
    %v1915 = vpop.f32.mrb[0].mxu0
    %v1916 = vadd.f32 0.0, %v1915
    %v1917 = vpop.f32.mrb[0].mxu0
    %v1918 = vadd.f32 0.0, %v1917
    %1919 = vmatprep.mubr.bf16.mxu0 %v1098
    %1920 = vmatmul.mubr.bf16.gmra.mrb[0].mxu0 %v1097
    %v1921 = vpop.f32.mrb[0].mxu0
    %v1922 = vadd.f32 0.0, %v1921
    %v1923 = vpop.f32.mrb[0].mxu0
    %v1924 = vadd.f32 0.0, %v1923
    %v1925 = vpop.f32.mrb[0].mxu0
    %v1926 = vadd.f32 0.0, %v1925
    %v1927 = vpop.f32.mrb[0].mxu0
    %v1928 = vadd.f32 0.0, %v1927
    %1929 = vmatprep.mubr.bf16.mxu0 %v1103
    %1930 = vmatmul.mubr.bf16.gmra.mrb[0].mxu0 %v1102
    %v1931 = vpop.f32.mrb[0].mxu0
    %v1932 = vadd.f32 0.0, %v1931
    %v1933 = vpop.f32.mrb[0].mxu0
    %v1934 = vadd.f32 0.0, %v1933
    %v1935 = vpop.f32.mrb[0].mxu0
    %v1936 = vadd.f32 0.0, %v1935
    %v1937 = vpop.f32.mrb[0].mxu0
    %v1938 = vadd.f32 0.0, %v1937
    %1939 = vmatprep.mubr.bf16.mxu0 %v1108
    %1940 = vmatmul.mubr.bf16.gmra.mrb[0].mxu0 %v1107
    %v1941 = vpop.f32.mrb[0].mxu0
    %v1942 = vadd.f32 0.0, %v1941
    %v1943 = vpop.f32.mrb[0].mxu0
    %v1944 = vadd.f32 0.0, %v1943
    %v1945 = vpop.f32.mrb[0].mxu0
    %v1946 = vadd.f32 0.0, %v1945
    %v1947 = vpop.f32.mrb[0].mxu0
    %v1948 = vadd.f32 0.0, %v1947
    %1949 = vmatprep.mubr.bf16.mxu0 %v1113
    %1950 = vmatmul.mubr.bf16.gmra.mrb[0].mxu0 %v1112
    %v1951 = vpop.f32.mrb[0].mxu0
    %v1952 = vadd.f32 0.0, %v1951
    %v1953 = vpop.f32.mrb[0].mxu0
    %v1954 = vadd.f32 0.0, %v1953
    %v1955 = vpop.f32.mrb[0].mxu0
    %v1956 = vadd.f32 0.0, %v1955
    %v1957 = vpop.f32.mrb[0].mxu0
    %v1958 = vadd.f32 0.0, %v1957
    %1959 = vmatprep.mubr.bf16.mxu0 %v1118
    %1960 = vmatmul.mubr.bf16.gmra.mrb[0].mxu0 %v1117
    %v1961 = vpop.f32.mrb[0].mxu0
    %v1962 = vadd.f32 0.0, %v1961
    %v1963 = vpop.f32.mrb[0].mxu0
    %v1964 = vadd.f32 0.0, %v1963
    %v1965 = vpop.f32.mrb[0].mxu0
    %v1966 = vadd.f32 0.0, %v1965
    %v1967 = vpop.f32.mrb[0].mxu0
    %v1968 = vadd.f32 0.0, %v1967
    %1969 = vmatprep.mubr.bf16.mxu0 %v1123
    %1970 = vmatmul.mubr.bf16.gmra.mrb[0].mxu0 %v1122
    %v1971 = vpop.f32.mrb[0].mxu0
    %v1972 = vadd.f32 0.0, %v1971
    %v1973 = vpop.f32.mrb[0].mxu0
    %v1974 = vadd.f32 0.0, %v1973
    %v1975 = vpop.f32.mrb[0].mxu0
    %v1976 = vadd.f32 0.0, %v1975
    %v1977 = vpop.f32.mrb[0].mxu0
    %v1978 = vadd.f32 0.0, %v1977
    %1979 = vmatprep.mubr.bf16.mxu0 %v1128
    %1980 = vmatmul.mubr.bf16.gmra.mrb[0].mxu0 %v1127
    %v1981 = vpop.f32.mrb[0].mxu0
    %v1982 = vadd.f32 0.0, %v1981
    %v1983 = vpop.f32.mrb[0].mxu0
    %v1984 = vadd.f32 0.0, %v1983
    %v1985 = vpop.f32.mrb[0].mxu0
    %v1986 = vadd.f32 0.0, %v1985
    %v1987 = vpop.f32.mrb[0].mxu0
    %v1988 = vadd.f32 0.0, %v1987
    %1989 = vmatprep.mubr.bf16.mxu0 %v1133
    %1990 = vmatmul.mubr.bf16.gmra.mrb[0].mxu0 %v1132
    %v1991 = vpop.f32.mrb[0].mxu0
    %v1992 = vadd.f32 0.0, %v1991
    %v1993 = vpop.f32.mrb[0].mxu0
    %v1994 = vadd.f32 0.0, %v1993
    %v1995 = vpop.f32.mrb[0].mxu0
    %v1996 = vadd.f32 0.0, %v1995
    %v1997 = vpop.f32.mrb[0].mxu0
    %v1998 = vadd.f32 0.0, %v1997
    %1999 = vmatprep.mubr.bf16.mxu0 %v1138
    %2000 = vmatmul.mubr.bf16.gmra.mrb[0].mxu0 %v1137
    %v2001 = vpop.f32.mrb[0].mxu0
    %v2002 = vadd.f32 0.0, %v2001
    %v2003 = vpop.f32.mrb[0].mxu0
    %v2004 = vadd.f32 0.0, %v2003
    %v2005 = vpop.f32.mrb[0].mxu0
    %v2006 = vadd.f32 0.0, %v2005
    %v2007 = vpop.f32.mrb[0].mxu0
    %v2008 = vadd.f32 0.0, %v2007
    %2009 = vmatprep.mubr.bf16.mxu0 %v1143
    %2010 = vmatmul.mubr.bf16.gmra.mrb[0].mxu0 %v1142
    %v2011 = vpop.f32.mrb[0].mxu0
    %v2012 = vadd.f32 0.0, %v2011
    %v2013 = vpop.f32.mrb[0].mxu0
    %v2014 = vadd.f32 0.0, %v2013
    %v2015 = vpop.f32.mrb[0].mxu0
    %v2016 = vadd.f32 0.0, %v2015
    %v2017 = vpop.f32.mrb[0].mxu0
    %v2018 = vadd.f32 0.0, %v2017
    %2019 = vmatprep.mubr.bf16.mxu0 %v1148
    %2020 = vmatmul.mubr.bf16.gmra.mrb[0].mxu0 %v1147
    %v2021 = vpop.f32.mrb[0].mxu0
    %v2022 = vadd.f32 0.0, %v2021
    %v2023 = vpop.f32.mrb[0].mxu0
    %v2024 = vadd.f32 0.0, %v2023
    %v2025 = vpop.f32.mrb[0].mxu0
    %v2026 = vadd.f32 0.0, %v2025
    %v2027 = vpop.f32.mrb[0].mxu0
    %v2028 = vadd.f32 0.0, %v2027
    %2029 = vmatprep.mubr.bf16.mxu0 %v1153
    %2030 = vmatmul.mubr.bf16.gmra.mrb[0].mxu0 %v1152
    %v2031 = vpop.f32.mrb[0].mxu0
    %v2032 = vadd.f32 0.0, %v2031
    %v2033 = vpop.f32.mrb[0].mxu0
    %v2034 = vadd.f32 0.0, %v2033
    %v2035 = vpop.f32.mrb[0].mxu0
    %v2036 = vadd.f32 0.0, %v2035
    %v2037 = vpop.f32.mrb[0].mxu0
    %v2038 = vadd.f32 0.0, %v2037
    %2039 = vmatprep.mubr.bf16.mxu0 %v1158
    %2040 = vmatmul.mubr.bf16.gmra.mrb[0].mxu0 %v1157
    %v2041 = vpop.f32.mrb[0].mxu0
    %v2042 = vadd.f32 0.0, %v2041
    %v2043 = vpop.f32.mrb[0].mxu0
    %v2044 = vadd.f32 0.0, %v2043
    %v2045 = vpop.f32.mrb[0].mxu0
    %v2046 = vadd.f32 0.0, %v2045
    %v2047 = vpop.f32.mrb[0].mxu0
    %v2048 = vadd.f32 0.0, %v2047
    %2049 = vmatprep.mubr.bf16.mxu0 %v1163
    %2050 = vmatmul.mubr.bf16.gmra.mrb[0].mxu0 %v1162
    %v2051 = vpop.f32.mrb[0].mxu0
    %v2052 = vadd.f32 0.0, %v2051
    %v2053 = vpop.f32.mrb[0].mxu0
    %v2054 = vadd.f32 0.0, %v2053
    %v2055 = vpop.f32.mrb[0].mxu0
    %v2056 = vadd.f32 0.0, %v2055
    %v2057 = vpop.f32.mrb[0].mxu0
    %v2058 = vadd.f32 0.0, %v2057
    %2059 = vmatprep.mubr.bf16.mxu0 %v1168
    %2060 = vmatmul.mubr.bf16.gmra.mrb[0].mxu0 %v1167
    %v2061 = vpop.f32.mrb[0].mxu0
    %v2062 = vadd.f32 0.0, %v2061
    %v2063 = vpop.f32.mrb[0].mxu0
    %v2064 = vadd.f32 0.0, %v2063
    %v2065 = vpop.f32.mrb[0].mxu0
    %v2066 = vadd.f32 0.0, %v2065
    %v2067 = vpop.f32.mrb[0].mxu0
    %v2068 = vadd.f32 0.0, %v2067
    %2069 = vmatprep.mubr.bf16.mxu0 %v1173
    %2070 = vmatmul.mubr.bf16.gmra.mrb[0].mxu0 %v1172
    %v2071 = vpop.f32.mrb[0].mxu0
    %v2072 = vadd.f32 0.0, %v2071
    %v2073 = vpop.f32.mrb[0].mxu0
    %v2074 = vadd.f32 0.0, %v2073
    %v2075 = vpop.f32.mrb[0].mxu0
    %v2076 = vadd.f32 0.0, %v2075
    %v2077 = vpop.f32.mrb[0].mxu0
    %v2078 = vadd.f32 0.0, %v2077
    %2079 = vmatprep.mubr.bf16.mxu0 %v1178
    %2080 = vmatmul.mubr.bf16.gmra.mrb[0].mxu0 %v1177
    %v2081 = vpop.f32.mrb[0].mxu0
    %v2082 = vadd.f32 0.0, %v2081
    %v2083 = vpop.f32.mrb[0].mxu0
    %v2084 = vadd.f32 0.0, %v2083
    %v2085 = vpop.f32.mrb[0].mxu0
    %v2086 = vadd.f32 0.0, %v2085
    %v2087 = vpop.f32.mrb[0].mxu0
    %v2088 = vadd.f32 0.0, %v2087
    %2089 = vmatprep.mubr.bf16.mxu0 %v1183
    %2090 = vmatmul.mubr.bf16.gmra.mrb[0].mxu0 %v1182
    %v2091 = vpop.f32.mrb[0].mxu0
    %v2092 = vadd.f32 0.0, %v2091
    %v2093 = vpop.f32.mrb[0].mxu0
    %v2094 = vadd.f32 0.0, %v2093
    %v2095 = vpop.f32.mrb[0].mxu0
    %v2096 = vadd.f32 0.0, %v2095
    %v2097 = vpop.f32.mrb[0].mxu0
    %v2098 = vadd.f32 0.0, %v2097
    %2099 = vmatprep.mubr.bf16.mxu0 %v1188
    %2100 = vmatmul.mubr.bf16.gmra.mrb[0].mxu0 %v1187
    %v2101 = vpop.f32.mrb[0].mxu0
    %v2102 = vadd.f32 0.0, %v2101
    %v2103 = vpop.f32.mrb[0].mxu0
    %v2104 = vadd.f32 0.0, %v2103
    %v2105 = vpop.f32.mrb[0].mxu0
    %v2106 = vadd.f32 0.0, %v2105
    %v2107 = vpop.f32.mrb[0].mxu0
    %v2108 = vadd.f32 0.0, %v2107
    %2109 = vmatprep.mubr.bf16.mxu0 %v1193
    %2110 = vmatmul.mubr.bf16.gmra.mrb[0].mxu0 %v1192
    %v2111 = vpop.f32.mrb[0].mxu0
    %v2112 = vadd.f32 0.0, %v2111
    %v2113 = vpop.f32.mrb[0].mxu0
    %v2114 = vadd.f32 0.0, %v2113
    %v2115 = vpop.f32.mrb[0].mxu0
    %v2116 = vadd.f32 0.0, %v2115
    %v2117 = vpop.f32.mrb[0].mxu0
    %v2118 = vadd.f32 0.0, %v2117
    %2119 = vmatprep.mubr.bf16.mxu0 %v1198
    %2120 = vmatmul.mubr.bf16.gmra.mrb[0].mxu0 %v1197
    %v2121 = vpop.f32.mrb[0].mxu0
    %v2122 = vadd.f32 0.0, %v2121
    %v2123 = vpop.f32.mrb[0].mxu0
    %v2124 = vadd.f32 0.0, %v2123
    %v2125 = vpop.f32.mrb[0].mxu0
    %v2126 = vadd.f32 0.0, %v2125
    %v2127 = vpop.f32.mrb[0].mxu0
    %v2128 = vadd.f32 0.0, %v2127
    %2129 = vmatprep.mubr.bf16.mxu0 %v1203
    %2130 = vmatmul.mubr.bf16.gmra.mrb[0].mxu0 %v1202
    %v2131 = vpop.f32.mrb[0].mxu0
    %v2132 = vadd.f32 0.0, %v2131
    %v2133 = vpop.f32.mrb[0].mxu0
    %v2134 = vadd.f32 0.0, %v2133
    %v2135 = vpop.f32.mrb[0].mxu0
    %v2136 = vadd.f32 0.0, %v2135
    %v2137 = vpop.f32.mrb[0].mxu0
    %v2138 = vadd.f32 0.0, %v2137
    %2139 = vmatprep.mubr.bf16.mxu0 %v1208
    %2140 = vmatmul.mubr.bf16.gmra.mrb[0].mxu0 %v1207
    %v2141 = vpop.f32.mrb[0].mxu0
    %v2142 = vadd.f32 0.0, %v2141
    %v2143 = vpop.f32.mrb[0].mxu0
    %v2144 = vadd.f32 0.0, %v2143
    %v2145 = vpop.f32.mrb[0].mxu0
    %v2146 = vadd.f32 0.0, %v2145
    %v2147 = vpop.f32.mrb[0].mxu0
    %v2148 = vadd.f32 0.0, %v2147
    %2149 = vdwg.mxu0
    %2150 = vmatprep.subr.bf16.mxu0 %v1589
    %2151 = vmatpush1.bf16.msra.mxu0 %v1588
    %2152 = vmatprep.subr.bf16.mxu0 %v1591
    %2153 = vmatpush1.bf16.msra.mxu0 %v1590
    %2154 = vmatprep.subr.bf16.mxu0 %v1593
    %2155 = vmatpush1.bf16.msra.mxu0 %v1592
    %2156 = vmatprep.subr.bf16.mxu0 %v1595
    %2157 = vmatpush1.bf16.msra.mxu0 %v1594
    %2158 = vmatprep.subr.bf16.mxu0 %v1597
    %2159 = vmatpush1.bf16.msra.mxu0 %v1596
    %2160 = vmatprep.subr.bf16.mxu0 %v1599
    %2161 = vmatpush1.bf16.msra.mxu0 %v1598
    %2162 = vmatprep.subr.bf16.mxu0 %v1601
    %2163 = vmatpush1.bf16.msra.mxu0 %v1600
    %2164 = vmatprep.subr.bf16.mxu0 %v1603
    %2165 = vmatpush1.bf16.msra.mxu0 %v1602
    %2166 = vmatprep.subr.bf16.mxu0 %v1605
    %2167 = vmatpush1.bf16.msra.mxu0 %v1604
    %2168 = vmatprep.subr.bf16.mxu0 %v1607
    %2169 = vmatpush1.bf16.msra.mxu0 %v1606
    %2170 = vmatprep.subr.bf16.mxu0 %v1609
    %2171 = vmatpush1.bf16.msra.mxu0 %v1608
    %2172 = vmatprep.subr.bf16.mxu0 %v1611
    %2173 = vmatpush1.bf16.msra.mxu0 %v1610
    %2174 = vmatprep.subr.bf16.mxu0 %v1613
    %2175 = vmatpush1.bf16.msra.mxu0 %v1612
    %2176 = vmatprep.subr.bf16.mxu0 %v1615
    %2177 = vmatpush1.bf16.msra.mxu0 %v1614
    %2178 = vmatprep.subr.bf16.mxu0 %v1617
    %2179 = vmatpush1.bf16.msra.mxu0 %v1616
    %2180 = vmatprep.subr.bf16.mxu0 %v1619
    %2181 = vmatpush1.bf16.msra.mxu0 %v1618
    %2182 = vmatprep.mubr.bf16.mxu0 %v1055
    %2183 = vmatmul.mubr.bf16.gmra.mrb[0].mxu0 %v1054
    %v2184 = vpop.f32.mrb[0].mxu0
    %v2185 = vadd.f32 %v1832, %v2184
    %v2186 = vpop.f32.mrb[0].mxu0
    %v2187 = vadd.f32 %v1834, %v2186
    %v2188 = vpop.f32.mrb[0].mxu0
    %v2189 = vadd.f32 %v1836, %v2188
    %v2190 = vpop.f32.mrb[0].mxu0
    %v2191 = vadd.f32 %v1838, %v2190
    %2192 = vmatprep.mubr.bf16.mxu0 %v1060
    %2193 = vmatmul.mubr.bf16.gmra.mrb[0].mxu0 %v1059
    %v2194 = vpop.f32.mrb[0].mxu0
    %v2195 = vadd.f32 %v1842, %v2194
    %v2196 = vpop.f32.mrb[0].mxu0
    %v2197 = vadd.f32 %v1844, %v2196
    %v2198 = vpop.f32.mrb[0].mxu0
    %v2199 = vadd.f32 %v1846, %v2198
    %v2200 = vpop.f32.mrb[0].mxu0
    %v2201 = vadd.f32 %v1848, %v2200
    %2202 = vmatprep.mubr.bf16.mxu0 %v1065
    %2203 = vmatmul.mubr.bf16.gmra.mrb[0].mxu0 %v1064
    %v2204 = vpop.f32.mrb[0].mxu0
    %v2205 = vadd.f32 %v1852, %v2204
    %v2206 = vpop.f32.mrb[0].mxu0
    %v2207 = vadd.f32 %v1854, %v2206
    %v2208 = vpop.f32.mrb[0].mxu0
    %v2209 = vadd.f32 %v1856, %v2208
    %v2210 = vpop.f32.mrb[0].mxu0
    %v2211 = vadd.f32 %v1858, %v2210
    %2212 = vmatprep.mubr.bf16.mxu0 %v1070
    %2213 = vmatmul.mubr.bf16.gmra.mrb[0].mxu0 %v1069
    %v2214 = vpop.f32.mrb[0].mxu0
    %v2215 = vadd.f32 %v1862, %v2214
    %v2216 = vpop.f32.mrb[0].mxu0
    %v2217 = vadd.f32 %v1864, %v2216
    %v2218 = vpop.f32.mrb[0].mxu0
    %v2219 = vadd.f32 %v1866, %v2218
    %v2220 = vpop.f32.mrb[0].mxu0
    %v2221 = vadd.f32 %v1868, %v2220
    %2222 = vmatprep.mubr.bf16.mxu0 %v1075
    %2223 = vmatmul.mubr.bf16.gmra.mrb[0].mxu0 %v1074
    %v2224 = vpop.f32.mrb[0].mxu0
    %v2225 = vadd.f32 %v1872, %v2224
    %v2226 = vpop.f32.mrb[0].mxu0
    %v2227 = vadd.f32 %v1874, %v2226
    %v2228 = vpop.f32.mrb[0].mxu0
    %v2229 = vadd.f32 %v1876, %v2228
    %v2230 = vpop.f32.mrb[0].mxu0
    %v2231 = vadd.f32 %v1878, %v2230
    %2232 = vmatprep.mubr.bf16.mxu0 %v1080
    %2233 = vmatmul.mubr.bf16.gmra.mrb[0].mxu0 %v1079
    %v2234 = vpop.f32.mrb[0].mxu0
    %v2235 = vadd.f32 %v1882, %v2234
    %v2236 = vpop.f32.mrb[0].mxu0
    %v2237 = vadd.f32 %v1884, %v2236
    %v2238 = vpop.f32.mrb[0].mxu0
    %v2239 = vadd.f32 %v1886, %v2238
    %v2240 = vpop.f32.mrb[0].mxu0
    %v2241 = vadd.f32 %v1888, %v2240
    %2242 = vmatprep.mubr.bf16.mxu0 %v1085
    %2243 = vmatmul.mubr.bf16.gmra.mrb[0].mxu0 %v1084
    %v2244 = vpop.f32.mrb[0].mxu0
    %v2245 = vadd.f32 %v1892, %v2244
    %v2246 = vpop.f32.mrb[0].mxu0
    %v2247 = vadd.f32 %v1894, %v2246
    %v2248 = vpop.f32.mrb[0].mxu0
    %v2249 = vadd.f32 %v1896, %v2248
    %v2250 = vpop.f32.mrb[0].mxu0
    %v2251 = vadd.f32 %v1898, %v2250
    %2252 = vmatprep.mubr.bf16.mxu0 %v1090
    %2253 = vmatmul.mubr.bf16.gmra.mrb[0].mxu0 %v1089
    %v2254 = vpop.f32.mrb[0].mxu0
    %v2255 = vadd.f32 %v1902, %v2254
    %v2256 = vpop.f32.mrb[0].mxu0
    %v2257 = vadd.f32 %v1904, %v2256
    %v2258 = vpop.f32.mrb[0].mxu0
    %v2259 = vadd.f32 %v1906, %v2258
    %v2260 = vpop.f32.mrb[0].mxu0
    %v2261 = vadd.f32 %v1908, %v2260
    %2262 = vmatprep.mubr.bf16.mxu0 %v1095
    %2263 = vmatmul.mubr.bf16.gmra.mrb[0].mxu0 %v1094
    %v2264 = vpop.f32.mrb[0].mxu0
    %v2265 = vadd.f32 %v1912, %v2264
    %v2266 = vpop.f32.mrb[0].mxu0
    %v2267 = vadd.f32 %v1914, %v2266
    %v2268 = vpop.f32.mrb[0].mxu0
    %v2269 = vadd.f32 %v1916, %v2268
    %v2270 = vpop.f32.mrb[0].mxu0
    %v2271 = vadd.f32 %v1918, %v2270
    %2272 = vmatprep.mubr.bf16.mxu0 %v1100
    %2273 = vmatmul.mubr.bf16.gmra.mrb[0].mxu0 %v1099
    %v2274 = vpop.f32.mrb[0].mxu0
    %v2275 = vadd.f32 %v1922, %v2274
    %v2276 = vpop.f32.mrb[0].mxu0
    %v2277 = vadd.f32 %v1924, %v2276
    %v2278 = vpop.f32.mrb[0].mxu0
    %v2279 = vadd.f32 %v1926, %v2278
    %v2280 = vpop.f32.mrb[0].mxu0
    %v2281 = vadd.f32 %v1928, %v2280
    %2282 = vmatprep.mubr.bf16.mxu0 %v1105
    %2283 = vmatmul.mubr.bf16.gmra.mrb[0].mxu0 %v1104
    %v2284 = vpop.f32.mrb[0].mxu0
    %v2285 = vadd.f32 %v1932, %v2284
    %v2286 = vpop.f32.mrb[0].mxu0
    %v2287 = vadd.f32 %v1934, %v2286
    %v2288 = vpop.f32.mrb[0].mxu0
    %v2289 = vadd.f32 %v1936, %v2288
    %v2290 = vpop.f32.mrb[0].mxu0
    %v2291 = vadd.f32 %v1938, %v2290
    %2292 = vmatprep.mubr.bf16.mxu0 %v1110
    %2293 = vmatmul.mubr.bf16.gmra.mrb[0].mxu0 %v1109
    %v2294 = vpop.f32.mrb[0].mxu0
    %v2295 = vadd.f32 %v1942, %v2294
    %v2296 = vpop.f32.mrb[0].mxu0
    %v2297 = vadd.f32 %v1944, %v2296
    %v2298 = vpop.f32.mrb[0].mxu0
    %v2299 = vadd.f32 %v1946, %v2298
    %v2300 = vpop.f32.mrb[0].mxu0
    %v2301 = vadd.f32 %v1948, %v2300
    %2302 = vmatprep.mubr.bf16.mxu0 %v1115
    %2303 = vmatmul.mubr.bf16.gmra.mrb[0].mxu0 %v1114
    %v2304 = vpop.f32.mrb[0].mxu0
    %v2305 = vadd.f32 %v1952, %v2304
    %v2306 = vpop.f32.mrb[0].mxu0
    %v2307 = vadd.f32 %v1954, %v2306
    %v2308 = vpop.f32.mrb[0].mxu0
    %v2309 = vadd.f32 %v1956, %v2308
    %v2310 = vpop.f32.mrb[0].mxu0
    %v2311 = vadd.f32 %v1958, %v2310
    %2312 = vmatprep.mubr.bf16.mxu0 %v1120
    %2313 = vmatmul.mubr.bf16.gmra.mrb[0].mxu0 %v1119
    %v2314 = vpop.f32.mrb[0].mxu0
    %v2315 = vadd.f32 %v1962, %v2314
    %v2316 = vpop.f32.mrb[0].mxu0
    %v2317 = vadd.f32 %v1964, %v2316
    %v2318 = vpop.f32.mrb[0].mxu0
    %v2319 = vadd.f32 %v1966, %v2318
    %v2320 = vpop.f32.mrb[0].mxu0
    %v2321 = vadd.f32 %v1968, %v2320
    %2322 = vmatprep.mubr.bf16.mxu0 %v1125
    %2323 = vmatmul.mubr.bf16.gmra.mrb[0].mxu0 %v1124
    %v2324 = vpop.f32.mrb[0].mxu0
    %v2325 = vadd.f32 %v1972, %v2324
    %v2326 = vpop.f32.mrb[0].mxu0
    %v2327 = vadd.f32 %v1974, %v2326
    %v2328 = vpop.f32.mrb[0].mxu0
    %v2329 = vadd.f32 %v1976, %v2328
    %v2330 = vpop.f32.mrb[0].mxu0
    %v2331 = vadd.f32 %v1978, %v2330
    %2332 = vmatprep.mubr.bf16.mxu0 %v1130
    %2333 = vmatmul.mubr.bf16.gmra.mrb[0].mxu0 %v1129
    %v2334 = vpop.f32.mrb[0].mxu0
    %v2335 = vadd.f32 %v1982, %v2334
    %v2336 = vpop.f32.mrb[0].mxu0
    %v2337 = vadd.f32 %v1984, %v2336
    %v2338 = vpop.f32.mrb[0].mxu0
    %v2339 = vadd.f32 %v1986, %v2338
    %v2340 = vpop.f32.mrb[0].mxu0
    %v2341 = vadd.f32 %v1988, %v2340
    %2342 = vmatprep.mubr.bf16.mxu0 %v1135
    %2343 = vmatmul.mubr.bf16.gmra.mrb[0].mxu0 %v1134
    %v2344 = vpop.f32.mrb[0].mxu0
    %v2345 = vadd.f32 %v1992, %v2344
    %v2346 = vpop.f32.mrb[0].mxu0
    %v2347 = vadd.f32 %v1994, %v2346
    %v2348 = vpop.f32.mrb[0].mxu0
    %v2349 = vadd.f32 %v1996, %v2348
    %v2350 = vpop.f32.mrb[0].mxu0
    %v2351 = vadd.f32 %v1998, %v2350
    %2352 = vmatprep.mubr.bf16.mxu0 %v1140
    %2353 = vmatmul.mubr.bf16.gmra.mrb[0].mxu0 %v1139
    %v2354 = vpop.f32.mrb[0].mxu0
    %v2355 = vadd.f32 %v2002, %v2354
    %v2356 = vpop.f32.mrb[0].mxu0
    %v2357 = vadd.f32 %v2004, %v2356
    %v2358 = vpop.f32.mrb[0].mxu0
    %v2359 = vadd.f32 %v2006, %v2358
    %v2360 = vpop.f32.mrb[0].mxu0
    %v2361 = vadd.f32 %v2008, %v2360
    %2362 = vmatprep.mubr.bf16.mxu0 %v1145
    %2363 = vmatmul.mubr.bf16.gmra.mrb[0].mxu0 %v1144
    %v2364 = vpop.f32.mrb[0].mxu0
    %v2365 = vadd.f32 %v2012, %v2364
    %v2366 = vpop.f32.mrb[0].mxu0
    %v2367 = vadd.f32 %v2014, %v2366
    %v2368 = vpop.f32.mrb[0].mxu0
    %v2369 = vadd.f32 %v2016, %v2368
    %v2370 = vpop.f32.mrb[0].mxu0
    %v2371 = vadd.f32 %v2018, %v2370
    %2372 = vmatprep.mubr.bf16.mxu0 %v1150
    %2373 = vmatmul.mubr.bf16.gmra.mrb[0].mxu0 %v1149
    %v2374 = vpop.f32.mrb[0].mxu0
    %v2375 = vadd.f32 %v2022, %v2374
    %v2376 = vpop.f32.mrb[0].mxu0
    %v2377 = vadd.f32 %v2024, %v2376
    %v2378 = vpop.f32.mrb[0].mxu0
    %v2379 = vadd.f32 %v2026, %v2378
    %v2380 = vpop.f32.mrb[0].mxu0
    %v2381 = vadd.f32 %v2028, %v2380
    %2382 = vmatprep.mubr.bf16.mxu0 %v1155
    %2383 = vmatmul.mubr.bf16.gmra.mrb[0].mxu0 %v1154
    %v2384 = vpop.f32.mrb[0].mxu0
    %v2385 = vadd.f32 %v2032, %v2384
    %v2386 = vpop.f32.mrb[0].mxu0
    %v2387 = vadd.f32 %v2034, %v2386
    %v2388 = vpop.f32.mrb[0].mxu0
    %v2389 = vadd.f32 %v2036, %v2388
    %v2390 = vpop.f32.mrb[0].mxu0
    %v2391 = vadd.f32 %v2038, %v2390
    %2392 = vmatprep.mubr.bf16.mxu0 %v1160
    %2393 = vmatmul.mubr.bf16.gmra.mrb[0].mxu0 %v1159
    %v2394 = vpop.f32.mrb[0].mxu0
    %v2395 = vadd.f32 %v2042, %v2394
    %v2396 = vpop.f32.mrb[0].mxu0
    %v2397 = vadd.f32 %v2044, %v2396
    %v2398 = vpop.f32.mrb[0].mxu0
    %v2399 = vadd.f32 %v2046, %v2398
    %v2400 = vpop.f32.mrb[0].mxu0
    %v2401 = vadd.f32 %v2048, %v2400
    %2402 = vmatprep.mubr.bf16.mxu0 %v1165
    %2403 = vmatmul.mubr.bf16.gmra.mrb[0].mxu0 %v1164
    %v2404 = vpop.f32.mrb[0].mxu0
    %v2405 = vadd.f32 %v2052, %v2404
    %v2406 = vpop.f32.mrb[0].mxu0
    %v2407 = vadd.f32 %v2054, %v2406
    %v2408 = vpop.f32.mrb[0].mxu0
    %v2409 = vadd.f32 %v2056, %v2408
    %v2410 = vpop.f32.mrb[0].mxu0
    %v2411 = vadd.f32 %v2058, %v2410
    %2412 = vmatprep.mubr.bf16.mxu0 %v1170
    %2413 = vmatmul.mubr.bf16.gmra.mrb[0].mxu0 %v1169
    %v2414 = vpop.f32.mrb[0].mxu0
    %v2415 = vadd.f32 %v2062, %v2414
    %v2416 = vpop.f32.mrb[0].mxu0
    %v2417 = vadd.f32 %v2064, %v2416
    %v2418 = vpop.f32.mrb[0].mxu0
    %v2419 = vadd.f32 %v2066, %v2418
    %v2420 = vpop.f32.mrb[0].mxu0
    %v2421 = vadd.f32 %v2068, %v2420
    %2422 = vmatprep.mubr.bf16.mxu0 %v1175
    %2423 = vmatmul.mubr.bf16.gmra.mrb[0].mxu0 %v1174
    %v2424 = vpop.f32.mrb[0].mxu0
    %v2425 = vadd.f32 %v2072, %v2424
    %v2426 = vpop.f32.mrb[0].mxu0
    %v2427 = vadd.f32 %v2074, %v2426
    %v2428 = vpop.f32.mrb[0].mxu0
    %v2429 = vadd.f32 %v2076, %v2428
    %v2430 = vpop.f32.mrb[0].mxu0
    %v2431 = vadd.f32 %v2078, %v2430
    %2432 = vmatprep.mubr.bf16.mxu0 %v1180
    %2433 = vmatmul.mubr.bf16.gmra.mrb[0].mxu0 %v1179
    %v2434 = vpop.f32.mrb[0].mxu0
    %v2435 = vadd.f32 %v2082, %v2434
    %v2436 = vpop.f32.mrb[0].mxu0
    %v2437 = vadd.f32 %v2084, %v2436
    %v2438 = vpop.f32.mrb[0].mxu0
    %v2439 = vadd.f32 %v2086, %v2438
    %v2440 = vpop.f32.mrb[0].mxu0
    %v2441 = vadd.f32 %v2088, %v2440
    %2442 = vmatprep.mubr.bf16.mxu0 %v1185
    %2443 = vmatmul.mubr.bf16.gmra.mrb[0].mxu0 %v1184
    %v2444 = vpop.f32.mrb[0].mxu0
    %v2445 = vadd.f32 %v2092, %v2444
    %v2446 = vpop.f32.mrb[0].mxu0
    %v2447 = vadd.f32 %v2094, %v2446
    %v2448 = vpop.f32.mrb[0].mxu0
    %v2449 = vadd.f32 %v2096, %v2448
    %v2450 = vpop.f32.mrb[0].mxu0
    %v2451 = vadd.f32 %v2098, %v2450
    %2452 = vmatprep.mubr.bf16.mxu0 %v1190
    %2453 = vmatmul.mubr.bf16.gmra.mrb[0].mxu0 %v1189
    %v2454 = vpop.f32.mrb[0].mxu0
    %v2455 = vadd.f32 %v2102, %v2454
    %v2456 = vpop.f32.mrb[0].mxu0
    %v2457 = vadd.f32 %v2104, %v2456
    %v2458 = vpop.f32.mrb[0].mxu0
    %v2459 = vadd.f32 %v2106, %v2458
    %v2460 = vpop.f32.mrb[0].mxu0
    %v2461 = vadd.f32 %v2108, %v2460
    %2462 = vmatprep.mubr.bf16.mxu0 %v1195
    %2463 = vmatmul.mubr.bf16.gmra.mrb[0].mxu0 %v1194
    %v2464 = vpop.f32.mrb[0].mxu0
    %v2465 = vadd.f32 %v2112, %v2464
    %v2466 = vpop.f32.mrb[0].mxu0
    %v2467 = vadd.f32 %v2114, %v2466
    %v2468 = vpop.f32.mrb[0].mxu0
    %v2469 = vadd.f32 %v2116, %v2468
    %v2470 = vpop.f32.mrb[0].mxu0
    %v2471 = vadd.f32 %v2118, %v2470
    %2472 = vmatprep.mubr.bf16.mxu0 %v1200
    %2473 = vmatmul.mubr.bf16.gmra.mrb[0].mxu0 %v1199
    %v2474 = vpop.f32.mrb[0].mxu0
    %v2475 = vadd.f32 %v2122, %v2474
    %v2476 = vpop.f32.mrb[0].mxu0
    %v2477 = vadd.f32 %v2124, %v2476
    %v2478 = vpop.f32.mrb[0].mxu0
    %v2479 = vadd.f32 %v2126, %v2478
    %v2480 = vpop.f32.mrb[0].mxu0
    %v2481 = vadd.f32 %v2128, %v2480
    %2482 = vmatprep.mubr.bf16.mxu0 %v1205
    %2483 = vmatmul.mubr.bf16.gmra.mrb[0].mxu0 %v1204
    %v2484 = vpop.f32.mrb[0].mxu0
    %v2485 = vadd.f32 %v2132, %v2484
    %v2486 = vpop.f32.mrb[0].mxu0
    %v2487 = vadd.f32 %v2134, %v2486
    %v2488 = vpop.f32.mrb[0].mxu0
    %v2489 = vadd.f32 %v2136, %v2488
    %v2490 = vpop.f32.mrb[0].mxu0
    %v2491 = vadd.f32 %v2138, %v2490
    %2492 = vmatprep.mubr.bf16.mxu0 %v1210
    %2493 = vmatmul.mubr.bf16.gmra.mrb[0].mxu0 %v1209
    %v2494 = vpop.f32.mrb[0].mxu0
    %v2495 = vadd.f32 %v2142, %v2494
    %v2496 = vpop.f32.mrb[0].mxu0
    %v2497 = vadd.f32 %v2144, %v2496
    %v2498 = vpop.f32.mrb[0].mxu0
    %v2499 = vadd.f32 %v2146, %v2498
    %v2500 = vpop.f32.mrb[0].mxu0
    %v2501 = vadd.f32 %v2148, %v2500
    %2502 = vdwg.mxu0
    %2503 = vmatprep.subr.bf16.mxu0 %v1621
    %2504 = vmatpush1.bf16.msra.mxu0 %v1620
    %2505 = vmatprep.subr.bf16.mxu0 %v1623
    %2506 = vmatpush1.bf16.msra.mxu0 %v1622
    %2507 = vmatprep.subr.bf16.mxu0 %v1625
    %2508 = vmatpush1.bf16.msra.mxu0 %v1624
    %2509 = vmatprep.subr.bf16.mxu0 %v1627
    %2510 = vmatpush1.bf16.msra.mxu0 %v1626
    %2511 = vmatprep.subr.bf16.mxu0 0
    %2512 = vmatpush1.bf16.msra.mxu0 0
    %2513 = vmatprep.subr.bf16.mxu0 0
    %2514 = vmatpush1.bf16.msra.mxu0 0
    %2515 = vmatprep.subr.bf16.mxu0 0
    %2516 = vmatpush1.bf16.msra.mxu0 0
    %2517 = vmatprep.subr.bf16.mxu0 0
    %2518 = vmatpush1.bf16.msra.mxu0 0
    %2519 = vmatprep.subr.bf16.mxu0 0
    %2520 = vmatpush1.bf16.msra.mxu0 0
    %2521 = vmatprep.subr.bf16.mxu0 0
    %2522 = vmatpush1.bf16.msra.mxu0 0
    %2523 = vmatprep.subr.bf16.mxu0 0
    %2524 = vmatpush1.bf16.msra.mxu0 0
    %2525 = vmatprep.subr.bf16.mxu0 0
    %2526 = vmatpush1.bf16.msra.mxu0 0
    %2527 = vmatprep.subr.bf16.mxu0 0
    %2528 = vmatpush1.bf16.msra.mxu0 0
    %2529 = vmatprep.subr.bf16.mxu0 0
    %2530 = vmatpush1.bf16.msra.mxu0 0
    %2531 = vmatprep.subr.bf16.mxu0 0
    %2532 = vmatpush1.bf16.msra.mxu0 0
    %2533 = vmatprep.subr.bf16.mxu0 0
    %2534 = vmatpush1.bf16.msra.mxu0 0
    %2535 = vmatprep.mubr.bf16.mxu0 0
    %2536 = vmatmul.mubr.bf16.gmra.mrb[0].mxu0 %v1702
    %v2537 = vpop.f32.mrb[0].mxu0
    %v2538 = vadd.f32 %v2185, %v2537
    %v2539 = vpop.f32.mrb[0].mxu0
    %v2540 = vadd.f32 %v2187, %v2539
    %v2541 = vpop.f32.mrb[0].mxu0
    %v2542 = vadd.f32 %v2189, %v2541
    %v2543 = vpop.f32.mrb[0].mxu0
    %v2544 = vadd.f32 %v2191, %v2543
    %2545 = vmatprep.mubr.bf16.mxu0 0
    %2546 = vmatmul.mubr.bf16.gmra.mrb[0].mxu0 %v1705
    %v2547 = vpop.f32.mrb[0].mxu0
    %v2548 = vadd.f32 %v2195, %v2547
    %v2549 = vpop.f32.mrb[0].mxu0
    %v2550 = vadd.f32 %v2197, %v2549
    %v2551 = vpop.f32.mrb[0].mxu0
    %v2552 = vadd.f32 %v2199, %v2551
    %v2553 = vpop.f32.mrb[0].mxu0
    %v2554 = vadd.f32 %v2201, %v2553
    %2555 = vmatprep.mubr.bf16.mxu0 0
    %2556 = vmatmul.mubr.bf16.gmra.mrb[0].mxu0 %v1708
    %v2557 = vpop.f32.mrb[0].mxu0
    %v2558 = vadd.f32 %v2205, %v2557
    %v2559 = vpop.f32.mrb[0].mxu0
    %v2560 = vadd.f32 %v2207, %v2559
    %v2561 = vpop.f32.mrb[0].mxu0
    %v2562 = vadd.f32 %v2209, %v2561
    %v2563 = vpop.f32.mrb[0].mxu0
    %v2564 = vadd.f32 %v2211, %v2563
    %2565 = vmatprep.mubr.bf16.mxu0 0
    %2566 = vmatmul.mubr.bf16.gmra.mrb[0].mxu0 %v1711
    %v2567 = vpop.f32.mrb[0].mxu0
    %v2568 = vadd.f32 %v2215, %v2567
    %v2569 = vpop.f32.mrb[0].mxu0
    %v2570 = vadd.f32 %v2217, %v2569
    %v2571 = vpop.f32.mrb[0].mxu0
    %v2572 = vadd.f32 %v2219, %v2571
    %v2573 = vpop.f32.mrb[0].mxu0
    %v2574 = vadd.f32 %v2221, %v2573
    %2575 = vmatprep.mubr.bf16.mxu0 0
    %2576 = vmatmul.mubr.bf16.gmra.mrb[0].mxu0 %v1714
    %v2577 = vpop.f32.mrb[0].mxu0
    %v2578 = vadd.f32 %v2225, %v2577
    %v2579 = vpop.f32.mrb[0].mxu0
    %v2580 = vadd.f32 %v2227, %v2579
    %v2581 = vpop.f32.mrb[0].mxu0
    %v2582 = vadd.f32 %v2229, %v2581
    %v2583 = vpop.f32.mrb[0].mxu0
    %v2584 = vadd.f32 %v2231, %v2583
    %2585 = vmatprep.mubr.bf16.mxu0 0
    %2586 = vmatmul.mubr.bf16.gmra.mrb[0].mxu0 %v1717
    %v2587 = vpop.f32.mrb[0].mxu0
    %v2588 = vadd.f32 %v2235, %v2587
    %v2589 = vpop.f32.mrb[0].mxu0
    %v2590 = vadd.f32 %v2237, %v2589
    %v2591 = vpop.f32.mrb[0].mxu0
    %v2592 = vadd.f32 %v2239, %v2591
    %v2593 = vpop.f32.mrb[0].mxu0
    %v2594 = vadd.f32 %v2241, %v2593
    %2595 = vmatprep.mubr.bf16.mxu0 0
    %2596 = vmatmul.mubr.bf16.gmra.mrb[0].mxu0 %v1720
    %v2597 = vpop.f32.mrb[0].mxu0
    %v2598 = vadd.f32 %v2245, %v2597
    %v2599 = vpop.f32.mrb[0].mxu0
    %v2600 = vadd.f32 %v2247, %v2599
    %v2601 = vpop.f32.mrb[0].mxu0
    %v2602 = vadd.f32 %v2249, %v2601
    %v2603 = vpop.f32.mrb[0].mxu0
    %v2604 = vadd.f32 %v2251, %v2603
    %2605 = vmatprep.mubr.bf16.mxu0 0
    %2606 = vmatmul.mubr.bf16.gmra.mrb[0].mxu0 %v1723
    %v2607 = vpop.f32.mrb[0].mxu0
    %v2608 = vadd.f32 %v2255, %v2607
    %v2609 = vpop.f32.mrb[0].mxu0
    %v2610 = vadd.f32 %v2257, %v2609
    %v2611 = vpop.f32.mrb[0].mxu0
    %v2612 = vadd.f32 %v2259, %v2611
    %v2613 = vpop.f32.mrb[0].mxu0
    %v2614 = vadd.f32 %v2261, %v2613
    %2615 = vmatprep.mubr.bf16.mxu0 0
    %2616 = vmatmul.mubr.bf16.gmra.mrb[0].mxu0 %v1726
    %v2617 = vpop.f32.mrb[0].mxu0
    %v2618 = vadd.f32 %v2265, %v2617
    %v2619 = vpop.f32.mrb[0].mxu0
    %v2620 = vadd.f32 %v2267, %v2619
    %v2621 = vpop.f32.mrb[0].mxu0
    %v2622 = vadd.f32 %v2269, %v2621
    %v2623 = vpop.f32.mrb[0].mxu0
    %v2624 = vadd.f32 %v2271, %v2623
    %2625 = vmatprep.mubr.bf16.mxu0 0
    %2626 = vmatmul.mubr.bf16.gmra.mrb[0].mxu0 %v1729
    %v2627 = vpop.f32.mrb[0].mxu0
    %v2628 = vadd.f32 %v2275, %v2627
    %v2629 = vpop.f32.mrb[0].mxu0
    %v2630 = vadd.f32 %v2277, %v2629
    %v2631 = vpop.f32.mrb[0].mxu0
    %v2632 = vadd.f32 %v2279, %v2631
    %v2633 = vpop.f32.mrb[0].mxu0
    %v2634 = vadd.f32 %v2281, %v2633
    %2635 = vmatprep.mubr.bf16.mxu0 0
    %2636 = vmatmul.mubr.bf16.gmra.mrb[0].mxu0 %v1732
    %v2637 = vpop.f32.mrb[0].mxu0
    %v2638 = vadd.f32 %v2285, %v2637
    %v2639 = vpop.f32.mrb[0].mxu0
    %v2640 = vadd.f32 %v2287, %v2639
    %v2641 = vpop.f32.mrb[0].mxu0
    %v2642 = vadd.f32 %v2289, %v2641
    %v2643 = vpop.f32.mrb[0].mxu0
    %v2644 = vadd.f32 %v2291, %v2643
    %2645 = vmatprep.mubr.bf16.mxu0 0
    %2646 = vmatmul.mubr.bf16.gmra.mrb[0].mxu0 %v1735
    %v2647 = vpop.f32.mrb[0].mxu0
    %v2648 = vadd.f32 %v2295, %v2647
    %v2649 = vpop.f32.mrb[0].mxu0
    %v2650 = vadd.f32 %v2297, %v2649
    %v2651 = vpop.f32.mrb[0].mxu0
    %v2652 = vadd.f32 %v2299, %v2651
    %v2653 = vpop.f32.mrb[0].mxu0
    %v2654 = vadd.f32 %v2301, %v2653
    %2655 = vmatprep.mubr.bf16.mxu0 0
    %2656 = vmatmul.mubr.bf16.gmra.mrb[0].mxu0 %v1738
    %v2657 = vpop.f32.mrb[0].mxu0
    %v2658 = vadd.f32 %v2305, %v2657
    %v2659 = vpop.f32.mrb[0].mxu0
    %v2660 = vadd.f32 %v2307, %v2659
    %v2661 = vpop.f32.mrb[0].mxu0
    %v2662 = vadd.f32 %v2309, %v2661
    %v2663 = vpop.f32.mrb[0].mxu0
    %v2664 = vadd.f32 %v2311, %v2663
    %2665 = vmatprep.mubr.bf16.mxu0 0
    %2666 = vmatmul.mubr.bf16.gmra.mrb[0].mxu0 %v1741
    %v2667 = vpop.f32.mrb[0].mxu0
    %v2668 = vadd.f32 %v2315, %v2667
    %v2669 = vpop.f32.mrb[0].mxu0
    %v2670 = vadd.f32 %v2317, %v2669
    %v2671 = vpop.f32.mrb[0].mxu0
    %v2672 = vadd.f32 %v2319, %v2671
    %v2673 = vpop.f32.mrb[0].mxu0
    %v2674 = vadd.f32 %v2321, %v2673
    %2675 = vmatprep.mubr.bf16.mxu0 0
    %2676 = vmatmul.mubr.bf16.gmra.mrb[0].mxu0 %v1744
    %v2677 = vpop.f32.mrb[0].mxu0
    %v2678 = vadd.f32 %v2325, %v2677
    %v2679 = vpop.f32.mrb[0].mxu0
    %v2680 = vadd.f32 %v2327, %v2679
    %v2681 = vpop.f32.mrb[0].mxu0
    %v2682 = vadd.f32 %v2329, %v2681
    %v2683 = vpop.f32.mrb[0].mxu0
    %v2684 = vadd.f32 %v2331, %v2683
    %2685 = vmatprep.mubr.bf16.mxu0 0
    %2686 = vmatmul.mubr.bf16.gmra.mrb[0].mxu0 %v1747
    %v2687 = vpop.f32.mrb[0].mxu0
    %v2688 = vadd.f32 %v2335, %v2687
    %v2689 = vpop.f32.mrb[0].mxu0
    %v2690 = vadd.f32 %v2337, %v2689
    %v2691 = vpop.f32.mrb[0].mxu0
    %v2692 = vadd.f32 %v2339, %v2691
    %v2693 = vpop.f32.mrb[0].mxu0
    %v2694 = vadd.f32 %v2341, %v2693
    %2695 = vmatprep.mubr.bf16.mxu0 0
    %2696 = vmatmul.mubr.bf16.gmra.mrb[0].mxu0 %v1750
    %v2697 = vpop.f32.mrb[0].mxu0
    %v2698 = vadd.f32 %v2345, %v2697
    %v2699 = vpop.f32.mrb[0].mxu0
    %v2700 = vadd.f32 %v2347, %v2699
    %v2701 = vpop.f32.mrb[0].mxu0
    %v2702 = vadd.f32 %v2349, %v2701
    %v2703 = vpop.f32.mrb[0].mxu0
    %v2704 = vadd.f32 %v2351, %v2703
    %2705 = vmatprep.mubr.bf16.mxu0 0
    %2706 = vmatmul.mubr.bf16.gmra.mrb[0].mxu0 %v1753
    %v2707 = vpop.f32.mrb[0].mxu0
    %v2708 = vadd.f32 %v2355, %v2707
    %v2709 = vpop.f32.mrb[0].mxu0
    %v2710 = vadd.f32 %v2357, %v2709
    %v2711 = vpop.f32.mrb[0].mxu0
    %v2712 = vadd.f32 %v2359, %v2711
    %v2713 = vpop.f32.mrb[0].mxu0
    %v2714 = vadd.f32 %v2361, %v2713
    %2715 = vmatprep.mubr.bf16.mxu0 0
    %2716 = vmatmul.mubr.bf16.gmra.mrb[0].mxu0 %v1756
    %v2717 = vpop.f32.mrb[0].mxu0
    %v2718 = vadd.f32 %v2365, %v2717
    %v2719 = vpop.f32.mrb[0].mxu0
    %v2720 = vadd.f32 %v2367, %v2719
    %v2721 = vpop.f32.mrb[0].mxu0
    %v2722 = vadd.f32 %v2369, %v2721
    %v2723 = vpop.f32.mrb[0].mxu0
    %v2724 = vadd.f32 %v2371, %v2723
    %2725 = vmatprep.mubr.bf16.mxu0 0
    %2726 = vmatmul.mubr.bf16.gmra.mrb[0].mxu0 %v1759
    %v2727 = vpop.f32.mrb[0].mxu0
    %v2728 = vadd.f32 %v2375, %v2727
    %v2729 = vpop.f32.mrb[0].mxu0
    %v2730 = vadd.f32 %v2377, %v2729
    %v2731 = vpop.f32.mrb[0].mxu0
    %v2732 = vadd.f32 %v2379, %v2731
    %v2733 = vpop.f32.mrb[0].mxu0
    %v2734 = vadd.f32 %v2381, %v2733
    %2735 = vmatprep.mubr.bf16.mxu0 0
    %2736 = vmatmul.mubr.bf16.gmra.mrb[0].mxu0 %v1762
    %v2737 = vpop.f32.mrb[0].mxu0
    %v2738 = vadd.f32 %v2385, %v2737
    %v2739 = vpop.f32.mrb[0].mxu0
    %v2740 = vadd.f32 %v2387, %v2739
    %v2741 = vpop.f32.mrb[0].mxu0
    %v2742 = vadd.f32 %v2389, %v2741
    %v2743 = vpop.f32.mrb[0].mxu0
    %v2744 = vadd.f32 %v2391, %v2743
    %2745 = vmatprep.mubr.bf16.mxu0 0
    %2746 = vmatmul.mubr.bf16.gmra.mrb[0].mxu0 %v1765
    %v2747 = vpop.f32.mrb[0].mxu0
    %v2748 = vadd.f32 %v2395, %v2747
    %v2749 = vpop.f32.mrb[0].mxu0
    %v2750 = vadd.f32 %v2397, %v2749
    %v2751 = vpop.f32.mrb[0].mxu0
    %v2752 = vadd.f32 %v2399, %v2751
    %v2753 = vpop.f32.mrb[0].mxu0
    %v2754 = vadd.f32 %v2401, %v2753
    %2755 = vmatprep.mubr.bf16.mxu0 0
    %2756 = vmatmul.mubr.bf16.gmra.mrb[0].mxu0 %v1768
    %v2757 = vpop.f32.mrb[0].mxu0
    %v2758 = vadd.f32 %v2405, %v2757
    %v2759 = vpop.f32.mrb[0].mxu0
    %v2760 = vadd.f32 %v2407, %v2759
    %v2761 = vpop.f32.mrb[0].mxu0
    %v2762 = vadd.f32 %v2409, %v2761
    %v2763 = vpop.f32.mrb[0].mxu0
    %v2764 = vadd.f32 %v2411, %v2763
    %2765 = vmatprep.mubr.bf16.mxu0 0
    %2766 = vmatmul.mubr.bf16.gmra.mrb[0].mxu0 %v1771
    %v2767 = vpop.f32.mrb[0].mxu0
    %v2768 = vadd.f32 %v2415, %v2767
    %v2769 = vpop.f32.mrb[0].mxu0
    %v2770 = vadd.f32 %v2417, %v2769
    %v2771 = vpop.f32.mrb[0].mxu0
    %v2772 = vadd.f32 %v2419, %v2771
    %v2773 = vpop.f32.mrb[0].mxu0
    %v2774 = vadd.f32 %v2421, %v2773
    %2775 = vmatprep.mubr.bf16.mxu0 0
    %2776 = vmatmul.mubr.bf16.gmra.mrb[0].mxu0 %v1774
    %v2777 = vpop.f32.mrb[0].mxu0
    %v2778 = vadd.f32 %v2425, %v2777
    %v2779 = vpop.f32.mrb[0].mxu0
    %v2780 = vadd.f32 %v2427, %v2779
    %v2781 = vpop.f32.mrb[0].mxu0
    %v2782 = vadd.f32 %v2429, %v2781
    %v2783 = vpop.f32.mrb[0].mxu0
    %v2784 = vadd.f32 %v2431, %v2783
    %2785 = vmatprep.mubr.bf16.mxu0 0
    %2786 = vmatmul.mubr.bf16.gmra.mrb[0].mxu0 %v1777
    %v2787 = vpop.f32.mrb[0].mxu0
    %v2788 = vadd.f32 %v2435, %v2787
    %v2789 = vpop.f32.mrb[0].mxu0
    %v2790 = vadd.f32 %v2437, %v2789
    %v2791 = vpop.f32.mrb[0].mxu0
    %v2792 = vadd.f32 %v2439, %v2791
    %v2793 = vpop.f32.mrb[0].mxu0
    %v2794 = vadd.f32 %v2441, %v2793
    %2795 = vmatprep.mubr.bf16.mxu0 0
    %2796 = vmatmul.mubr.bf16.gmra.mrb[0].mxu0 %v1780
    %v2797 = vpop.f32.mrb[0].mxu0
    %v2798 = vadd.f32 %v2445, %v2797
    %v2799 = vpop.f32.mrb[0].mxu0
    %v2800 = vadd.f32 %v2447, %v2799
    %v2801 = vpop.f32.mrb[0].mxu0
    %v2802 = vadd.f32 %v2449, %v2801
    %v2803 = vpop.f32.mrb[0].mxu0
    %v2804 = vadd.f32 %v2451, %v2803
    %2805 = vmatprep.mubr.bf16.mxu0 0
    %2806 = vmatmul.mubr.bf16.gmra.mrb[0].mxu0 %v1783
    %v2807 = vpop.f32.mrb[0].mxu0
    %v2808 = vadd.f32 %v2455, %v2807
    %v2809 = vpop.f32.mrb[0].mxu0
    %v2810 = vadd.f32 %v2457, %v2809
    %v2811 = vpop.f32.mrb[0].mxu0
    %v2812 = vadd.f32 %v2459, %v2811
    %v2813 = vpop.f32.mrb[0].mxu0
    %v2814 = vadd.f32 %v2461, %v2813
    %2815 = vmatprep.mubr.bf16.mxu0 0
    %2816 = vmatmul.mubr.bf16.gmra.mrb[0].mxu0 %v1786
    %v2817 = vpop.f32.mrb[0].mxu0
    %v2818 = vadd.f32 %v2465, %v2817
    %v2819 = vpop.f32.mrb[0].mxu0
    %v2820 = vadd.f32 %v2467, %v2819
    %v2821 = vpop.f32.mrb[0].mxu0
    %v2822 = vadd.f32 %v2469, %v2821
    %v2823 = vpop.f32.mrb[0].mxu0
    %v2824 = vadd.f32 %v2471, %v2823
    %2825 = vmatprep.mubr.bf16.mxu0 0
    %2826 = vmatmul.mubr.bf16.gmra.mrb[0].mxu0 %v1789
    %v2827 = vpop.f32.mrb[0].mxu0
    %v2828 = vadd.f32 %v2475, %v2827
    %v2829 = vpop.f32.mrb[0].mxu0
    %v2830 = vadd.f32 %v2477, %v2829
    %v2831 = vpop.f32.mrb[0].mxu0
    %v2832 = vadd.f32 %v2479, %v2831
    %v2833 = vpop.f32.mrb[0].mxu0
    %v2834 = vadd.f32 %v2481, %v2833
    %2835 = vmatprep.mubr.bf16.mxu0 0
    %2836 = vmatmul.mubr.bf16.gmra.mrb[0].mxu0 %v1792
    %v2837 = vpop.f32.mrb[0].mxu0
    %v2838 = vadd.f32 %v2485, %v2837
    %v2839 = vpop.f32.mrb[0].mxu0
    %v2840 = vadd.f32 %v2487, %v2839
    %v2841 = vpop.f32.mrb[0].mxu0
    %v2842 = vadd.f32 %v2489, %v2841
    %v2843 = vpop.f32.mrb[0].mxu0
    %v2844 = vadd.f32 %v2491, %v2843
    %2845 = vmatprep.mubr.bf16.mxu0 0
    %2846 = vmatmul.mubr.bf16.gmra.mrb[0].mxu0 %v1795
    %v2847 = vpop.f32.mrb[0].mxu0
    %v2848 = vadd.f32 %v2495, %v2847
    %v2849 = vpop.f32.mrb[0].mxu0
    %v2850 = vadd.f32 %v2497, %v2849
    %v2851 = vpop.f32.mrb[0].mxu0
    %v2852 = vadd.f32 %v2499, %v2851
    %v2853 = vpop.f32.mrb[0].mxu0
    %v2854 = vadd.f32 %v2501, %v2853
    %2855 = vdwg.mxu0
    %v2856 = vadd.f32 %v148, %v2538
    %v2857 = vadd.f32 %v149, %v2540
    %v2858 = vadd.f32 %v150, %v2542
    %v2859 = vadd.f32 %v151, %v2544
    %v2860 = vadd.f32 %v152, %v2548
    %v2861 = vadd.f32 %v153, %v2550
    %v2862 = vadd.f32 %v154, %v2552
    %v2863 = vadd.f32 %v155, %v2554
    %v2864 = vadd.f32 %v156, %v2558
    %v2865 = vadd.f32 %v157, %v2560
    %v2866 = vadd.f32 %v158, %v2562
    %v2867 = vadd.f32 %v159, %v2564
    %v2868 = vadd.f32 %v160, %v2568
    %v2869 = vadd.f32 %v161, %v2570
    %v2870 = vadd.f32 %v162, %v2572
    %v2871 = vadd.f32 %v163, %v2574
    %v2872 = vadd.f32 %v164, %v2578
    %v2873 = vadd.f32 %v165, %v2580
    %v2874 = vadd.f32 %v166, %v2582
    %v2875 = vadd.f32 %v167, %v2584
    %v2876 = vadd.f32 %v168, %v2588
    %v2877 = vadd.f32 %v169, %v2590
    %v2878 = vadd.f32 %v170, %v2592
    %v2879 = vadd.f32 %v171, %v2594
    %v2880 = vadd.f32 %v172, %v2598
    %v2881 = vadd.f32 %v173, %v2600
    %v2882 = vadd.f32 %v174, %v2602
    %v2883 = vadd.f32 %v175, %v2604
    %v2884 = vadd.f32 %v176, %v2608
    %v2885 = vadd.f32 %v177, %v2610
    %v2886 = vadd.f32 %v178, %v2612
    %v2887 = vadd.f32 %v179, %v2614
    %v2888 = vadd.f32 %v180, %v2618
    %v2889 = vadd.f32 %v181, %v2620
    %v2890 = vadd.f32 %v182, %v2622
    %v2891 = vadd.f32 %v183, %v2624
    %v2892 = vadd.f32 %v184, %v2628
    %v2893 = vadd.f32 %v185, %v2630
    %v2894 = vadd.f32 %v186, %v2632
    %v2895 = vadd.f32 %v187, %v2634
    %v2896 = vadd.f32 %v188, %v2638
    %v2897 = vadd.f32 %v189, %v2640
    %v2898 = vadd.f32 %v190, %v2642
    %v2899 = vadd.f32 %v191, %v2644
    %v2900 = vadd.f32 %v192, %v2648
    %v2901 = vadd.f32 %v193, %v2650
    %v2902 = vadd.f32 %v194, %v2652
    %v2903 = vadd.f32 %v195, %v2654
    %v2904 = vadd.f32 %v196, %v2658
    %v2905 = vadd.f32 %v197, %v2660
    %v2906 = vadd.f32 %v198, %v2662
    %v2907 = vadd.f32 %v199, %v2664
    %v2908 = vadd.f32 %v200, %v2668
    %v2909 = vadd.f32 %v201, %v2670
    %v2910 = vadd.f32 %v202, %v2672
    %v2911 = vadd.f32 %v203, %v2674
    %v2912 = vadd.f32 %v204, %v2678
    %v2913 = vadd.f32 %v205, %v2680
    %v2914 = vadd.f32 %v206, %v2682
    %v2915 = vadd.f32 %v207, %v2684
    %v2916 = vadd.f32 %v208, %v2688
    %v2917 = vadd.f32 %v209, %v2690
    %v2918 = vadd.f32 %v210, %v2692
    %v2919 = vadd.f32 %v211, %v2694
    %v2920 = vadd.f32 %v212, %v2698
    %v2921 = vadd.f32 %v213, %v2700
    %v2922 = vadd.f32 %v214, %v2702
    %v2923 = vadd.f32 %v215, %v2704
    %v2924 = vadd.f32 %v216, %v2708
    %v2925 = vadd.f32 %v217, %v2710
    %v2926 = vadd.f32 %v218, %v2712
    %v2927 = vadd.f32 %v219, %v2714
    %v2928 = vadd.f32 %v220, %v2718
    %v2929 = vadd.f32 %v221, %v2720
    %v2930 = vadd.f32 %v222, %v2722
    %v2931 = vadd.f32 %v223, %v2724
    %v2932 = vadd.f32 %v224, %v2728
    %v2933 = vadd.f32 %v225, %v2730
    %v2934 = vadd.f32 %v226, %v2732
    %v2935 = vadd.f32 %v227, %v2734
    %v2936 = vadd.f32 %v228, %v2738
    %v2937 = vadd.f32 %v229, %v2740
    %v2938 = vadd.f32 %v230, %v2742
    %v2939 = vadd.f32 %v231, %v2744
    %v2940 = vadd.f32 %v232, %v2748
    %v2941 = vadd.f32 %v233, %v2750
    %v2942 = vadd.f32 %v234, %v2752
    %v2943 = vadd.f32 %v235, %v2754
    %v2944 = vadd.f32 %v236, %v2758
    %v2945 = vadd.f32 %v237, %v2760
    %v2946 = vadd.f32 %v238, %v2762
    %v2947 = vadd.f32 %v239, %v2764
    %v2948 = vadd.f32 %v240, %v2768
    %v2949 = vadd.f32 %v241, %v2770
    %v2950 = vadd.f32 %v242, %v2772
    %v2951 = vadd.f32 %v243, %v2774
    %v2952 = vadd.f32 %v244, %v2778
    %v2953 = vadd.f32 %v245, %v2780
    %v2954 = vadd.f32 %v246, %v2782
    %v2955 = vadd.f32 %v247, %v2784
    %v2956 = vadd.f32 %v248, %v2788
    %v2957 = vadd.f32 %v249, %v2790
    %v2958 = vadd.f32 %v250, %v2792
    %v2959 = vadd.f32 %v251, %v2794
    %v2960 = vadd.f32 %v252, %v2798
    %v2961 = vadd.f32 %v253, %v2800
    %v2962 = vadd.f32 %v254, %v2802
    %v2963 = vadd.f32 %v255, %v2804
    %v2964 = vadd.f32 %v256, %v2808
    %v2965 = vadd.f32 %v257, %v2810
    %v2966 = vadd.f32 %v258, %v2812
    %v2967 = vadd.f32 %v259, %v2814
    %v2968 = vadd.f32 %v260, %v2818
    %v2969 = vadd.f32 %v261, %v2820
    %v2970 = vadd.f32 %v262, %v2822
    %v2971 = vadd.f32 %v263, %v2824
    %v2972 = vadd.f32 %v264, %v2828
    %v2973 = vadd.f32 %v265, %v2830
    %v2974 = vadd.f32 %v266, %v2832
    %v2975 = vadd.f32 %v267, %v2834
    %v2976 = vadd.f32 %v268, %v2838
    %v2977 = vadd.f32 %v269, %v2840
    %v2978 = vadd.f32 %v270, %v2842
    %v2979 = vadd.f32 %v271, %v2844
    %v2980 = vadd.f32 %v272, %v2848
    %v2981 = vadd.f32 %v273, %v2850
    %v2982 = vadd.f32 %v274, %v2852
    %v2983 = vadd.f32 %v275, %v2854
    %2984 = vst [vmem:[#allocation2] sm:$0xff] %v2856
    %2985 = vst [vmem:[#allocation2 + $0x8] sm:$0xff] %v2857
    %2986 = vst [vmem:[#allocation2 + $0x10] sm:$0xff] %v2858
    %2987 = vst [vmem:[#allocation2 + $0x18] sm:$0xff] %v2859
    %2988 = vst [vmem:[#allocation2 + $0x20] sm:$0xff] %v2860
    %2989 = vst [vmem:[#allocation2 + $0x28] sm:$0xff] %v2861
    %2990 = vst [vmem:[#allocation2 + $0x30] sm:$0xff] %v2862
    %2991 = vst [vmem:[#allocation2 + $0x38] sm:$0xff] %v2863
    %2992 = vst [vmem:[#allocation2 + $0x40] sm:$0xff] %v2864
    %2993 = vst [vmem:[#allocation2 + $0x48] sm:$0xff] %v2865
    %2994 = vst [vmem:[#allocation2 + $0x50] sm:$0xff] %v2866
    %2995 = vst [vmem:[#allocation2 + $0x58] sm:$0xff] %v2867
    %2996 = vst [vmem:[#allocation2 + $0x60] sm:$0xff] %v2868
    %2997 = vst [vmem:[#allocation2 + $0x68] sm:$0xff] %v2869
    %2998 = vst [vmem:[#allocation2 + $0x70] sm:$0xff] %v2870
    %2999 = vst [vmem:[#allocation2 + $0x78] sm:$0xff] %v2871
    %3000 = vst [vmem:[#allocation2 + $0x80] sm:$0xff] %v2872
    %3001 = vst [vmem:[#allocation2 + $0x88] sm:$0xff] %v2873
    %3002 = vst [vmem:[#allocation2 + $0x90] sm:$0xff] %v2874
    %3003 = vst [vmem:[#allocation2 + $0x98] sm:$0xff] %v2875
    %3004 = vst [vmem:[#allocation2 + $0xa0] sm:$0xff] %v2876
    %3005 = vst [vmem:[#allocation2 + $0xa8] sm:$0xff] %v2877
    %3006 = vst [vmem:[#allocation2 + $0xb0] sm:$0xff] %v2878
    %3007 = vst [vmem:[#allocation2 + $0xb8] sm:$0xff] %v2879
    %3008 = vst [vmem:[#allocation2 + $0xc0] sm:$0xff] %v2880
    %3009 = vst [vmem:[#allocation2 + $0xc8] sm:$0xff] %v2881
    %3010 = vst [vmem:[#allocation2 + $0xd0] sm:$0xff] %v2882
    %3011 = vst [vmem:[#allocation2 + $0xd8] sm:$0xff] %v2883
    %3012 = vst [vmem:[#allocation2 + $0xe0] sm:$0xff] %v2884
    %3013 = vst [vmem:[#allocation2 + $0xe8] sm:$0xff] %v2885
    %3014 = vst [vmem:[#allocation2 + $0xf0] sm:$0xff] %v2886
    %3015 = vst [vmem:[#allocation2 + $0xf8] sm:$0xff] %v2887
    %3016 = vst [vmem:[#allocation2 + $0x100] sm:$0xff] %v2888
    %3017 = vst [vmem:[#allocation2 + $0x108] sm:$0xff] %v2889
    %3018 = vst [vmem:[#allocation2 + $0x110] sm:$0xff] %v2890
    %3019 = vst [vmem:[#allocation2 + $0x118] sm:$0xff] %v2891
    %3020 = vst [vmem:[#allocation2 + $0x120] sm:$0xff] %v2892
    %3021 = vst [vmem:[#allocation2 + $0x128] sm:$0xff] %v2893
    %3022 = vst [vmem:[#allocation2 + $0x130] sm:$0xff] %v2894
    %3023 = vst [vmem:[#allocation2 + $0x138] sm:$0xff] %v2895
    %3024 = vst [vmem:[#allocation2 + $0x140] sm:$0xff] %v2896
    %3025 = vst [vmem:[#allocation2 + $0x148] sm:$0xff] %v2897
    %3026 = vst [vmem:[#allocation2 + $0x150] sm:$0xff] %v2898
    %3027 = vst [vmem:[#allocation2 + $0x158] sm:$0xff] %v2899
    %3028 = vst [vmem:[#allocation2 + $0x160] sm:$0xff] %v2900
    %3029 = vst [vmem:[#allocation2 + $0x168] sm:$0xff] %v2901
    %3030 = vst [vmem:[#allocation2 + $0x170] sm:$0xff] %v2902
    %3031 = vst [vmem:[#allocation2 + $0x178] sm:$0xff] %v2903
    %3032 = vst [vmem:[#allocation2 + $0x180] sm:$0xff] %v2904
    %3033 = vst [vmem:[#allocation2 + $0x188] sm:$0xff] %v2905
    %3034 = vst [vmem:[#allocation2 + $0x190] sm:$0xff] %v2906
    %3035 = vst [vmem:[#allocation2 + $0x198] sm:$0xff] %v2907
    %3036 = vst [vmem:[#allocation2 + $0x1a0] sm:$0xff] %v2908
    %3037 = vst [vmem:[#allocation2 + $0x1a8] sm:$0xff] %v2909
    %3038 = vst [vmem:[#allocation2 + $0x1b0] sm:$0xff] %v2910
    %3039 = vst [vmem:[#allocation2 + $0x1b8] sm:$0xff] %v2911
    %3040 = vst [vmem:[#allocation2 + $0x1c0] sm:$0xff] %v2912
    %3041 = vst [vmem:[#allocation2 + $0x1c8] sm:$0xff] %v2913
    %3042 = vst [vmem:[#allocation2 + $0x1d0] sm:$0xff] %v2914
    %3043 = vst [vmem:[#allocation2 + $0x1d8] sm:$0xff] %v2915
    %3044 = vst [vmem:[#allocation2 + $0x1e0] sm:$0xff] %v2916
    %3045 = vst [vmem:[#allocation2 + $0x1e8] sm:$0xff] %v2917
    %3046 = vst [vmem:[#allocation2 + $0x1f0] sm:$0xff] %v2918
    %3047 = vst [vmem:[#allocation2 + $0x1f8] sm:$0xff] %v2919
    %3048 = vst [vmem:[#allocation2 + $0x200] sm:$0xff] %v2920
    %3049 = vst [vmem:[#allocation2 + $0x208] sm:$0xff] %v2921
    %3050 = vst [vmem:[#allocation2 + $0x210] sm:$0xff] %v2922
    %3051 = vst [vmem:[#allocation2 + $0x218] sm:$0xff] %v2923
    %3052 = vst [vmem:[#allocation2 + $0x220] sm:$0xff] %v2924
    %3053 = vst [vmem:[#allocation2 + $0x228] sm:$0xff] %v2925
    %3054 = vst [vmem:[#allocation2 + $0x230] sm:$0xff] %v2926
    %3055 = vst [vmem:[#allocation2 + $0x238] sm:$0xff] %v2927
    %3056 = vst [vmem:[#allocation2 + $0x240] sm:$0xff] %v2928
    %3057 = vst [vmem:[#allocation2 + $0x248] sm:$0xff] %v2929
    %3058 = vst [vmem:[#allocation2 + $0x250] sm:$0xff] %v2930
    %3059 = vst [vmem:[#allocation2 + $0x258] sm:$0xff] %v2931
    %3060 = vst [vmem:[#allocation2 + $0x260] sm:$0xff] %v2932
    %3061 = vst [vmem:[#allocation2 + $0x268] sm:$0xff] %v2933
    %3062 = vst [vmem:[#allocation2 + $0x270] sm:$0xff] %v2934
    %3063 = vst [vmem:[#allocation2 + $0x278] sm:$0xff] %v2935
    %3064 = vst [vmem:[#allocation2 + $0x280] sm:$0xff] %v2936
    %3065 = vst [vmem:[#allocation2 + $0x288] sm:$0xff] %v2937
    %3066 = vst [vmem:[#allocation2 + $0x290] sm:$0xff] %v2938
    %3067 = vst [vmem:[#allocation2 + $0x298] sm:$0xff] %v2939
    %3068 = vst [vmem:[#allocation2 + $0x2a0] sm:$0xff] %v2940
    %3069 = vst [vmem:[#allocation2 + $0x2a8] sm:$0xff] %v2941
    %3070 = vst [vmem:[#allocation2 + $0x2b0] sm:$0xff] %v2942
    %3071 = vst [vmem:[#allocation2 + $0x2b8] sm:$0xff] %v2943
    %3072 = vst [vmem:[#allocation2 + $0x2c0] sm:$0xff] %v2944
    %3073 = vst [vmem:[#allocation2 + $0x2c8] sm:$0xff] %v2945
    %3074 = vst [vmem:[#allocation2 + $0x2d0] sm:$0xff] %v2946
    %3075 = vst [vmem:[#allocation2 + $0x2d8] sm:$0xff] %v2947
    %3076 = vst [vmem:[#allocation2 + $0x2e0] sm:$0xff] %v2948
    %3077 = vst [vmem:[#allocation2 + $0x2e8] sm:$0xff] %v2949
    %3078 = vst [vmem:[#allocation2 + $0x2f0] sm:$0xff] %v2950
    %3079 = vst [vmem:[#allocation2 + $0x2f8] sm:$0xff] %v2951
    %3080 = vst [vmem:[#allocation2 + $0x300] sm:$0xff] %v2952
    %3081 = vst [vmem:[#allocation2 + $0x308] sm:$0xff] %v2953
    %3082 = vst [vmem:[#allocation2 + $0x310] sm:$0xff] %v2954
    %3083 = vst [vmem:[#allocation2 + $0x318] sm:$0xff] %v2955
    %3084 = vst [vmem:[#allocation2 + $0x320] sm:$0xff] %v2956
    %3085 = vst [vmem:[#allocation2 + $0x328] sm:$0xff] %v2957
    %3086 = vst [vmem:[#allocation2 + $0x330] sm:$0xff] %v2958
    %3087 = vst [vmem:[#allocation2 + $0x338] sm:$0xff] %v2959
    %3088 = vst [vmem:[#allocation2 + $0x340] sm:$0xff] %v2960
    %3089 = vst [vmem:[#allocation2 + $0x348] sm:$0xff] %v2961
    %3090 = vst [vmem:[#allocation2 + $0x350] sm:$0xff] %v2962
    %3091 = vst [vmem:[#allocation2 + $0x358] sm:$0xff] %v2963
    %3092 = vst [vmem:[#allocation2 + $0x360] sm:$0xff] %v2964
    %3093 = vst [vmem:[#allocation2 + $0x368] sm:$0xff] %v2965
    %3094 = vst [vmem:[#allocation2 + $0x370] sm:$0xff] %v2966
    %3095 = vst [vmem:[#allocation2 + $0x378] sm:$0xff] %v2967
    %3096 = vst [vmem:[#allocation2 + $0x380] sm:$0xff] %v2968
    %3097 = vst [vmem:[#allocation2 + $0x388] sm:$0xff] %v2969
    %3098 = vst [vmem:[#allocation2 + $0x390] sm:$0xff] %v2970
    %3099 = vst [vmem:[#allocation2 + $0x398] sm:$0xff] %v2971
    %3100 = vst [vmem:[#allocation2 + $0x3a0] sm:$0xff] %v2972
    %3101 = vst [vmem:[#allocation2 + $0x3a8] sm:$0xff] %v2973
    %3102 = vst [vmem:[#allocation2 + $0x3b0] sm:$0xff] %v2974
    %3103 = vst [vmem:[#allocation2 + $0x3b8] sm:$0xff] %v2975
    %3104 = vst [vmem:[#allocation2 + $0x3c0] sm:$0xff] %v2976
    %3105 = vst [vmem:[#allocation2 + $0x3c8] sm:$0xff] %v2977
    %3106 = vst [vmem:[#allocation2 + $0x3d0] sm:$0xff] %v2978
    %3107 = vst [vmem:[#allocation2 + $0x3d8] sm:$0xff] %v2979
    %3108 = vst [vmem:[#allocation2 + $0x3e0] sm:$0xff] %v2980
    %3109 = vst [vmem:[#allocation2 + $0x3e8] sm:$0xff] %v2981
    %3110 = vst [vmem:[#allocation2 + $0x3f0] sm:$0xff] %v2982
    %3111 = vst [vmem:[#allocation2 + $0x3f8] sm:$0xff] %v2983
    // Predicated region
    $region18: #{tpu_custom_call.1} parent=1 // pred_check
      %p3112 = pneg %p16
    $region19: #{tpu_custom_call.1} parent=1 // pred_check_branch
      %3114 = sbr.rel (%p3112) target = $region21
    $region20: #{tpu_custom_call.1} parent=1 // pred_region
      %v3115 = vld [vmem:[#allocation2] sm:$0xff]
      %v3116 = vld [vmem:[#allocation2 + $0x8] sm:$0xff]
      %v3117 = vld [vmem:[#allocation2 + $0x10] sm:$0xff]
      %v3118 = vld [vmem:[#allocation2 + $0x18] sm:$0xff]
      %v3119 = vld [vmem:[#allocation2 + $0x20] sm:$0xff]
      %v3120 = vld [vmem:[#allocation2 + $0x28] sm:$0xff]
      %v3121 = vld [vmem:[#allocation2 + $0x30] sm:$0xff]
      %v3122 = vld [vmem:[#allocation2 + $0x38] sm:$0xff]
      %v3123 = vld [vmem:[#allocation2 + $0x40] sm:$0xff]
      %v3124 = vld [vmem:[#allocation2 + $0x48] sm:$0xff]
      %v3125 = vld [vmem:[#allocation2 + $0x50] sm:$0xff]
      %v3126 = vld [vmem:[#allocation2 + $0x58] sm:$0xff]
      %v3127 = vld [vmem:[#allocation2 + $0x60] sm:$0xff]
      %v3128 = vld [vmem:[#allocation2 + $0x68] sm:$0xff]
      %v3129 = vld [vmem:[#allocation2 + $0x70] sm:$0xff]
      %v3130 = vld [vmem:[#allocation2 + $0x78] sm:$0xff]
      %v3131 = vld [vmem:[#allocation2 + $0x80] sm:$0xff]
      %v3132 = vld [vmem:[#allocation2 + $0x88] sm:$0xff]
      %v3133 = vld [vmem:[#allocation2 + $0x90] sm:$0xff]
      %v3134 = vld [vmem:[#allocation2 + $0x98] sm:$0xff]
      %v3135 = vld [vmem:[#allocation2 + $0xa0] sm:$0xff]
      %v3136 = vld [vmem:[#allocation2 + $0xa8] sm:$0xff]
      %v3137 = vld [vmem:[#allocation2 + $0xb0] sm:$0xff]
      %v3138 = vld [vmem:[#allocation2 + $0xb8] sm:$0xff]
      %v3139 = vld [vmem:[#allocation2 + $0xc0] sm:$0xff]
      %v3140 = vld [vmem:[#allocation2 + $0xc8] sm:$0xff]
      %v3141 = vld [vmem:[#allocation2 + $0xd0] sm:$0xff]
      %v3142 = vld [vmem:[#allocation2 + $0xd8] sm:$0xff]
      %v3143 = vld [vmem:[#allocation2 + $0xe0] sm:$0xff]
      %v3144 = vld [vmem:[#allocation2 + $0xe8] sm:$0xff]
      %v3145 = vld [vmem:[#allocation2 + $0xf0] sm:$0xff]
      %v3146 = vld [vmem:[#allocation2 + $0xf8] sm:$0xff]
      %v3147 = vld [vmem:[#allocation2 + $0x100] sm:$0xff]
      %v3148 = vld [vmem:[#allocation2 + $0x108] sm:$0xff]
      %v3149 = vld [vmem:[#allocation2 + $0x110] sm:$0xff]
      %v3150 = vld [vmem:[#allocation2 + $0x118] sm:$0xff]
      %v3151 = vld [vmem:[#allocation2 + $0x120] sm:$0xff]
      %v3152 = vld [vmem:[#allocation2 + $0x128] sm:$0xff]
      %v3153 = vld [vmem:[#allocation2 + $0x130] sm:$0xff]
      %v3154 = vld [vmem:[#allocation2 + $0x138] sm:$0xff]
      %v3155 = vld [vmem:[#allocation2 + $0x140] sm:$0xff]
      %v3156 = vld [vmem:[#allocation2 + $0x148] sm:$0xff]
      %v3157 = vld [vmem:[#allocation2 + $0x150] sm:$0xff]
      %v3158 = vld [vmem:[#allocation2 + $0x158] sm:$0xff]
      %v3159 = vld [vmem:[#allocation2 + $0x160] sm:$0xff]
      %v3160 = vld [vmem:[#allocation2 + $0x168] sm:$0xff]
      %v3161 = vld [vmem:[#allocation2 + $0x170] sm:$0xff]
      %v3162 = vld [vmem:[#allocation2 + $0x178] sm:$0xff]
      %v3163 = vld [vmem:[#allocation2 + $0x180] sm:$0xff]
      %v3164 = vld [vmem:[#allocation2 + $0x188] sm:$0xff]
      %v3165 = vld [vmem:[#allocation2 + $0x190] sm:$0xff]
      %v3166 = vld [vmem:[#allocation2 + $0x198] sm:$0xff]
      %v3167 = vld [vmem:[#allocation2 + $0x1a0] sm:$0xff]
      %v3168 = vld [vmem:[#allocation2 + $0x1a8] sm:$0xff]
      %v3169 = vld [vmem:[#allocation2 + $0x1b0] sm:$0xff]
      %v3170 = vld [vmem:[#allocation2 + $0x1b8] sm:$0xff]
      %v3171 = vld [vmem:[#allocation2 + $0x1c0] sm:$0xff]
      %v3172 = vld [vmem:[#allocation2 + $0x1c8] sm:$0xff]
      %v3173 = vld [vmem:[#allocation2 + $0x1d0] sm:$0xff]
      %v3174 = vld [vmem:[#allocation2 + $0x1d8] sm:$0xff]
      %v3175 = vld [vmem:[#allocation2 + $0x1e0] sm:$0xff]
      %v3176 = vld [vmem:[#allocation2 + $0x1e8] sm:$0xff]
      %v3177 = vld [vmem:[#allocation2 + $0x1f0] sm:$0xff]
      %v3178 = vld [vmem:[#allocation2 + $0x1f8] sm:$0xff]
      %v3179 = vld [vmem:[#allocation2 + $0x200] sm:$0xff]
      %v3180 = vld [vmem:[#allocation2 + $0x208] sm:$0xff]
      %v3181 = vld [vmem:[#allocation2 + $0x210] sm:$0xff]
      %v3182 = vld [vmem:[#allocation2 + $0x218] sm:$0xff]
      %v3183 = vld [vmem:[#allocation2 + $0x220] sm:$0xff]
      %v3184 = vld [vmem:[#allocation2 + $0x228] sm:$0xff]
      %v3185 = vld [vmem:[#allocation2 + $0x230] sm:$0xff]
      %v3186 = vld [vmem:[#allocation2 + $0x238] sm:$0xff]
      %v3187 = vld [vmem:[#allocation2 + $0x240] sm:$0xff]
      %v3188 = vld [vmem:[#allocation2 + $0x248] sm:$0xff]
      %v3189 = vld [vmem:[#allocation2 + $0x250] sm:$0xff]
      %v3190 = vld [vmem:[#allocation2 + $0x258] sm:$0xff]
      %v3191 = vld [vmem:[#allocation2 + $0x260] sm:$0xff]
      %v3192 = vld [vmem:[#allocation2 + $0x268] sm:$0xff]
      %v3193 = vld [vmem:[#allocation2 + $0x270] sm:$0xff]
      %v3194 = vld [vmem:[#allocation2 + $0x278] sm:$0xff]
      %v3195 = vld [vmem:[#allocation2 + $0x280] sm:$0xff]
      %v3196 = vld [vmem:[#allocation2 + $0x288] sm:$0xff]
      %v3197 = vld [vmem:[#allocation2 + $0x290] sm:$0xff]
      %v3198 = vld [vmem:[#allocation2 + $0x298] sm:$0xff]
      %v3199 = vld [vmem:[#allocation2 + $0x2a0] sm:$0xff]
      %v3200 = vld [vmem:[#allocation2 + $0x2a8] sm:$0xff]
      %v3201 = vld [vmem:[#allocation2 + $0x2b0] sm:$0xff]
      %v3202 = vld [vmem:[#allocation2 + $0x2b8] sm:$0xff]
      %v3203 = vld [vmem:[#allocation2 + $0x2c0] sm:$0xff]
      %v3204 = vld [vmem:[#allocation2 + $0x2c8] sm:$0xff]
      %v3205 = vld [vmem:[#allocation2 + $0x2d0] sm:$0xff]
      %v3206 = vld [vmem:[#allocation2 + $0x2d8] sm:$0xff]
      %v3207 = vld [vmem:[#allocation2 + $0x2e0] sm:$0xff]
      %v3208 = vld [vmem:[#allocation2 + $0x2e8] sm:$0xff]
      %v3209 = vld [vmem:[#allocation2 + $0x2f0] sm:$0xff]
      %v3210 = vld [vmem:[#allocation2 + $0x2f8] sm:$0xff]
      %v3211 = vld [vmem:[#allocation2 + $0x300] sm:$0xff]
      %v3212 = vld [vmem:[#allocation2 + $0x308] sm:$0xff]
      %v3213 = vld [vmem:[#allocation2 + $0x310] sm:$0xff]
      %v3214 = vld [vmem:[#allocation2 + $0x318] sm:$0xff]
      %v3215 = vld [vmem:[#allocation2 + $0x320] sm:$0xff]
      %v3216 = vld [vmem:[#allocation2 + $0x328] sm:$0xff]
      %v3217 = vld [vmem:[#allocation2 + $0x330] sm:$0xff]
      %v3218 = vld [vmem:[#allocation2 + $0x338] sm:$0xff]
      %v3219 = vld [vmem:[#allocation2 + $0x340] sm:$0xff]
      %v3220 = vld [vmem:[#allocation2 + $0x348] sm:$0xff]
      %v3221 = vld [vmem:[#allocation2 + $0x350] sm:$0xff]
      %v3222 = vld [vmem:[#allocation2 + $0x358] sm:$0xff]
      %v3223 = vld [vmem:[#allocation2 + $0x360] sm:$0xff]
      %v3224 = vld [vmem:[#allocation2 + $0x368] sm:$0xff]
      %v3225 = vld [vmem:[#allocation2 + $0x370] sm:$0xff]
      %v3226 = vld [vmem:[#allocation2 + $0x378] sm:$0xff]
      %v3227 = vld [vmem:[#allocation2 + $0x380] sm:$0xff]
      %v3228 = vld [vmem:[#allocation2 + $0x388] sm:$0xff]
      %v3229 = vld [vmem:[#allocation2 + $0x390] sm:$0xff]
      %v3230 = vld [vmem:[#allocation2 + $0x398] sm:$0xff]
      %v3231 = vld [vmem:[#allocation2 + $0x3a0] sm:$0xff]
      %v3232 = vld [vmem:[#allocation2 + $0x3a8] sm:$0xff]
      %v3233 = vld [vmem:[#allocation2 + $0x3b0] sm:$0xff]
      %v3234 = vld [vmem:[#allocation2 + $0x3b8] sm:$0xff]
      %v3235 = vld [vmem:[#allocation2 + $0x3c0] sm:$0xff]
      %v3236 = vld [vmem:[#allocation2 + $0x3c8] sm:$0xff]
      %v3237 = vld [vmem:[#allocation2 + $0x3d0] sm:$0xff]
      %v3238 = vld [vmem:[#allocation2 + $0x3d8] sm:$0xff]
      %v3239 = vld [vmem:[#allocation2 + $0x3e0] sm:$0xff]
      %v3240 = vld [vmem:[#allocation2 + $0x3e8] sm:$0xff]
      %v3241 = vld [vmem:[#allocation2 + $0x3f0] sm:$0xff]
      %v3242 = vld [vmem:[#allocation2 + $0x3f8] sm:$0xff]
      %v3243 = vld [vmem:[%s2] sm:$0x3]
      %v3245 = vlaneseq
      %v3246 = vshrl.u32 %v3245, 7
      %v3247 = vsub.s32 0, %v3246
      %v3248 = vrot.slane %v3243, %v3247
      %v3249 = vlaneseq
      %v3250 = vshrl.u32 %v3249, 7
      %v3251 = vsub.s32 1, %v3250
      %v3252 = vrot.slane %v3243, %v3251
      %v3255 = vadd.f32 %v3115, %v3248
      %v3256 = vadd.f32 %v3116, %v3252
      %v3257 = vadd.f32 %v3117, %v3248
      %v3258 = vadd.f32 %v3118, %v3252
      %v3259 = vadd.f32 %v3119, %v3248
      %v3260 = vadd.f32 %v3120, %v3252
      %v3261 = vadd.f32 %v3121, %v3248
      %v3262 = vadd.f32 %v3122, %v3252
      %v3263 = vadd.f32 %v3123, %v3248
      %v3264 = vadd.f32 %v3124, %v3252
      %v3265 = vadd.f32 %v3125, %v3248
      %v3266 = vadd.f32 %v3126, %v3252
      %v3267 = vadd.f32 %v3127, %v3248
      %v3268 = vadd.f32 %v3128, %v3252
      %v3269 = vadd.f32 %v3129, %v3248
      %v3270 = vadd.f32 %v3130, %v3252
      %v3271 = vadd.f32 %v3131, %v3248
      %v3272 = vadd.f32 %v3132, %v3252
      %v3273 = vadd.f32 %v3133, %v3248
      %v3274 = vadd.f32 %v3134, %v3252
      %v3275 = vadd.f32 %v3135, %v3248
      %v3276 = vadd.f32 %v3136, %v3252
      %v3277 = vadd.f32 %v3137, %v3248
      %v3278 = vadd.f32 %v3138, %v3252
      %v3279 = vadd.f32 %v3139, %v3248
      %v3280 = vadd.f32 %v3140, %v3252
      %v3281 = vadd.f32 %v3141, %v3248
      %v3282 = vadd.f32 %v3142, %v3252
      %v3283 = vadd.f32 %v3143, %v3248
      %v3284 = vadd.f32 %v3144, %v3252
      %v3285 = vadd.f32 %v3145, %v3248
      %v3286 = vadd.f32 %v3146, %v3252
      %v3287 = vadd.f32 %v3147, %v3248
      %v3288 = vadd.f32 %v3148, %v3252
      %v3289 = vadd.f32 %v3149, %v3248
      %v3290 = vadd.f32 %v3150, %v3252
      %v3291 = vadd.f32 %v3151, %v3248
      %v3292 = vadd.f32 %v3152, %v3252
      %v3293 = vadd.f32 %v3153, %v3248
      %v3294 = vadd.f32 %v3154, %v3252
      %v3295 = vadd.f32 %v3155, %v3248
      %v3296 = vadd.f32 %v3156, %v3252
      %v3297 = vadd.f32 %v3157, %v3248
      %v3298 = vadd.f32 %v3158, %v3252
      %v3299 = vadd.f32 %v3159, %v3248
      %v3300 = vadd.f32 %v3160, %v3252
      %v3301 = vadd.f32 %v3161, %v3248
      %v3302 = vadd.f32 %v3162, %v3252
      %v3303 = vadd.f32 %v3163, %v3248
      %v3304 = vadd.f32 %v3164, %v3252
      %v3305 = vadd.f32 %v3165, %v3248
      %v3306 = vadd.f32 %v3166, %v3252
      %v3307 = vadd.f32 %v3167, %v3248
      %v3308 = vadd.f32 %v3168, %v3252
      %v3309 = vadd.f32 %v3169, %v3248
      %v3310 = vadd.f32 %v3170, %v3252
      %v3311 = vadd.f32 %v3171, %v3248
      %v3312 = vadd.f32 %v3172, %v3252
      %v3313 = vadd.f32 %v3173, %v3248
      %v3314 = vadd.f32 %v3174, %v3252
      %v3315 = vadd.f32 %v3175, %v3248
      %v3316 = vadd.f32 %v3176, %v3252
      %v3317 = vadd.f32 %v3177, %v3248
      %v3318 = vadd.f32 %v3178, %v3252
      %v3319 = vadd.f32 %v3179, %v3248
      %v3320 = vadd.f32 %v3180, %v3252
      %v3321 = vadd.f32 %v3181, %v3248
      %v3322 = vadd.f32 %v3182, %v3252
      %v3323 = vadd.f32 %v3183, %v3248
      %v3324 = vadd.f32 %v3184, %v3252
      %v3325 = vadd.f32 %v3185, %v3248
      %v3326 = vadd.f32 %v3186, %v3252
      %v3327 = vadd.f32 %v3187, %v3248
      %v3328 = vadd.f32 %v3188, %v3252
      %v3329 = vadd.f32 %v3189, %v3248
      %v3330 = vadd.f32 %v3190, %v3252
      %v3331 = vadd.f32 %v3191, %v3248
      %v3332 = vadd.f32 %v3192, %v3252
      %v3333 = vadd.f32 %v3193, %v3248
      %v3334 = vadd.f32 %v3194, %v3252
      %v3335 = vadd.f32 %v3195, %v3248
      %v3336 = vadd.f32 %v3196, %v3252
      %v3337 = vadd.f32 %v3197, %v3248
      %v3338 = vadd.f32 %v3198, %v3252
      %v3339 = vadd.f32 %v3199, %v3248
      %v3340 = vadd.f32 %v3200, %v3252
      %v3341 = vadd.f32 %v3201, %v3248
      %v3342 = vadd.f32 %v3202, %v3252
      %v3343 = vadd.f32 %v3203, %v3248
      %v3344 = vadd.f32 %v3204, %v3252
      %v3345 = vadd.f32 %v3205, %v3248
      %v3346 = vadd.f32 %v3206, %v3252
      %v3347 = vadd.f32 %v3207, %v3248
      %v3348 = vadd.f32 %v3208, %v3252
      %v3349 = vadd.f32 %v3209, %v3248
      %v3350 = vadd.f32 %v3210, %v3252
      %v3351 = vadd.f32 %v3211, %v3248
      %v3352 = vadd.f32 %v3212, %v3252
      %v3353 = vadd.f32 %v3213, %v3248
      %v3354 = vadd.f32 %v3214, %v3252
      %v3355 = vadd.f32 %v3215, %v3248
      %v3356 = vadd.f32 %v3216, %v3252
      %v3357 = vadd.f32 %v3217, %v3248
      %v3358 = vadd.f32 %v3218, %v3252
      %v3359 = vadd.f32 %v3219, %v3248
      %v3360 = vadd.f32 %v3220, %v3252
      %v3361 = vadd.f32 %v3221, %v3248
      %v3362 = vadd.f32 %v3222, %v3252
      %v3363 = vadd.f32 %v3223, %v3248
      %v3364 = vadd.f32 %v3224, %v3252
      %v3365 = vadd.f32 %v3225, %v3248
      %v3366 = vadd.f32 %v3226, %v3252
      %v3367 = vadd.f32 %v3227, %v3248
      %v3368 = vadd.f32 %v3228, %v3252
      %v3369 = vadd.f32 %v3229, %v3248
      %v3370 = vadd.f32 %v3230, %v3252
      %v3371 = vadd.f32 %v3231, %v3248
      %v3372 = vadd.f32 %v3232, %v3252
      %v3373 = vadd.f32 %v3233, %v3248
      %v3374 = vadd.f32 %v3234, %v3252
      %v3375 = vadd.f32 %v3235, %v3248
      %v3376 = vadd.f32 %v3236, %v3252
      %v3377 = vadd.f32 %v3237, %v3248
      %v3378 = vadd.f32 %v3238, %v3252
      %v3379 = vadd.f32 %v3239, %v3248
      %v3380 = vadd.f32 %v3240, %v3252
      %v3381 = vadd.f32 %v3241, %v3248
      %v3382 = vadd.f32 %v3242, %v3252
      %v3383 = vmax.f32 %v3255, 0.0
      %v3384 = vmax.f32 %v3256, 0.0
      %v3385 = vmax.f32 %v3257, 0.0
      %v3386 = vmax.f32 %v3258, 0.0
      %v3387 = vmax.f32 %v3259, 0.0
      %v3388 = vmax.f32 %v3260, 0.0
      %v3389 = vmax.f32 %v3261, 0.0
      %v3390 = vmax.f32 %v3262, 0.0
      %v3391 = vmax.f32 %v3263, 0.0
      %v3392 = vmax.f32 %v3264, 0.0
      %v3393 = vmax.f32 %v3265, 0.0
      %v3394 = vmax.f32 %v3266, 0.0
      %v3395 = vmax.f32 %v3267, 0.0
      %v3396 = vmax.f32 %v3268, 0.0
      %v3397 = vmax.f32 %v3269, 0.0
      %v3398 = vmax.f32 %v3270, 0.0
      %v3399 = vmax.f32 %v3271, 0.0
      %v3400 = vmax.f32 %v3272, 0.0
      %v3401 = vmax.f32 %v3273, 0.0
      %v3402 = vmax.f32 %v3274, 0.0
      %v3403 = vmax.f32 %v3275, 0.0
      %v3404 = vmax.f32 %v3276, 0.0
      %v3405 = vmax.f32 %v3277, 0.0
      %v3406 = vmax.f32 %v3278, 0.0
      %v3407 = vmax.f32 %v3279, 0.0
      %v3408 = vmax.f32 %v3280, 0.0
      %v3409 = vmax.f32 %v3281, 0.0
      %v3410 = vmax.f32 %v3282, 0.0
      %v3411 = vmax.f32 %v3283, 0.0
      %v3412 = vmax.f32 %v3284, 0.0
      %v3413 = vmax.f32 %v3285, 0.0
      %v3414 = vmax.f32 %v3286, 0.0
      %v3415 = vmax.f32 %v3287, 0.0
      %v3416 = vmax.f32 %v3288, 0.0
      %v3417 = vmax.f32 %v3289, 0.0
      %v3418 = vmax.f32 %v3290, 0.0
      %v3419 = vmax.f32 %v3291, 0.0
      %v3420 = vmax.f32 %v3292, 0.0
      %v3421 = vmax.f32 %v3293, 0.0
      %v3422 = vmax.f32 %v3294, 0.0
      %v3423 = vmax.f32 %v3295, 0.0
      %v3424 = vmax.f32 %v3296, 0.0
      %v3425 = vmax.f32 %v3297, 0.0
      %v3426 = vmax.f32 %v3298, 0.0
      %v3427 = vmax.f32 %v3299, 0.0
      %v3428 = vmax.f32 %v3300, 0.0
      %v3429 = vmax.f32 %v3301, 0.0
      %v3430 = vmax.f32 %v3302, 0.0
      %v3431 = vmax.f32 %v3303, 0.0
      %v3432 = vmax.f32 %v3304, 0.0
      %v3433 = vmax.f32 %v3305, 0.0
      %v3434 = vmax.f32 %v3306, 0.0
      %v3435 = vmax.f32 %v3307, 0.0
      %v3436 = vmax.f32 %v3308, 0.0
      %v3437 = vmax.f32 %v3309, 0.0
      %v3438 = vmax.f32 %v3310, 0.0
      %v3439 = vmax.f32 %v3311, 0.0
      %v3440 = vmax.f32 %v3312, 0.0
      %v3441 = vmax.f32 %v3313, 0.0
      %v3442 = vmax.f32 %v3314, 0.0
      %v3443 = vmax.f32 %v3315, 0.0
      %v3444 = vmax.f32 %v3316, 0.0
      %v3445 = vmax.f32 %v3317, 0.0
      %v3446 = vmax.f32 %v3318, 0.0
      %v3447 = vmax.f32 %v3319, 0.0
      %v3448 = vmax.f32 %v3320, 0.0
      %v3449 = vmax.f32 %v3321, 0.0
      %v3450 = vmax.f32 %v3322, 0.0
      %v3451 = vmax.f32 %v3323, 0.0
      %v3452 = vmax.f32 %v3324, 0.0
      %v3453 = vmax.f32 %v3325, 0.0
      %v3454 = vmax.f32 %v3326, 0.0
      %v3455 = vmax.f32 %v3327, 0.0
      %v3456 = vmax.f32 %v3328, 0.0
      %v3457 = vmax.f32 %v3329, 0.0
      %v3458 = vmax.f32 %v3330, 0.0
      %v3459 = vmax.f32 %v3331, 0.0
      %v3460 = vmax.f32 %v3332, 0.0
      %v3461 = vmax.f32 %v3333, 0.0
      %v3462 = vmax.f32 %v3334, 0.0
      %v3463 = vmax.f32 %v3335, 0.0
      %v3464 = vmax.f32 %v3336, 0.0
      %v3465 = vmax.f32 %v3337, 0.0
      %v3466 = vmax.f32 %v3338, 0.0
      %v3467 = vmax.f32 %v3339, 0.0
      %v3468 = vmax.f32 %v3340, 0.0
      %v3469 = vmax.f32 %v3341, 0.0
      %v3470 = vmax.f32 %v3342, 0.0
      %v3471 = vmax.f32 %v3343, 0.0
      %v3472 = vmax.f32 %v3344, 0.0
      %v3473 = vmax.f32 %v3345, 0.0
      %v3474 = vmax.f32 %v3346, 0.0
      %v3475 = vmax.f32 %v3347, 0.0
      %v3476 = vmax.f32 %v3348, 0.0
      %v3477 = vmax.f32 %v3349, 0.0
      %v3478 = vmax.f32 %v3350, 0.0
      %v3479 = vmax.f32 %v3351, 0.0
      %v3480 = vmax.f32 %v3352, 0.0
      %v3481 = vmax.f32 %v3353, 0.0
      %v3482 = vmax.f32 %v3354, 0.0
      %v3483 = vmax.f32 %v3355, 0.0
      %v3484 = vmax.f32 %v3356, 0.0
      %v3485 = vmax.f32 %v3357, 0.0
      %v3486 = vmax.f32 %v3358, 0.0
      %v3487 = vmax.f32 %v3359, 0.0
      %v3488 = vmax.f32 %v3360, 0.0
      %v3489 = vmax.f32 %v3361, 0.0
      %v3490 = vmax.f32 %v3362, 0.0
      %v3491 = vmax.f32 %v3363, 0.0
      %v3492 = vmax.f32 %v3364, 0.0
      %v3493 = vmax.f32 %v3365, 0.0
      %v3494 = vmax.f32 %v3366, 0.0
      %v3495 = vmax.f32 %v3367, 0.0
      %v3496 = vmax.f32 %v3368, 0.0
      %v3497 = vmax.f32 %v3369, 0.0
      %v3498 = vmax.f32 %v3370, 0.0
      %v3499 = vmax.f32 %v3371, 0.0
      %v3500 = vmax.f32 %v3372, 0.0
      %v3501 = vmax.f32 %v3373, 0.0
      %v3502 = vmax.f32 %v3374, 0.0
      %v3503 = vmax.f32 %v3375, 0.0
      %v3504 = vmax.f32 %v3376, 0.0
      %v3505 = vmax.f32 %v3377, 0.0
      %v3506 = vmax.f32 %v3378, 0.0
      %v3507 = vmax.f32 %v3379, 0.0
      %v3508 = vmax.f32 %v3380, 0.0
      %v3509 = vmax.f32 %v3381, 0.0
      %v3510 = vmax.f32 %v3382, 0.0
      %3511 = vst [vmem:[#allocation2] sm:$0xff] %v3383
      %3512 = vst [vmem:[#allocation2 + $0x8] sm:$0xff] %v3384
      %3513 = vst [vmem:[#allocation2 + $0x10] sm:$0xff] %v3385
      %3514 = vst [vmem:[#allocation2 + $0x18] sm:$0xff] %v3386
      %3515 = vst [vmem:[#allocation2 + $0x20] sm:$0xff] %v3387
      %3516 = vst [vmem:[#allocation2 + $0x28] sm:$0xff] %v3388
      %3517 = vst [vmem:[#allocation2 + $0x30] sm:$0xff] %v3389
      %3518 = vst [vmem:[#allocation2 + $0x38] sm:$0xff] %v3390
      %3519 = vst [vmem:[#allocation2 + $0x40] sm:$0xff] %v3391
      %3520 = vst [vmem:[#allocation2 + $0x48] sm:$0xff] %v3392
      %3521 = vst [vmem:[#allocation2 + $0x50] sm:$0xff] %v3393
      %3522 = vst [vmem:[#allocation2 + $0x58] sm:$0xff] %v3394
      %3523 = vst [vmem:[#allocation2 + $0x60] sm:$0xff] %v3395
      %3524 = vst [vmem:[#allocation2 + $0x68] sm:$0xff] %v3396
      %3525 = vst [vmem:[#allocation2 + $0x70] sm:$0xff] %v3397
      %3526 = vst [vmem:[#allocation2 + $0x78] sm:$0xff] %v3398
      %3527 = vst [vmem:[#allocation2 + $0x80] sm:$0xff] %v3399
      %3528 = vst [vmem:[#allocation2 + $0x88] sm:$0xff] %v3400
      %3529 = vst [vmem:[#allocation2 + $0x90] sm:$0xff] %v3401
      %3530 = vst [vmem:[#allocation2 + $0x98] sm:$0xff] %v3402
      %3531 = vst [vmem:[#allocation2 + $0xa0] sm:$0xff] %v3403
      %3532 = vst [vmem:[#allocation2 + $0xa8] sm:$0xff] %v3404
      %3533 = vst [vmem:[#allocation2 + $0xb0] sm:$0xff] %v3405
      %3534 = vst [vmem:[#allocation2 + $0xb8] sm:$0xff] %v3406
      %3535 = vst [vmem:[#allocation2 + $0xc0] sm:$0xff] %v3407
      %3536 = vst [vmem:[#allocation2 + $0xc8] sm:$0xff] %v3408
      %3537 = vst [vmem:[#allocation2 + $0xd0] sm:$0xff] %v3409
      %3538 = vst [vmem:[#allocation2 + $0xd8] sm:$0xff] %v3410
      %3539 = vst [vmem:[#allocation2 + $0xe0] sm:$0xff] %v3411
      %3540 = vst [vmem:[#allocation2 + $0xe8] sm:$0xff] %v3412
      %3541 = vst [vmem:[#allocation2 + $0xf0] sm:$0xff] %v3413
      %3542 = vst [vmem:[#allocation2 + $0xf8] sm:$0xff] %v3414
      %3543 = vst [vmem:[#allocation2 + $0x100] sm:$0xff] %v3415
      %3544 = vst [vmem:[#allocation2 + $0x108] sm:$0xff] %v3416
      %3545 = vst [vmem:[#allocation2 + $0x110] sm:$0xff] %v3417
      %3546 = vst [vmem:[#allocation2 + $0x118] sm:$0xff] %v3418
      %3547 = vst [vmem:[#allocation2 + $0x120] sm:$0xff] %v3419
      %3548 = vst [vmem:[#allocation2 + $0x128] sm:$0xff] %v3420
      %3549 = vst [vmem:[#allocation2 + $0x130] sm:$0xff] %v3421
      %3550 = vst [vmem:[#allocation2 + $0x138] sm:$0xff] %v3422
      %3551 = vst [vmem:[#allocation2 + $0x140] sm:$0xff] %v3423
      %3552 = vst [vmem:[#allocation2 + $0x148] sm:$0xff] %v3424
      %3553 = vst [vmem:[#allocation2 + $0x150] sm:$0xff] %v3425
      %3554 = vst [vmem:[#allocation2 + $0x158] sm:$0xff] %v3426
      %3555 = vst [vmem:[#allocation2 + $0x160] sm:$0xff] %v3427
      %3556 = vst [vmem:[#allocation2 + $0x168] sm:$0xff] %v3428
      %3557 = vst [vmem:[#allocation2 + $0x170] sm:$0xff] %v3429
      %3558 = vst [vmem:[#allocation2 + $0x178] sm:$0xff] %v3430
      %3559 = vst [vmem:[#allocation2 + $0x180] sm:$0xff] %v3431
      %3560 = vst [vmem:[#allocation2 + $0x188] sm:$0xff] %v3432
      %3561 = vst [vmem:[#allocation2 + $0x190] sm:$0xff] %v3433
      %3562 = vst [vmem:[#allocation2 + $0x198] sm:$0xff] %v3434
      %3563 = vst [vmem:[#allocation2 + $0x1a0] sm:$0xff] %v3435
      %3564 = vst [vmem:[#allocation2 + $0x1a8] sm:$0xff] %v3436
      %3565 = vst [vmem:[#allocation2 + $0x1b0] sm:$0xff] %v3437
      %3566 = vst [vmem:[#allocation2 + $0x1b8] sm:$0xff] %v3438
      %3567 = vst [vmem:[#allocation2 + $0x1c0] sm:$0xff] %v3439
      %3568 = vst [vmem:[#allocation2 + $0x1c8] sm:$0xff] %v3440
      %3569 = vst [vmem:[#allocation2 + $0x1d0] sm:$0xff] %v3441
      %3570 = vst [vmem:[#allocation2 + $0x1d8] sm:$0xff] %v3442
      %3571 = vst [vmem:[#allocation2 + $0x1e0] sm:$0xff] %v3443
      %3572 = vst [vmem:[#allocation2 + $0x1e8] sm:$0xff] %v3444
      %3573 = vst [vmem:[#allocation2 + $0x1f0] sm:$0xff] %v3445
      %3574 = vst [vmem:[#allocation2 + $0x1f8] sm:$0xff] %v3446
      %3575 = vst [vmem:[#allocation2 + $0x200] sm:$0xff] %v3447
      %3576 = vst [vmem:[#allocation2 + $0x208] sm:$0xff] %v3448
      %3577 = vst [vmem:[#allocation2 + $0x210] sm:$0xff] %v3449
      %3578 = vst [vmem:[#allocation2 + $0x218] sm:$0xff] %v3450
      %3579 = vst [vmem:[#allocation2 + $0x220] sm:$0xff] %v3451
      %3580 = vst [vmem:[#allocation2 + $0x228] sm:$0xff] %v3452
      %3581 = vst [vmem:[#allocation2 + $0x230] sm:$0xff] %v3453
      %3582 = vst [vmem:[#allocation2 + $0x238] sm:$0xff] %v3454
      %3583 = vst [vmem:[#allocation2 + $0x240] sm:$0xff] %v3455
      %3584 = vst [vmem:[#allocation2 + $0x248] sm:$0xff] %v3456
      %3585 = vst [vmem:[#allocation2 + $0x250] sm:$0xff] %v3457
      %3586 = vst [vmem:[#allocation2 + $0x258] sm:$0xff] %v3458
      %3587 = vst [vmem:[#allocation2 + $0x260] sm:$0xff] %v3459
      %3588 = vst [vmem:[#allocation2 + $0x268] sm:$0xff] %v3460
      %3589 = vst [vmem:[#allocation2 + $0x270] sm:$0xff] %v3461
      %3590 = vst [vmem:[#allocation2 + $0x278] sm:$0xff] %v3462
      %3591 = vst [vmem:[#allocation2 + $0x280] sm:$0xff] %v3463
      %3592 = vst [vmem:[#allocation2 + $0x288] sm:$0xff] %v3464
      %3593 = vst [vmem:[#allocation2 + $0x290] sm:$0xff] %v3465
      %3594 = vst [vmem:[#allocation2 + $0x298] sm:$0xff] %v3466
      %3595 = vst [vmem:[#allocation2 + $0x2a0] sm:$0xff] %v3467
      %3596 = vst [vmem:[#allocation2 + $0x2a8] sm:$0xff] %v3468
      %3597 = vst [vmem:[#allocation2 + $0x2b0] sm:$0xff] %v3469
      %3598 = vst [vmem:[#allocation2 + $0x2b8] sm:$0xff] %v3470
      %3599 = vst [vmem:[#allocation2 + $0x2c0] sm:$0xff] %v3471
      %3600 = vst [vmem:[#allocation2 + $0x2c8] sm:$0xff] %v3472
      %3601 = vst [vmem:[#allocation2 + $0x2d0] sm:$0xff] %v3473
      %3602 = vst [vmem:[#allocation2 + $0x2d8] sm:$0xff] %v3474
      %3603 = vst [vmem:[#allocation2 + $0x2e0] sm:$0xff] %v3475
      %3604 = vst [vmem:[#allocation2 + $0x2e8] sm:$0xff] %v3476
      %3605 = vst [vmem:[#allocation2 + $0x2f0] sm:$0xff] %v3477
      %3606 = vst [vmem:[#allocation2 + $0x2f8] sm:$0xff] %v3478
      %3607 = vst [vmem:[#allocation2 + $0x300] sm:$0xff] %v3479
      %3608 = vst [vmem:[#allocation2 + $0x308] sm:$0xff] %v3480
      %3609 = vst [vmem:[#allocation2 + $0x310] sm:$0xff] %v3481
      %3610 = vst [vmem:[#allocation2 + $0x318] sm:$0xff] %v3482
      %3611 = vst [vmem:[#allocation2 + $0x320] sm:$0xff] %v3483
      %3612 = vst [vmem:[#allocation2 + $0x328] sm:$0xff] %v3484
      %3613 = vst [vmem:[#allocation2 + $0x330] sm:$0xff] %v3485
      %3614 = vst [vmem:[#allocation2 + $0x338] sm:$0xff] %v3486
      %3615 = vst [vmem:[#allocation2 + $0x340] sm:$0xff] %v3487
      %3616 = vst [vmem:[#allocation2 + $0x348] sm:$0xff] %v3488
      %3617 = vst [vmem:[#allocation2 + $0x350] sm:$0xff] %v3489
      %3618 = vst [vmem:[#allocation2 + $0x358] sm:$0xff] %v3490
      %3619 = vst [vmem:[#allocation2 + $0x360] sm:$0xff] %v3491
      %3620 = vst [vmem:[#allocation2 + $0x368] sm:$0xff] %v3492
      %3621 = vst [vmem:[#allocation2 + $0x370] sm:$0xff] %v3493
      %3622 = vst [vmem:[#allocation2 + $0x378] sm:$0xff] %v3494
      %3623 = vst [vmem:[#allocation2 + $0x380] sm:$0xff] %v3495
      %3624 = vst [vmem:[#allocation2 + $0x388] sm:$0xff] %v3496
      %3625 = vst [vmem:[#allocation2 + $0x390] sm:$0xff] %v3497
      %3626 = vst [vmem:[#allocation2 + $0x398] sm:$0xff] %v3498
      %3627 = vst [vmem:[#allocation2 + $0x3a0] sm:$0xff] %v3499
      %3628 = vst [vmem:[#allocation2 + $0x3a8] sm:$0xff] %v3500
      %3629 = vst [vmem:[#allocation2 + $0x3b0] sm:$0xff] %v3501
      %3630 = vst [vmem:[#allocation2 + $0x3b8] sm:$0xff] %v3502
      %3631 = vst [vmem:[#allocation2 + $0x3c0] sm:$0xff] %v3503
      %3632 = vst [vmem:[#allocation2 + $0x3c8] sm:$0xff] %v3504
      %3633 = vst [vmem:[#allocation2 + $0x3d0] sm:$0xff] %v3505
      %3634 = vst [vmem:[#allocation2 + $0x3d8] sm:$0xff] %v3506
      %3635 = vst [vmem:[#allocation2 + $0x3e0] sm:$0xff] %v3507
      %3636 = vst [vmem:[#allocation2 + $0x3e8] sm:$0xff] %v3508
      %3637 = vst [vmem:[#allocation2 + $0x3f0] sm:$0xff] %v3509
      %3638 = vst [vmem:[#allocation2 + $0x3f8] sm:$0xff] %v3510
    $region21: #{tpu_custom_call.1} parent=1 // pred_fallthru
      _
    // Predicated region
    $region22: #{tpu_custom_call.1} parent=1 // pred_check
      _
    $region23: #{tpu_custom_call.1} parent=1 // pred_check_branch
      %3640 = sbr.rel (0) target = $region25
    $region24: #{tpu_custom_call.1} parent=1 // pred_region
      %s3642 = ssub.s32 16384, 16384
      %3643 = vsyncadd [#allocation3], %s3642
      %s3644 = sshll.u32 [#allocation2], 4
      %s3645 = int_to_ptr.vmem [resolvable:$true] %s3644
      %3650 = dma.vmem_to_hbm [thread:$0]  %s3645, 16384, %s3, [#allocation3], 256, 256, 16
    $region25: #{tpu_custom_call.1} parent=1 // pred_fallthru
      _
    // Predicated region
    $region26: #{tpu_custom_call.1} parent=1 // pred_check
      _
    $region27: #{tpu_custom_call.1} parent=1 // pred_check_branch
      %3652 = sbr.rel (0) target = $region29
    $region28: #{tpu_custom_call.1} parent=1 // pred_region
      %3653 = dma.done [#allocation3], 16384
    $region29: #{tpu_custom_call.1} parent=1 // pred_fallthru
      _
    %3654 = vsyncpa [#allocation3], 1

</llo_original>
